<compile_context>
chip_gen: v5e
topology: v5e:2x2
jax: 0.10.0
libtpu: 0.0.40
codegen_flags: <defaults>
</compile_context>

<pallas_src>
import numpy as np
import jax
import jax.numpy as jnp
from jax.experimental import pallas as pl
from jax.experimental.pallas import tpu as pltpu

# ---------------- static problem geometry (fixed by the torch module) ----------------
TILE_B = 8                       # images per grid step
H, W = 28, 28                    # input spatial (required by the 20*4*4 flatten)
C1, C2 = 10, 20                  # conv output channels
KK = 5                           # conv kernel size
H1, W1 = 24, 24                  # conv1 output spatial
HP1, WP1 = 12, 12                # after pool1
H2, W2 = 8, 8                    # conv2 output spatial
HP2, WP2 = 4, 4                  # after pool2
N1 = W1 * C1                     # 240 interleaved (wo, co) lanes after conv1
N1P = N1 - C1                    # 230 lanes after W-pool1 (even wo groups valid)
N2 = W2 * C2                     # 160 interleaved lanes after conv2
N2P = N2 - C2                    # 140 lanes after W-pool2
FC1_OUT, NUM_CLASSES = 50, 10
FC_PAD = 128                     # lane-dense padding for the fc path / output


# -------------------- the fused Pallas kernel --------------------

def _cnn_kernel(x_ref, w1_ref, b1_ref, e1_ref, w2_ref, b2_ref, e2_ref,
                w3_ref, b3_ref, w4_ref, b4_ref, o_ref):
    tb = x_ref.shape[0]
    f32 = jnp.float32
    bf16 = jnp.bfloat16

    # ---- conv1 + bias + ReLU (banded matmul over the 5 kernel rows) ----
    # output lanes are interleaved as wo*10 + co
    y1 = None
    for kh in range(KK):
        a = x_ref[:, kh:kh + H1, :].reshape(tb * H1, W).astype(bf16)
        t = jnp.dot(a, w1_ref[kh], preferred_element_type=f32)
        y1 = t if y1 is None else y1 + t
    y1 = jnp.maximum(y1 + b1_ref[...], 0.0)                    # (tb*24, 240)

    # ---- 2x2 max-pool #1 ----
    # W direction: max of adjacent 10-lane channel groups (valid at even wo)
    p1 = jnp.maximum(y1[:, :N1P], y1[:, C1:])                  # (tb*24, 230)
    # H direction: row-pair max, then stride-2 row selection as a 0/1 matmul
    hm1 = jnp.maximum(p1[:-1, :], p1[1:, :]).astype(bf16)      # (tb*24-1, 230)
    a1 = jnp.dot(e1_ref[...], hm1, preferred_element_type=f32) # (tb*12, 230)
    a1 = a1.reshape(tb, HP1, N1P)

    # ---- conv2 + bias + ReLU (banded matmul over kh) ----
    # output lanes interleaved as wo*20 + co
    y2 = None
    for kh in range(KK):
        a = a1[:, kh:kh + H2, :].reshape(tb * H2, N1P).astype(bf16)
        t = jnp.dot(a, w2_ref[kh], preferred_element_type=f32)
        y2 = t if y2 is None else y2 + t
    y2 = jnp.maximum(y2 + b2_ref[...], 0.0)                    # (tb*8, 160)

    # ---- 2x2 max-pool #2 ----
    p2 = jnp.maximum(y2[:, :N2P], y2[:, C2:])                  # (tb*8, 140)
    hm2 = jnp.maximum(p2[:-1, :], p2[1:, :]).astype(bf16)      # (tb*8-1, 140)
    a2 = jnp.dot(e2_ref[...], hm2, preferred_element_type=f32) # (tb*4, 140)
    a2 = a2.reshape(tb, HP2, N2P)

    # ---- fc1 + ReLU (torch NCHW flatten order folded into w3) ----
    acc = None
    for hp in range(HP2):
        a = a2[:, hp, :].astype(bf16)                          # (tb, 140)
        t = jnp.dot(a, w3_ref[hp], preferred_element_type=f32)
        acc = t if acc is None else acc + t
    a4 = jnp.maximum(acc + b3_ref[...], 0.0)                   # (tb, 128); cols >= 50 are 0

    # ---- fc2 ----
    out = jnp.dot(a4.astype(bf16), w4_ref[...], preferred_element_type=f32)
    o_ref[...] = out + b4_ref[...]                             # (tb, 128); cols >= 10 are bias-pad


# -------------------- parameter packing (torch layout -> kernel operands) --------------------

def init_params(key):
    # deterministic, PyTorch-like uniform(-1/sqrt(fan_in), 1/sqrt(fan_in)) init
    ks = jax.random.split(key, 8)

    def u(k, shape, fan_in):
        bound = 1.0 / (fan_in ** 0.5)
        return jax.random.uniform(k, shape, jnp.float32, -bound, bound)

    return {
        "conv1_w": u(ks[0], (C1, 1, KK, KK), 1 * KK * KK),
        "conv1_b": u(ks[1], (C1,), 1 * KK * KK),
        "conv2_w": u(ks[2], (C2, C1, KK, KK), C1 * KK * KK),
        "conv2_b": u(ks[3], (C2,), C1 * KK * KK),
        "fc1_w":   u(ks[4], (FC1_OUT, C2 * HP2 * WP2), C2 * HP2 * WP2),
        "fc1_b":   u(ks[5], (FC1_OUT,), C2 * HP2 * WP2),
        "fc2_w":   u(ks[6], (NUM_CLASSES, FC1_OUT), FC1_OUT),
        "fc2_b":   u(ks[7], (NUM_CLASSES,), FC1_OUT),
    }


def pack_params(p):
    """One-time conversion of torch-layout weights into banded / padded bf16 slabs."""
    w1 = np.asarray(p["conv1_w"], np.float32)
    b1 = np.asarray(p["conv1_b"], np.float32)
    w2 = np.asarray(p["conv2_w"], np.float32)
    b2 = np.asarray(p["conv2_b"], np.float32)
    f1w = np.asarray(p["fc1_w"], np.float32)
    f1b = np.asarray(p["fc1_b"], np.float32)
    f2w = np.asarray(p["fc2_w"], np.float32)
    f2b = np.asarray(p["fc2_b"], np.float32)

    # conv1 banded over W: B1[kh][w_in, wo*10+co] = w1[co,0,kh, w_in-wo]
    B1 = np.zeros((KK, W, N1), np.float32)
    for kh in range(KK):
        for wo in range(W1):
            for kw in range(KK):
                B1[kh, wo + kw, wo * C1:(wo + 1) * C1] = w1[:, 0, kh, kw]

    # conv2 banded over the w-pooled conv1 lanes (j = wo1*10+ci, even wo1 valid)
    B2 = np.zeros((KK, N1P, N2), np.float32)
    for kh in range(KK):
        for wo2 in range(W2):
            for kw in range(KK):
                wo1 = 2 * (wo2 + kw)
                for ci in range(C1):
                    B2[kh, wo1 * C1 + ci, wo2 * C2:(wo2 + 1) * C2] = w2[:, ci, kh, kw]

    # fc1 folded per pooled row hp; torch flatten index k = co*16 + hp*4 + wp
    W3 = np.zeros((HP2, N2P, FC_PAD), np.float32)
    for hp in range(HP2):
        for wp in range(WP2):
            for co in range(C2):
                W3[hp, (2 * wp) * C2 + co, :FC1_OUT] = f1w[:, co * (HP2 * WP2) + hp * WP2 + wp]

    W4 = np.zeros((FC_PAD, FC_PAD), np.float32)
    W4[:FC1_OUT, :NUM_CLASSES] = f2w.T

    # 0/1 even-row selection matrices (stride-2 H-pool pick done on the MXU)
    E1 = np.zeros((TILE_B * HP1, TILE_B * H1 - 1), np.float32)
    E1[np.arange(TILE_B * HP1), 2 * np.arange(TILE_B * HP1)] = 1.0
    E2 = np.zeros((TILE_B * HP2, TILE_B * H2 - 1), np.float32)
    E2[np.arange(TILE_B * HP2), 2 * np.arange(TILE_B * HP2)] = 1.0

    bias1 = np.tile(b1, W1).reshape(1, N1)
    bias2 = np.tile(b2, W2).reshape(1, N2)
    bias3 = np.zeros((1, FC_PAD), np.float32); bias3[0, :FC1_OUT] = f1b
    bias4 = np.zeros((1, FC_PAD), np.float32); bias4[0, :NUM_CLASSES] = f2b

    bf = jnp.bfloat16
    return {
        "w1": jnp.asarray(B1, bf), "b1": jnp.asarray(bias1), "e1": jnp.asarray(E1, bf),
        "w2": jnp.asarray(B2, bf), "b2": jnp.asarray(bias2), "e2": jnp.asarray(E2, bf),
        "w3": jnp.asarray(W3, bf), "b3": jnp.asarray(bias3),
        "w4": jnp.asarray(W4, bf), "b4": jnp.asarray(bias4),
    }


# -------------------- forward --------------------

@jax.jit
def cnn_forward(packed, x):
    n = x.shape[0]
    assert x.shape[1:] == (H, W), "this CNN requires 28x28 inputs"
    x = x.astype(jnp.float32)
    npad = ((n + TILE_B - 1) // TILE_B) * TILE_B
    if npad != n:
        x = jnp.pad(x, ((0, npad - n), (0, 0), (0, 0)))
    grid = (npad // TILE_B,)

    flops_step = int(
        KK * 2 * (TILE_B * H1) * W * N1
        + 2 * (TILE_B * HP1) * (TILE_B * H1 - 1) * N1P
        + KK * 2 * (TILE_B * H2) * N1P * N2
        + 2 * (TILE_B * HP2) * (TILE_B * H2 - 1) * N2P
        + HP2 * 2 * TILE_B * N2P * FC_PAD
        + 2 * TILE_B * FC_PAD * FC_PAD)
    w_bytes = int(sum(int(np.prod(v.shape)) * v.dtype.itemsize for v in packed.values()))
    bytes_acc = int(grid[0]) * (TILE_B * H * W * 4 + TILE_B * FC_PAD * 4) + w_bytes

    out = pl.pallas_call(
        _cnn_kernel,
        out_shape=jax.ShapeDtypeStruct((npad, FC_PAD), jnp.float32),
        grid_spec=pltpu.PrefetchScalarGridSpec(
            num_scalar_prefetch=0,
            grid=grid,
            in_specs=[
                pl.BlockSpec((TILE_B, H, W), lambda i: (i, 0, 0)),                   # x tile
                pl.BlockSpec((KK, W, N1), lambda i: (0, 0, 0)),                      # conv1 banded w
                pl.BlockSpec((1, N1), lambda i: (0, 0)),                             # conv1 bias (tiled)
                pl.BlockSpec((TILE_B * HP1, TILE_B * H1 - 1), lambda i: (0, 0)),     # pool1 row-select
                pl.BlockSpec((KK, N1P, N2), lambda i: (0, 0, 0)),                    # conv2 banded w
                pl.BlockSpec((1, N2), lambda i: (0, 0)),                             # conv2 bias (tiled)
                pl.BlockSpec((TILE_B * HP2, TILE_B * H2 - 1), lambda i: (0, 0)),     # pool2 row-select
                pl.BlockSpec((HP2, N2P, FC_PAD), lambda i: (0, 0, 0)),               # fc1 folded w
                pl.BlockSpec((1, FC_PAD), lambda i: (0, 0)),                         # fc1 bias (padded)
                pl.BlockSpec((FC_PAD, FC_PAD), lambda i: (0, 0)),                    # fc2 w (padded)
                pl.BlockSpec((1, FC_PAD), lambda i: (0, 0)),                         # fc2 bias (padded)
            ],
            out_specs=pl.BlockSpec((TILE_B, FC_PAD), lambda i: (i, 0)),
        ),
        compiler_params=pltpu.CompilerParams(
            dimension_semantics=("parallel",),
            vmem_limit_bytes=32 * 1024 * 1024,
        ),
        cost_estimate=pl.CostEstimate(
            flops=int(grid[0]) * flops_step,
            transcendentals=0,
            bytes_accessed=bytes_acc),
    )(x, packed["w1"], packed["b1"], packed["e1"],
      packed["w2"], packed["b2"], packed["e2"],
      packed["w3"], packed["b3"], packed["w4"], packed["b4"])
    return out[:n, :NUM_CLASSES]


# -------------------- pure-JAX reference (for a loose numerical sanity check) --------------------

def cnn_reference(params, x):
    x = x.astype(jnp.float32)[:, None, :, :]

    def conv_relu(v, w, b):
        y = jax.lax.conv_general_dilated(
            v, w, window_strides=(1, 1), padding="VALID",
            dimension_numbers=("NCHW", "OIHW", "NCHW"))
        return jax.nn.relu(y + b[None, :, None, None])

    def pool(v):
        return jax.lax.reduce_window(v, -jnp.inf, jax.lax.max,
                                     (1, 1, 2, 2), (1, 1, 2, 2), "VALID")

    a1 = pool(conv_relu(x, params["conv1_w"], params["conv1_b"]))
    a2 = pool(conv_relu(a1, params["conv2_w"], params["conv2_b"]))
    a3 = a2.reshape(a2.shape[0], -1)
    a4 = jax.nn.relu(a3 @ params["fc1_w"].T + params["fc1_b"])
    return a4 @ params["fc2_w"].T + params["fc2_b"]


if __name__ == "__main__":
    key = jax.random.PRNGKey(0)
    pkey, xkey = jax.random.split(key)
    params = init_params(pkey)
    packed = pack_params(params)

    # Spatial must be 28x28 so the 20*4*4 flatten of the torch module is valid.
    x = jax.random.normal(xkey, (2, 28, 28), dtype=jnp.float32)

    out = jax.block_until_ready(cnn_forward(packed, x))
    assert out.shape == (2, NUM_CLASSES) and out.dtype == jnp.float32

    ref = jax.block_until_ready(cnn_reference(params, x))
    # bf16 matmul operands (f32 accumulation) -> loose tolerance vs the f32 reference.
    np.testing.assert_allclose(np.asarray(out), np.asarray(ref), atol=1e-1, rtol=1e-1)

    print("KERNEL_OK")
</pallas_src>

<mosaic_0001>
module attributes {stable_mosaic.version = 11 : i64} {
  func.func @_cnn_kernel(%arg0: i32, %arg1: memref<8x28x28xf32, #tpu.memory_space<vmem>>, %arg2: memref<5x28x240xbf16, #tpu.memory_space<vmem>>, %arg3: memref<1x240xf32, #tpu.memory_space<vmem>>, %arg4: memref<96x191xbf16, #tpu.memory_space<vmem>>, %arg5: memref<5x230x160xbf16, #tpu.memory_space<vmem>>, %arg6: memref<1x160xf32, #tpu.memory_space<vmem>>, %arg7: memref<32x63xbf16, #tpu.memory_space<vmem>>, %arg8: memref<4x140x128xbf16, #tpu.memory_space<vmem>>, %arg9: memref<1x128xf32, #tpu.memory_space<vmem>>, %arg10: memref<128x128xbf16, #tpu.memory_space<vmem>>, %arg11: memref<1x128xf32, #tpu.memory_space<vmem>>, %arg12: memref<8x128xf32, #tpu.memory_space<vmem>>) attributes {dimension_semantics = [#tpu.dimension_semantics<parallel>], iteration_bounds = array<i64: 1>, scalar_prefetch = 0 : i64, scratch_operands = 0 : i64, tpu.core_type = #tpu.core_type<tc>, window_params = [{transform_indices = @transform_0, window_bounds = array<i64: 8, 28, 28>}, {pipeline_mode = #tpu.pipeline_mode<synchronous>, transform_indices = @transform_1, window_bounds = array<i64: 5, 28, 240>}, {pipeline_mode = #tpu.pipeline_mode<synchronous>, transform_indices = @transform_2, window_bounds = array<i64: 1, 240>}, {pipeline_mode = #tpu.pipeline_mode<synchronous>, transform_indices = @transform_3, window_bounds = array<i64: 96, 191>}, {pipeline_mode = #tpu.pipeline_mode<synchronous>, transform_indices = @transform_4, window_bounds = array<i64: 5, 230, 160>}, {pipeline_mode = #tpu.pipeline_mode<synchronous>, transform_indices = @transform_5, window_bounds = array<i64: 1, 160>}, {pipeline_mode = #tpu.pipeline_mode<synchronous>, transform_indices = @transform_6, window_bounds = array<i64: 32, 63>}, {pipeline_mode = #tpu.pipeline_mode<synchronous>, transform_indices = @transform_7, window_bounds = array<i64: 4, 140, 128>}, {pipeline_mode = #tpu.pipeline_mode<synchronous>, transform_indices = @transform_8, window_bounds = array<i64: 1, 128>}, {pipeline_mode = #tpu.pipeline_mode<synchronous>, transform_indices = @transform_9, window_bounds = array<i64: 128, 128>}, {pipeline_mode = #tpu.pipeline_mode<synchronous>, transform_indices = @transform_10, window_bounds = array<i64: 1, 128>}, {transform_indices = @transform_11, window_bounds = array<i64: 8, 128>}]} {
    %c0 = arith.constant 0 : index
    %c0_0 = arith.constant 0 : index
    %c0_1 = arith.constant 0 : index
    %0 = vector.load %arg1[%c0, %c0_0, %c0_1] : memref<8x28x28xf32, #tpu.memory_space<vmem>>, vector<8x24x28xf32>
    %1 = vector.shape_cast %0 : vector<8x24x28xf32> to vector<192x28xf32>
    %2 = arith.truncf %1 : vector<192x28xf32> to vector<192x28xbf16>
    %c0_2 = arith.constant 0 : index
    %c0_3 = arith.constant 0 : index
    %c0_4 = arith.constant 0 : index
    %3 = vector.load %arg2[%c0_2, %c0_3, %c0_4] : memref<5x28x240xbf16, #tpu.memory_space<vmem>>, vector<1x28x240xbf16>
    %4 = vector.shape_cast %3 : vector<1x28x240xbf16> to vector<28x240xbf16>
    %cst = arith.constant dense<0.000000e+00> : vector<192x240xf32>
    %5 = tpu.matmul %2, %4, %cst {dimension_numbers = #tpu.dot_dimension_numbers<[1], [0], [0], [1], [0, 0, 1, 1], [], []>} : vector<192x28xbf16>, vector<28x240xbf16>, vector<192x240xf32> -> vector<192x240xf32>
    %c0_5 = arith.constant 0 : index
    %c1 = arith.constant 1 : index
    %c0_6 = arith.constant 0 : index
    %6 = vector.load %arg1[%c0_5, %c1, %c0_6] : memref<8x28x28xf32, #tpu.memory_space<vmem>>, vector<8x24x28xf32>
    %7 = vector.shape_cast %6 : vector<8x24x28xf32> to vector<192x28xf32>
    %8 = arith.truncf %7 : vector<192x28xf32> to vector<192x28xbf16>
    %c1_7 = arith.constant 1 : index
    %c0_8 = arith.constant 0 : index
    %c0_9 = arith.constant 0 : index
    %9 = vector.load %arg2[%c1_7, %c0_8, %c0_9] : memref<5x28x240xbf16, #tpu.memory_space<vmem>>, vector<1x28x240xbf16>
    %10 = vector.shape_cast %9 : vector<1x28x240xbf16> to vector<28x240xbf16>
    %cst_10 = arith.constant dense<0.000000e+00> : vector<192x240xf32>
    %11 = tpu.matmul %8, %10, %cst_10 {dimension_numbers = #tpu.dot_dimension_numbers<[1], [0], [0], [1], [0, 0, 1, 1], [], []>} : vector<192x28xbf16>, vector<28x240xbf16>, vector<192x240xf32> -> vector<192x240xf32>
    %12 = arith.addf %5, %11 : vector<192x240xf32>
    %c0_11 = arith.constant 0 : index
    %c2 = arith.constant 2 : index
    %c0_12 = arith.constant 0 : index
    %13 = vector.load %arg1[%c0_11, %c2, %c0_12] : memref<8x28x28xf32, #tpu.memory_space<vmem>>, vector<8x24x28xf32>
    %14 = vector.shape_cast %13 : vector<8x24x28xf32> to vector<192x28xf32>
    %15 = arith.truncf %14 : vector<192x28xf32> to vector<192x28xbf16>
    %c2_13 = arith.constant 2 : index
    %c0_14 = arith.constant 0 : index
    %c0_15 = arith.constant 0 : index
    %16 = vector.load %arg2[%c2_13, %c0_14, %c0_15] : memref<5x28x240xbf16, #tpu.memory_space<vmem>>, vector<1x28x240xbf16>
    %17 = vector.shape_cast %16 : vector<1x28x240xbf16> to vector<28x240xbf16>
    %cst_16 = arith.constant dense<0.000000e+00> : vector<192x240xf32>
    %18 = tpu.matmul %15, %17, %cst_16 {dimension_numbers = #tpu.dot_dimension_numbers<[1], [0], [0], [1], [0, 0, 1, 1], [], []>} : vector<192x28xbf16>, vector<28x240xbf16>, vector<192x240xf32> -> vector<192x240xf32>
    %19 = arith.addf %12, %18 : vector<192x240xf32>
    %c0_17 = arith.constant 0 : index
    %c3 = arith.constant 3 : index
    %c0_18 = arith.constant 0 : index
    %20 = vector.load %arg1[%c0_17, %c3, %c0_18] : memref<8x28x28xf32, #tpu.memory_space<vmem>>, vector<8x24x28xf32>
    %21 = vector.shape_cast %20 : vector<8x24x28xf32> to vector<192x28xf32>
    %22 = arith.truncf %21 : vector<192x28xf32> to vector<192x28xbf16>
    %c3_19 = arith.constant 3 : index
    %c0_20 = arith.constant 0 : index
    %c0_21 = arith.constant 0 : index
    %23 = vector.load %arg2[%c3_19, %c0_20, %c0_21] : memref<5x28x240xbf16, #tpu.memory_space<vmem>>, vector<1x28x240xbf16>
    %24 = vector.shape_cast %23 : vector<1x28x240xbf16> to vector<28x240xbf16>
    %cst_22 = arith.constant dense<0.000000e+00> : vector<192x240xf32>
    %25 = tpu.matmul %22, %24, %cst_22 {dimension_numbers = #tpu.dot_dimension_numbers<[1], [0], [0], [1], [0, 0, 1, 1], [], []>} : vector<192x28xbf16>, vector<28x240xbf16>, vector<192x240xf32> -> vector<192x240xf32>
    %26 = arith.addf %19, %25 : vector<192x240xf32>
    %c0_23 = arith.constant 0 : index
    %c4 = arith.constant 4 : index
    %c0_24 = arith.constant 0 : index
    %27 = vector.load %arg1[%c0_23, %c4, %c0_24] : memref<8x28x28xf32, #tpu.memory_space<vmem>>, vector<8x24x28xf32>
    %28 = vector.shape_cast %27 : vector<8x24x28xf32> to vector<192x28xf32>
    %29 = arith.truncf %28 : vector<192x28xf32> to vector<192x28xbf16>
    %c4_25 = arith.constant 4 : index
    %c0_26 = arith.constant 0 : index
    %c0_27 = arith.constant 0 : index
    %30 = vector.load %arg2[%c4_25, %c0_26, %c0_27] : memref<5x28x240xbf16, #tpu.memory_space<vmem>>, vector<1x28x240xbf16>
    %31 = vector.shape_cast %30 : vector<1x28x240xbf16> to vector<28x240xbf16>
    %cst_28 = arith.constant dense<0.000000e+00> : vector<192x240xf32>
    %32 = tpu.matmul %29, %31, %cst_28 {dimension_numbers = #tpu.dot_dimension_numbers<[1], [0], [0], [1], [0, 0, 1, 1], [], []>} : vector<192x28xbf16>, vector<28x240xbf16>, vector<192x240xf32> -> vector<192x240xf32>
    %33 = arith.addf %26, %32 : vector<192x240xf32>
    %c0_29 = arith.constant 0 : index
    %c0_30 = arith.constant 0 : index
    %34 = vector.load %arg3[%c0_29, %c0_30] : memref<1x240xf32, #tpu.memory_space<vmem>>, vector<1x240xf32>
    %35 = vector.broadcast %34 : vector<1x240xf32> to vector<192x240xf32>
    %36 = arith.addf %33, %35 : vector<192x240xf32>
    %cst_31 = arith.constant 0.000000e+00 : f32
    %37 = vector.broadcast %cst_31 : f32 to vector<192x240xf32>
    %38 = arith.maximumf %36, %37 : vector<192x240xf32>
    %39 = vector.extract_strided_slice %38 {offsets = [0, 0], sizes = [192, 230], strides = [1, 1]} : vector<192x240xf32> to vector<192x230xf32>
    %40 = vector.extract_strided_slice %38 {offsets = [0, 10], sizes = [192, 230], strides = [1, 1]} : vector<192x240xf32> to vector<192x230xf32>
    %41 = arith.maximumf %39, %40 : vector<192x230xf32>
    %42 = vector.extract_strided_slice %41 {offsets = [0, 0], sizes = [191, 230], strides = [1, 1]} : vector<192x230xf32> to vector<191x230xf32>
    %43 = vector.extract_strided_slice %41 {offsets = [1, 0], sizes = [191, 230], strides = [1, 1]} : vector<192x230xf32> to vector<191x230xf32>
    %44 = arith.maximumf %42, %43 : vector<191x230xf32>
    %45 = arith.truncf %44 : vector<191x230xf32> to vector<191x230xbf16>
    %c0_32 = arith.constant 0 : index
    %c0_33 = arith.constant 0 : index
    %46 = vector.load %arg4[%c0_32, %c0_33] : memref<96x191xbf16, #tpu.memory_space<vmem>>, vector<96x191xbf16>
    %cst_34 = arith.constant dense<0.000000e+00> : vector<96x230xf32>
    %47 = tpu.matmul %46, %45, %cst_34 {dimension_numbers = #tpu.dot_dimension_numbers<[1], [0], [0], [1], [0, 0, 1, 1], [], []>} : vector<96x191xbf16>, vector<191x230xbf16>, vector<96x230xf32> -> vector<96x230xf32>
    %48 = vector.shape_cast %47 : vector<96x230xf32> to vector<8x12x230xf32>
    %49 = vector.extract_strided_slice %48 {offsets = [0, 0, 0], sizes = [8, 8, 230], strides = [1, 1, 1]} : vector<8x12x230xf32> to vector<8x8x230xf32>
    %50 = vector.shape_cast %49 : vector<8x8x230xf32> to vector<64x230xf32>
    %51 = arith.truncf %50 : vector<64x230xf32> to vector<64x230xbf16>
    %c0_35 = arith.constant 0 : index
    %c0_36 = arith.constant 0 : index
    %c0_37 = arith.constant 0 : index
    %52 = vector.load %arg5[%c0_35, %c0_36, %c0_37] : memref<5x230x160xbf16, #tpu.memory_space<vmem>>, vector<1x230x160xbf16>
    %53 = vector.shape_cast %52 : vector<1x230x160xbf16> to vector<230x160xbf16>
    %cst_38 = arith.constant dense<0.000000e+00> : vector<64x160xf32>
    %54 = tpu.matmul %51, %53, %cst_38 {dimension_numbers = #tpu.dot_dimension_numbers<[1], [0], [0], [1], [0, 0, 1, 1], [], []>} : vector<64x230xbf16>, vector<230x160xbf16>, vector<64x160xf32> -> vector<64x160xf32>
    %55 = vector.extract_strided_slice %48 {offsets = [0, 1, 0], sizes = [8, 8, 230], strides = [1, 1, 1]} : vector<8x12x230xf32> to vector<8x8x230xf32>
    %56 = vector.shape_cast %55 : vector<8x8x230xf32> to vector<64x230xf32>
    %57 = arith.truncf %56 : vector<64x230xf32> to vector<64x230xbf16>
    %c1_39 = arith.constant 1 : index
    %c0_40 = arith.constant 0 : index
    %c0_41 = arith.constant 0 : index
    %58 = vector.load %arg5[%c1_39, %c0_40, %c0_41] : memref<5x230x160xbf16, #tpu.memory_space<vmem>>, vector<1x230x160xbf16>
    %59 = vector.shape_cast %58 : vector<1x230x160xbf16> to vector<230x160xbf16>
    %cst_42 = arith.constant dense<0.000000e+00> : vector<64x160xf32>
    %60 = tpu.matmul %57, %59, %cst_42 {dimension_numbers = #tpu.dot_dimension_numbers<[1], [0], [0], [1], [0, 0, 1, 1], [], []>} : vector<64x230xbf16>, vector<230x160xbf16>, vector<64x160xf32> -> vector<64x160xf32>
    %61 = arith.addf %54, %60 : vector<64x160xf32>
    %62 = vector.extract_strided_slice %48 {offsets = [0, 2, 0], sizes = [8, 8, 230], strides = [1, 1, 1]} : vector<8x12x230xf32> to vector<8x8x230xf32>
    %63 = vector.shape_cast %62 : vector<8x8x230xf32> to vector<64x230xf32>
    %64 = arith.truncf %63 : vector<64x230xf32> to vector<64x230xbf16>
    %c2_43 = arith.constant 2 : index
    %c0_44 = arith.constant 0 : index
    %c0_45 = arith.constant 0 : index
    %65 = vector.load %arg5[%c2_43, %c0_44, %c0_45] : memref<5x230x160xbf16, #tpu.memory_space<vmem>>, vector<1x230x160xbf16>
    %66 = vector.shape_cast %65 : vector<1x230x160xbf16> to vector<230x160xbf16>
    %cst_46 = arith.constant dense<0.000000e+00> : vector<64x160xf32>
    %67 = tpu.matmul %64, %66, %cst_46 {dimension_numbers = #tpu.dot_dimension_numbers<[1], [0], [0], [1], [0, 0, 1, 1], [], []>} : vector<64x230xbf16>, vector<230x160xbf16>, vector<64x160xf32> -> vector<64x160xf32>
    %68 = arith.addf %61, %67 : vector<64x160xf32>
    %69 = vector.extract_strided_slice %48 {offsets = [0, 3, 0], sizes = [8, 8, 230], strides = [1, 1, 1]} : vector<8x12x230xf32> to vector<8x8x230xf32>
    %70 = vector.shape_cast %69 : vector<8x8x230xf32> to vector<64x230xf32>
    %71 = arith.truncf %70 : vector<64x230xf32> to vector<64x230xbf16>
    %c3_47 = arith.constant 3 : index
    %c0_48 = arith.constant 0 : index
    %c0_49 = arith.constant 0 : index
    %72 = vector.load %arg5[%c3_47, %c0_48, %c0_49] : memref<5x230x160xbf16, #tpu.memory_space<vmem>>, vector<1x230x160xbf16>
    %73 = vector.shape_cast %72 : vector<1x230x160xbf16> to vector<230x160xbf16>
    %cst_50 = arith.constant dense<0.000000e+00> : vector<64x160xf32>
    %74 = tpu.matmul %71, %73, %cst_50 {dimension_numbers = #tpu.dot_dimension_numbers<[1], [0], [0], [1], [0, 0, 1, 1], [], []>} : vector<64x230xbf16>, vector<230x160xbf16>, vector<64x160xf32> -> vector<64x160xf32>
    %75 = arith.addf %68, %74 : vector<64x160xf32>
    %76 = vector.extract_strided_slice %48 {offsets = [0, 4, 0], sizes = [8, 8, 230], strides = [1, 1, 1]} : vector<8x12x230xf32> to vector<8x8x230xf32>
    %77 = vector.shape_cast %76 : vector<8x8x230xf32> to vector<64x230xf32>
    %78 = arith.truncf %77 : vector<64x230xf32> to vector<64x230xbf16>
    %c4_51 = arith.constant 4 : index
    %c0_52 = arith.constant 0 : index
    %c0_53 = arith.constant 0 : index
    %79 = vector.load %arg5[%c4_51, %c0_52, %c0_53] : memref<5x230x160xbf16, #tpu.memory_space<vmem>>, vector<1x230x160xbf16>
    %80 = vector.shape_cast %79 : vector<1x230x160xbf16> to vector<230x160xbf16>
    %cst_54 = arith.constant dense<0.000000e+00> : vector<64x160xf32>
    %81 = tpu.matmul %78, %80, %cst_54 {dimension_numbers = #tpu.dot_dimension_numbers<[1], [0], [0], [1], [0, 0, 1, 1], [], []>} : vector<64x230xbf16>, vector<230x160xbf16>, vector<64x160xf32> -> vector<64x160xf32>
    %82 = arith.addf %75, %81 : vector<64x160xf32>
    %c0_55 = arith.constant 0 : index
    %c0_56 = arith.constant 0 : index
    %83 = vector.load %arg6[%c0_55, %c0_56] : memref<1x160xf32, #tpu.memory_space<vmem>>, vector<1x160xf32>
    %84 = vector.broadcast %83 : vector<1x160xf32> to vector<64x160xf32>
    %85 = arith.addf %82, %84 : vector<64x160xf32>
    %cst_57 = arith.constant 0.000000e+00 : f32
    %86 = vector.broadcast %cst_57 : f32 to vector<64x160xf32>
    %87 = arith.maximumf %85, %86 : vector<64x160xf32>
    %88 = vector.extract_strided_slice %87 {offsets = [0, 0], sizes = [64, 140], strides = [1, 1]} : vector<64x160xf32> to vector<64x140xf32>
    %89 = vector.extract_strided_slice %87 {offsets = [0, 20], sizes = [64, 140], strides = [1, 1]} : vector<64x160xf32> to vector<64x140xf32>
    %90 = arith.maximumf %88, %89 : vector<64x140xf32>
    %91 = vector.extract_strided_slice %90 {offsets = [0, 0], sizes = [63, 140], strides = [1, 1]} : vector<64x140xf32> to vector<63x140xf32>
    %92 = vector.extract_strided_slice %90 {offsets = [1, 0], sizes = [63, 140], strides = [1, 1]} : vector<64x140xf32> to vector<63x140xf32>
    %93 = arith.maximumf %91, %92 : vector<63x140xf32>
    %94 = arith.truncf %93 : vector<63x140xf32> to vector<63x140xbf16>
    %c0_58 = arith.constant 0 : index
    %c0_59 = arith.constant 0 : index
    %95 = vector.load %arg7[%c0_58, %c0_59] : memref<32x63xbf16, #tpu.memory_space<vmem>>, vector<32x63xbf16>
    %cst_60 = arith.constant dense<0.000000e+00> : vector<32x140xf32>
    %96 = tpu.matmul %95, %94, %cst_60 {dimension_numbers = #tpu.dot_dimension_numbers<[1], [0], [0], [1], [0, 0, 1, 1], [], []>} : vector<32x63xbf16>, vector<63x140xbf16>, vector<32x140xf32> -> vector<32x140xf32>
    %97 = vector.shape_cast %96 : vector<32x140xf32> to vector<8x4x140xf32>
    %98 = vector.extract_strided_slice %97 {offsets = [0, 0, 0], sizes = [8, 1, 140], strides = [1, 1, 1]} : vector<8x4x140xf32> to vector<8x1x140xf32>
    %99 = vector.shape_cast %98 : vector<8x1x140xf32> to vector<8x140xf32>
    %100 = arith.truncf %99 : vector<8x140xf32> to vector<8x140xbf16>
    %c0_61 = arith.constant 0 : index
    %c0_62 = arith.constant 0 : index
    %c0_63 = arith.constant 0 : index
    %101 = vector.load %arg8[%c0_61, %c0_62, %c0_63] : memref<4x140x128xbf16, #tpu.memory_space<vmem>>, vector<1x140x128xbf16>
    %102 = vector.shape_cast %101 : vector<1x140x128xbf16> to vector<140x128xbf16>
    %cst_64 = arith.constant dense<0.000000e+00> : vector<8x128xf32>
    %103 = tpu.matmul %100, %102, %cst_64 {dimension_numbers = #tpu.dot_dimension_numbers<[1], [0], [0], [1], [0, 0, 1, 1], [], []>} : vector<8x140xbf16>, vector<140x128xbf16>, vector<8x128xf32> -> vector<8x128xf32>
    %104 = vector.extract_strided_slice %97 {offsets = [0, 1, 0], sizes = [8, 1, 140], strides = [1, 1, 1]} : vector<8x4x140xf32> to vector<8x1x140xf32>
    %105 = vector.shape_cast %104 : vector<8x1x140xf32> to vector<8x140xf32>
    %106 = arith.truncf %105 : vector<8x140xf32> to vector<8x140xbf16>
    %c1_65 = arith.constant 1 : index
    %c0_66 = arith.constant 0 : index
    %c0_67 = arith.constant 0 : index
    %107 = vector.load %arg8[%c1_65, %c0_66, %c0_67] : memref<4x140x128xbf16, #tpu.memory_space<vmem>>, vector<1x140x128xbf16>
    %108 = vector.shape_cast %107 : vector<1x140x128xbf16> to vector<140x128xbf16>
    %cst_68 = arith.constant dense<0.000000e+00> : vector<8x128xf32>
    %109 = tpu.matmul %106, %108, %cst_68 {dimension_numbers = #tpu.dot_dimension_numbers<[1], [0], [0], [1], [0, 0, 1, 1], [], []>} : vector<8x140xbf16>, vector<140x128xbf16>, vector<8x128xf32> -> vector<8x128xf32>
    %110 = arith.addf %103, %109 : vector<8x128xf32>
    %111 = vector.extract_strided_slice %97 {offsets = [0, 2, 0], sizes = [8, 1, 140], strides = [1, 1, 1]} : vector<8x4x140xf32> to vector<8x1x140xf32>
    %112 = vector.shape_cast %111 : vector<8x1x140xf32> to vector<8x140xf32>
    %113 = arith.truncf %112 : vector<8x140xf32> to vector<8x140xbf16>
    %c2_69 = arith.constant 2 : index
    %c0_70 = arith.constant 0 : index
    %c0_71 = arith.constant 0 : index
    %114 = vector.load %arg8[%c2_69, %c0_70, %c0_71] : memref<4x140x128xbf16, #tpu.memory_space<vmem>>, vector<1x140x128xbf16>
    %115 = vector.shape_cast %114 : vector<1x140x128xbf16> to vector<140x128xbf16>
    %cst_72 = arith.constant dense<0.000000e+00> : vector<8x128xf32>
    %116 = tpu.matmul %113, %115, %cst_72 {dimension_numbers = #tpu.dot_dimension_numbers<[1], [0], [0], [1], [0, 0, 1, 1], [], []>} : vector<8x140xbf16>, vector<140x128xbf16>, vector<8x128xf32> -> vector<8x128xf32>
    %117 = arith.addf %110, %116 : vector<8x128xf32>
    %118 = vector.extract_strided_slice %97 {offsets = [0, 3, 0], sizes = [8, 1, 140], strides = [1, 1, 1]} : vector<8x4x140xf32> to vector<8x1x140xf32>
    %119 = vector.shape_cast %118 : vector<8x1x140xf32> to vector<8x140xf32>
    %120 = arith.truncf %119 : vector<8x140xf32> to vector<8x140xbf16>
    %c3_73 = arith.constant 3 : index
    %c0_74 = arith.constant 0 : index
    %c0_75 = arith.constant 0 : index
    %121 = vector.load %arg8[%c3_73, %c0_74, %c0_75] : memref<4x140x128xbf16, #tpu.memory_space<vmem>>, vector<1x140x128xbf16>
    %122 = vector.shape_cast %121 : vector<1x140x128xbf16> to vector<140x128xbf16>
    %cst_76 = arith.constant dense<0.000000e+00> : vector<8x128xf32>
    %123 = tpu.matmul %120, %122, %cst_76 {dimension_numbers = #tpu.dot_dimension_numbers<[1], [0], [0], [1], [0, 0, 1, 1], [], []>} : vector<8x140xbf16>, vector<140x128xbf16>, vector<8x128xf32> -> vector<8x128xf32>
    %124 = arith.addf %117, %123 : vector<8x128xf32>
    %c0_77 = arith.constant 0 : index
    %c0_78 = arith.constant 0 : index
    %125 = vector.load %arg9[%c0_77, %c0_78] : memref<1x128xf32, #tpu.memory_space<vmem>>, vector<1x128xf32>
    %126 = vector.broadcast %125 : vector<1x128xf32> to vector<8x128xf32>
    %127 = arith.addf %124, %126 : vector<8x128xf32>
    %cst_79 = arith.constant 0.000000e+00 : f32
    %128 = vector.broadcast %cst_79 : f32 to vector<8x128xf32>
    %129 = arith.maximumf %127, %128 : vector<8x128xf32>
    %130 = arith.truncf %129 : vector<8x128xf32> to vector<8x128xbf16>
    %c0_80 = arith.constant 0 : index
    %c0_81 = arith.constant 0 : index
    %131 = vector.load %arg10[%c0_80, %c0_81] : memref<128x128xbf16, #tpu.memory_space<vmem>>, vector<128x128xbf16>
    %cst_82 = arith.constant dense<0.000000e+00> : vector<8x128xf32>
    %132 = tpu.matmul %130, %131, %cst_82 {dimension_numbers = #tpu.dot_dimension_numbers<[1], [0], [0], [1], [0, 0, 1, 1], [], []>} : vector<8x128xbf16>, vector<128x128xbf16>, vector<8x128xf32> -> vector<8x128xf32>
    %c0_83 = arith.constant 0 : index
    %c0_84 = arith.constant 0 : index
    %133 = vector.load %arg11[%c0_83, %c0_84] : memref<1x128xf32, #tpu.memory_space<vmem>>, vector<1x128xf32>
    %134 = vector.broadcast %133 : vector<1x128xf32> to vector<8x128xf32>
    %135 = arith.addf %132, %134 : vector<8x128xf32>
    %c0_85 = arith.constant 0 : index
    %c0_86 = arith.constant 0 : index
    %136 = vector.load %arg12[%c0_85, %c0_86] : memref<8x128xf32, #tpu.memory_space<vmem>>, vector<8x128xf32>
    tpu.vector_store %arg12[%c0_85, %c0_86], %135 {strides = array<i32>} : memref<8x128xf32, #tpu.memory_space<vmem>>, vector<8x128xf32>,
    return
  }
  func.func @transform_0(%arg0: i32) -> (i32, i32, i32) {
    %c0_i32 = arith.constant 0 : i32
    %c0_i32_0 = arith.constant 0 : i32
    %c0_i32_1 = arith.constant 0 : i32
    return %arg0, %c0_i32, %c0_i32_0 : i32, i32, i32
  }
  func.func @transform_1(%arg0: i32) -> (i32, i32, i32) {
    %c0_i32 = arith.constant 0 : i32
    %c0_i32_0 = arith.constant 0 : i32
    %c0_i32_1 = arith.constant 0 : i32
    %c0_i32_2 = arith.constant 0 : i32
    return %c0_i32, %c0_i32_0, %c0_i32_1 : i32, i32, i32
  }
  func.func @transform_2(%arg0: i32) -> (i32, i32) {
    %c0_i32 = arith.constant 0 : i32
    %c0_i32_0 = arith.constant 0 : i32
    %c0_i32_1 = arith.constant 0 : i32
    return %c0_i32, %c0_i32_0 : i32, i32
  }
  func.func @transform_3(%arg0: i32) -> (i32, i32) {
    %c0_i32 = arith.constant 0 : i32
    %c0_i32_0 = arith.constant 0 : i32
    %c0_i32_1 = arith.constant 0 : i32
    return %c0_i32, %c0_i32_0 : i32, i32
  }
  func.func @transform_4(%arg0: i32) -> (i32, i32, i32) {
    %c0_i32 = arith.constant 0 : i32
    %c0_i32_0 = arith.constant 0 : i32
    %c0_i32_1 = arith.constant 0 : i32
    %c0_i32_2 = arith.constant 0 : i32
    return %c0_i32, %c0_i32_0, %c0_i32_1 : i32, i32, i32
  }
  func.func @transform_5(%arg0: i32) -> (i32, i32) {
    %c0_i32 = arith.constant 0 : i32
    %c0_i32_0 = arith.constant 0 : i32
    %c0_i32_1 = arith.constant 0 : i32
    return %c0_i32, %c0_i32_0 : i32, i32
  }
  func.func @transform_6(%arg0: i32) -> (i32, i32) {
    %c0_i32 = arith.constant 0 : i32
    %c0_i32_0 = arith.constant 0 : i32
    %c0_i32_1 = arith.constant 0 : i32
    return %c0_i32, %c0_i32_0 : i32, i32
  }
  func.func @transform_7(%arg0: i32) -> (i32, i32, i32) {
    %c0_i32 = arith.constant 0 : i32
    %c0_i32_0 = arith.constant 0 : i32
    %c0_i32_1 = arith.constant 0 : i32
    %c0_i32_2 = arith.constant 0 : i32
    return %c0_i32, %c0_i32_0, %c0_i32_1 : i32, i32, i32
  }
  func.func @transform_8(%arg0: i32) -> (i32, i32) {
    %c0_i32 = arith.constant 0 : i32
    %c0_i32_0 = arith.constant 0 : i32
    %c0_i32_1 = arith.constant 0 : i32
    return %c0_i32, %c0_i32_0 : i32, i32
  }
  func.func @transform_9(%arg0: i32) -> (i32, i32) {
    %c0_i32 = arith.constant 0 : i32
    %c0_i32_0 = arith.constant 0 : i32
    %c0_i32_1 = arith.constant 0 : i32
    return %c0_i32, %c0_i32_0 : i32, i32
  }
  func.func @transform_10(%arg0: i32) -> (i32, i32) {
    %c0_i32 = arith.constant 0 : i32
    %c0_i32_0 = arith.constant 0 : i32
    %c0_i32_1 = arith.constant 0 : i32
    return %c0_i32, %c0_i32_0 : i32, i32
  }
  func.func @transform_11(%arg0: i32) -> (i32, i32) {
    %c0_i32 = arith.constant 0 : i32
    %c0_i32_0 = arith.constant 0 : i32
    return %arg0, %c0_i32 : i32, i32
  }
}

</mosaic_0001>

<llo_original>
// kernel: cnn_forward.1
$region0: #{cnn_forward.1}
  #allocation0 [shape = 'u32[]', space=smem, size = 0x4, offset = 0x4, fixed_abs, tag = 'smem constant byte address 0x4 - core index']
  #allocation1 [shape = 'u32[72,128]{1,0:T(1,128)}', space=vmem, size = 0x9000, scoped, tag = 'internal scratch']
  %s0 = inlined_call_operand.vmem [shape: f32[8,28,28], index: 0, kind: input, shape index: {}]
  %s1 = inlined_call_operand.vmem [shape: bf16[5,28,240], index: 1, kind: input, shape index: {}]
  %s2 = inlined_call_operand.vmem [shape: f32[1,240], index: 2, kind: input, shape index: {}]
  %s3 = inlined_call_operand.vmem [shape: bf16[96,191], index: 3, kind: input, shape index: {}]
  %s4 = inlined_call_operand.vmem [shape: bf16[5,230,160], index: 4, kind: input, shape index: {}]
  %s5 = inlined_call_operand.vmem [shape: f32[1,160], index: 5, kind: input, shape index: {}]
  %s6 = inlined_call_operand.vmem [shape: bf16[32,63], index: 6, kind: input, shape index: {}]
  %s7 = inlined_call_operand.vmem [shape: bf16[4,140,128], index: 7, kind: input, shape index: {}]
  %s8 = inlined_call_operand.vmem [shape: f32[1,128], index: 8, kind: input, shape index: {}]
  %s9 = inlined_call_operand.vmem [shape: bf16[128,128], index: 9, kind: input, shape index: {}]
  %s10 = inlined_call_operand.vmem [shape: f32[1,128], index: 10, kind: input, shape index: {}]
  %s11 = inlined_call_operand.vmem [shape: f32[8,128], index: 11, kind: output, shape index: {}]
  %s12 = sld [smem:[#allocation0]]
  $region54: #{cnn_forward.1} parent=0
    _
  %s14 = ssub.s32 1, %s12
  %s15 = scalar_select 0, %s14, %s12
  // Predicated region
  $region2: #{cnn_forward.1} parent=0 // pred_check
    _
  $region3: #{cnn_forward.1} parent=0 // pred_check_branch
    %17 = sbr.rel (0) target = $region5
  $region4: #{cnn_forward.1} parent=0 // pred_region
    _
  $region5: #{cnn_forward.1} parent=0 // pred_fallthru
    _
  // Predicated region
  $region6: #{cnn_forward.1} parent=0 // pred_check
    _
  $region7: #{cnn_forward.1} parent=0 // pred_check_branch
    %19 = sbr.rel (0) target = $region9
  $region8: #{cnn_forward.1} parent=0 // pred_region
    _
  $region9: #{cnn_forward.1} parent=0 // pred_fallthru
    _
  // Predicated region
  $region10: #{cnn_forward.1} parent=0 // pred_check
    _
  $region11: #{cnn_forward.1} parent=0 // pred_check_branch
    %21 = sbr.rel (0) target = $region13
  $region12: #{cnn_forward.1} parent=0 // pred_region
    _
  $region13: #{cnn_forward.1} parent=0 // pred_fallthru
    _
  // Predicated region
  $region14: #{cnn_forward.1} parent=0 // pred_check
    _
  $region15: #{cnn_forward.1} parent=0 // pred_check_branch
    %23 = sbr.rel (0) target = $region17
  $region16: #{cnn_forward.1} parent=0 // pred_region
    _
  $region17: #{cnn_forward.1} parent=0 // pred_fallthru
    _
  // Predicated region
  $region18: #{cnn_forward.1} parent=0 // pred_check
    _
  $region19: #{cnn_forward.1} parent=0 // pred_check_branch
    %25 = sbr.rel (0) target = $region21
  $region20: #{cnn_forward.1} parent=0 // pred_region
    _
  $region21: #{cnn_forward.1} parent=0 // pred_fallthru
    _
  // Predicated region
  $region22: #{cnn_forward.1} parent=0 // pred_check
    _
  $region23: #{cnn_forward.1} parent=0 // pred_check_branch
    %27 = sbr.rel (0) target = $region25
  $region24: #{cnn_forward.1} parent=0 // pred_region
    _
  $region25: #{cnn_forward.1} parent=0 // pred_fallthru
    _
  // Predicated region
  $region26: #{cnn_forward.1} parent=0 // pred_check
    _
  $region27: #{cnn_forward.1} parent=0 // pred_check_branch
    %29 = sbr.rel (0) target = $region29
  $region28: #{cnn_forward.1} parent=0 // pred_region
    _
  $region29: #{cnn_forward.1} parent=0 // pred_fallthru
    _
  // Predicated region
  $region30: #{cnn_forward.1} parent=0 // pred_check
    _
  $region31: #{cnn_forward.1} parent=0 // pred_check_branch
    %31 = sbr.rel (0) target = $region33
  $region32: #{cnn_forward.1} parent=0 // pred_region
    _
  $region33: #{cnn_forward.1} parent=0 // pred_fallthru
    _
  // Predicated region
  $region34: #{cnn_forward.1} parent=0 // pred_check
    _
  $region35: #{cnn_forward.1} parent=0 // pred_check_branch
    %33 = sbr.rel (0) target = $region37
  $region36: #{cnn_forward.1} parent=0 // pred_region
    _
  $region37: #{cnn_forward.1} parent=0 // pred_fallthru
    _
  // Predicated region
  $region38: #{cnn_forward.1} parent=0 // pred_check
    _
  $region39: #{cnn_forward.1} parent=0 // pred_check_branch
    %35 = sbr.rel (0) target = $region41
  $region40: #{cnn_forward.1} parent=0 // pred_region
    _
  $region41: #{cnn_forward.1} parent=0 // pred_fallthru
    _
  // Predicated region
  $region42: #{cnn_forward.1} parent=0 // pred_check
    _
  $region43: #{cnn_forward.1} parent=0 // pred_check_branch
    %37 = sbr.rel (0) target = $region45
  $region44: #{cnn_forward.1} parent=0 // pred_region
    _
  $region45: #{cnn_forward.1} parent=0 // pred_fallthru
    _
  %v39 = vld [vmem:[%s0] sm:$0xff]
  %v40 = vld [vmem:[%s0 + $0x8] sm:$0xff]
  %v41 = vld [vmem:[%s0 + $0x10] sm:$0xff]
  %v42 = vld [vmem:[%s0 + $0x20] sm:$0xff]
  %v43 = vld [vmem:[%s0 + $0x28] sm:$0xff]
  %v44 = vld [vmem:[%s0 + $0x30] sm:$0xff]
  %v45 = vld [vmem:[%s0 + $0x40] sm:$0xff]
  %v46 = vld [vmem:[%s0 + $0x48] sm:$0xff]
  %v47 = vld [vmem:[%s0 + $0x50] sm:$0xff]
  %v48 = vld [vmem:[%s0 + $0x60] sm:$0xff]
  %v49 = vld [vmem:[%s0 + $0x68] sm:$0xff]
  %v50 = vld [vmem:[%s0 + $0x70] sm:$0xff]
  %v51 = vld [vmem:[%s0 + $0x80] sm:$0xff]
  %v52 = vld [vmem:[%s0 + $0x88] sm:$0xff]
  %v53 = vld [vmem:[%s0 + $0x90] sm:$0xff]
  %v54 = vld [vmem:[%s0 + $0xa0] sm:$0xff]
  %v55 = vld [vmem:[%s0 + $0xa8] sm:$0xff]
  %v56 = vld [vmem:[%s0 + $0xb0] sm:$0xff]
  %v57 = vld [vmem:[%s0 + $0xc0] sm:$0xff]
  %v58 = vld [vmem:[%s0 + $0xc8] sm:$0xff]
  %v59 = vld [vmem:[%s0 + $0xd0] sm:$0xff]
  %v60 = vld [vmem:[%s0 + $0xe0] sm:$0xff]
  %v61 = vld [vmem:[%s0 + $0xe8] sm:$0xff]
  %v62 = vld [vmem:[%s0 + $0xf0] sm:$0xff]
  %v63 = vpack.c.bf16 %v40, %v39
  %v64 = vpack.c.bf16 %v42, %v41
  %v65 = vpack.c.bf16 %v44, %v43
  %v66 = vpack.c.bf16 %v46, %v45
  %v67 = vpack.c.bf16 %v48, %v47
  %v68 = vpack.c.bf16 %v50, %v49
  %v69 = vpack.c.bf16 %v52, %v51
  %v70 = vpack.c.bf16 %v54, %v53
  %v71 = vpack.c.bf16 %v56, %v55
  %v72 = vpack.c.bf16 %v58, %v57
  %v73 = vpack.c.bf16 %v60, %v59
  %v74 = vpack.c.bf16 %v62, %v61
  %v75 = vld [vmem:[%s1] sm:$0xff]
  %v76 = vld [vmem:[%s1 + $0x8] sm:$0xff]
  %v77 = vld [vmem:[%s1 + $0x10] sm:$0xff]
  %v78 = vld [vmem:[%s1 + $0x18] sm:$0x33]
  %v79 = vld [vmem:[%s0 + $0x1] sm:$0xff]
  %v80 = vld [vmem:[%s0 + $0x9] sm:$0xff]
  %v81 = vld [vmem:[%s0 + $0x11] sm:$0xff]
  %v82 = vld [vmem:[%s0 + $0x21] sm:$0xff]
  %v83 = vld [vmem:[%s0 + $0x29] sm:$0xff]
  %v84 = vld [vmem:[%s0 + $0x31] sm:$0xff]
  %v85 = vld [vmem:[%s0 + $0x41] sm:$0xff]
  %v86 = vld [vmem:[%s0 + $0x49] sm:$0xff]
  %v87 = vld [vmem:[%s0 + $0x51] sm:$0xff]
  %v88 = vld [vmem:[%s0 + $0x61] sm:$0xff]
  %v89 = vld [vmem:[%s0 + $0x69] sm:$0xff]
  %v90 = vld [vmem:[%s0 + $0x71] sm:$0xff]
  %v91 = vld [vmem:[%s0 + $0x81] sm:$0xff]
  %v92 = vld [vmem:[%s0 + $0x89] sm:$0xff]
  %v93 = vld [vmem:[%s0 + $0x91] sm:$0xff]
  %v94 = vld [vmem:[%s0 + $0xa1] sm:$0xff]
  %v95 = vld [vmem:[%s0 + $0xa9] sm:$0xff]
  %v96 = vld [vmem:[%s0 + $0xb1] sm:$0xff]
  %v97 = vld [vmem:[%s0 + $0xc1] sm:$0xff]
  %v98 = vld [vmem:[%s0 + $0xc9] sm:$0xff]
  %v99 = vld [vmem:[%s0 + $0xd1] sm:$0xff]
  %v100 = vld [vmem:[%s0 + $0xe1] sm:$0xff]
  %v101 = vld [vmem:[%s0 + $0xe9] sm:$0xff]
  %v102 = vld [vmem:[%s0 + $0xf1] sm:$0xff]
  %v103 = vpack.c.bf16 %v80, %v79
  %v104 = vpack.c.bf16 %v82, %v81
  %v105 = vpack.c.bf16 %v84, %v83
  %v106 = vpack.c.bf16 %v86, %v85
  %v107 = vpack.c.bf16 %v88, %v87
  %v108 = vpack.c.bf16 %v90, %v89
  %v109 = vpack.c.bf16 %v92, %v91
  %v110 = vpack.c.bf16 %v94, %v93
  %v111 = vpack.c.bf16 %v96, %v95
  %v112 = vpack.c.bf16 %v98, %v97
  %v113 = vpack.c.bf16 %v100, %v99
  %v114 = vpack.c.bf16 %v102, %v101
  %s115 = scalar_lea.vmem %s1, 32
  %v116 = vld [vmem:[%s115] sm:$0xff]
  %v117 = vld [vmem:[%s115 + $0x8] sm:$0xff]
  %v118 = vld [vmem:[%s115 + $0x10] sm:$0xff]
  %v119 = vld [vmem:[%s115 + $0x18] sm:$0x33]
  %v124 = vunpack.c.l.b16 %v116
  %v125 = vunpack.c.h.b16 %v116
  %v126 = vunpack.c.l.b16 %v117
  %v127 = vunpack.c.h.b16 %v117
  %v128 = vunpack.c.l.b16 %v118
  %v129 = vunpack.c.h.b16 %v118
  %v130 = vunpack.c.l.b16 %v119
  %v131 = vunpack.c.h.b16 %v119
  %v132 = vpack.c.b16 %v126, %v124
  %v133 = vpack.c.b16 %v127, %v125
  %v134 = vpack.c.b16 %v130, %v128
  %v135 = vpack.c.b16 %v131, %v129
  %vm138 = vcmask 228352
  %v140 = vsel %vm138, %v103, 0
  %v143 = vsel %vm138, %v104, 0
  %v146 = vsel %vm138, %v105, 0
  %v149 = vsel %vm138, %v106, 0
  %v152 = vsel %vm138, %v107, 0
  %v155 = vsel %vm138, %v108, 0
  %v158 = vsel %vm138, %v109, 0
  %v161 = vsel %vm138, %v110, 0
  %v164 = vsel %vm138, %v111, 0
  %v167 = vsel %vm138, %v112, 0
  %v170 = vsel %vm138, %v113, 0
  %v173 = vsel %vm138, %v114, 0
  %vm175 = vcmask 1045504
  %v177 = vsel %vm175, %v134, 0
  %v180 = vsel %vm175, %v135, 0
  %182 = vmatpush.bf16.msra.mxu0 0
  %183 = vmatpush.bf16.msra.mxu0 0
  %184 = vmatpush.bf16.msra.mxu0 0
  %185 = vmatpush.bf16.msra.mxu0 0
  %186 = vmatpush.bf16.msra.mxu0 0
  %187 = vmatpush.bf16.msra.mxu0 0
  %188 = vmatpush.bf16.msra.mxu0 %v177
  %189 = vmatpush.bf16.msra.mxu0 %v132
  %190 = vmatmul.bf16.gmra.mxu0 %v140
  %v191 = vpop.f32.mrf.mxu0
  %v192 = vadd.f32 0.0, %v191
  %v193 = vpop.f32.mrf.mxu0
  %v194 = vadd.f32 0.0, %v193
  %195 = vmatmul.bf16.gmra.mxu0 %v143
  %v196 = vpop.f32.mrf.mxu0
  %v197 = vadd.f32 0.0, %v196
  %v198 = vpop.f32.mrf.mxu0
  %v199 = vadd.f32 0.0, %v198
  %200 = vmatmul.bf16.gmra.mxu0 %v146
  %v201 = vpop.f32.mrf.mxu0
  %v202 = vadd.f32 0.0, %v201
  %v203 = vpop.f32.mrf.mxu0
  %v204 = vadd.f32 0.0, %v203
  %205 = vmatmul.bf16.gmra.mxu0 %v149
  %v206 = vpop.f32.mrf.mxu0
  %v207 = vadd.f32 0.0, %v206
  %v208 = vpop.f32.mrf.mxu0
  %v209 = vadd.f32 0.0, %v208
  %210 = vmatmul.bf16.gmra.mxu0 %v152
  %v211 = vpop.f32.mrf.mxu0
  %v212 = vadd.f32 0.0, %v211
  %v213 = vpop.f32.mrf.mxu0
  %v214 = vadd.f32 0.0, %v213
  %215 = vmatmul.bf16.gmra.mxu0 %v155
  %v216 = vpop.f32.mrf.mxu0
  %v217 = vadd.f32 0.0, %v216
  %v218 = vpop.f32.mrf.mxu0
  %v219 = vadd.f32 0.0, %v218
  %220 = vmatmul.bf16.gmra.mxu0 %v158
  %v221 = vpop.f32.mrf.mxu0
  %v222 = vadd.f32 0.0, %v221
  %v223 = vpop.f32.mrf.mxu0
  %v224 = vadd.f32 0.0, %v223
  %225 = vmatmul.bf16.gmra.mxu0 %v161
  %v226 = vpop.f32.mrf.mxu0
  %v227 = vadd.f32 0.0, %v226
  %v228 = vpop.f32.mrf.mxu0
  %v229 = vadd.f32 0.0, %v228
  %230 = vmatmul.bf16.gmra.mxu0 %v164
  %v231 = vpop.f32.mrf.mxu0
  %v232 = vadd.f32 0.0, %v231
  %v233 = vpop.f32.mrf.mxu0
  %v234 = vadd.f32 0.0, %v233
  %235 = vmatmul.bf16.gmra.mxu0 %v167
  %v236 = vpop.f32.mrf.mxu0
  %v237 = vadd.f32 0.0, %v236
  %v238 = vpop.f32.mrf.mxu0
  %v239 = vadd.f32 0.0, %v238
  %240 = vmatmul.bf16.gmra.mxu0 %v170
  %v241 = vpop.f32.mrf.mxu0
  %v242 = vadd.f32 0.0, %v241
  %v243 = vpop.f32.mrf.mxu0
  %v244 = vadd.f32 0.0, %v243
  %245 = vmatmul.bf16.gmra.mxu0 %v173
  %v246 = vpop.f32.mrf.mxu0
  %v247 = vadd.f32 0.0, %v246
  %v248 = vpop.f32.mrf.mxu0
  %v249 = vadd.f32 0.0, %v248
  %250 = vdwg.mxu0
  %251 = vmatpush.bf16.msra.mxu0 0
  %252 = vmatpush.bf16.msra.mxu0 0
  %253 = vmatpush.bf16.msra.mxu0 0
  %254 = vmatpush.bf16.msra.mxu0 0
  %255 = vmatpush.bf16.msra.mxu0 0
  %256 = vmatpush.bf16.msra.mxu0 0
  %257 = vmatpush.bf16.msra.mxu0 %v180
  %258 = vmatpush.bf16.msra.mxu0 %v133
  %259 = vmatmul.bf16.gmra.mxu0 %v140
  %v260 = vpop.f32.mrf.mxu0
  %v261 = vadd.f32 0.0, %v260
  %v262 = vpop.f32.mrf.mxu0
  %v263 = vadd.f32 0.0, %v262
  %264 = vmatmul.bf16.gmra.mxu0 %v143
  %v265 = vpop.f32.mrf.mxu0
  %v266 = vadd.f32 0.0, %v265
  %v267 = vpop.f32.mrf.mxu0
  %v268 = vadd.f32 0.0, %v267
  %269 = vmatmul.bf16.gmra.mxu0 %v146
  %v270 = vpop.f32.mrf.mxu0
  %v271 = vadd.f32 0.0, %v270
  %v272 = vpop.f32.mrf.mxu0
  %v273 = vadd.f32 0.0, %v272
  %274 = vmatmul.bf16.gmra.mxu0 %v149
  %v275 = vpop.f32.mrf.mxu0
  %v276 = vadd.f32 0.0, %v275
  %v277 = vpop.f32.mrf.mxu0
  %v278 = vadd.f32 0.0, %v277
  %279 = vmatmul.bf16.gmra.mxu0 %v152
  %v280 = vpop.f32.mrf.mxu0
  %v281 = vadd.f32 0.0, %v280
  %v282 = vpop.f32.mrf.mxu0
  %v283 = vadd.f32 0.0, %v282
  %284 = vmatmul.bf16.gmra.mxu0 %v155
  %v285 = vpop.f32.mrf.mxu0
  %v286 = vadd.f32 0.0, %v285
  %v287 = vpop.f32.mrf.mxu0
  %v288 = vadd.f32 0.0, %v287
  %289 = vmatmul.bf16.gmra.mxu0 %v158
  %v290 = vpop.f32.mrf.mxu0
  %v291 = vadd.f32 0.0, %v290
  %v292 = vpop.f32.mrf.mxu0
  %v293 = vadd.f32 0.0, %v292
  %294 = vmatmul.bf16.gmra.mxu0 %v161
  %v295 = vpop.f32.mrf.mxu0
  %v296 = vadd.f32 0.0, %v295
  %v297 = vpop.f32.mrf.mxu0
  %v298 = vadd.f32 0.0, %v297
  %299 = vmatmul.bf16.gmra.mxu0 %v164
  %v300 = vpop.f32.mrf.mxu0
  %v301 = vadd.f32 0.0, %v300
  %v302 = vpop.f32.mrf.mxu0
  %v303 = vadd.f32 0.0, %v302
  %304 = vmatmul.bf16.gmra.mxu0 %v167
  %v305 = vpop.f32.mrf.mxu0
  %v306 = vadd.f32 0.0, %v305
  %v307 = vpop.f32.mrf.mxu0
  %v308 = vadd.f32 0.0, %v307
  %309 = vmatmul.bf16.gmra.mxu0 %v170
  %v310 = vpop.f32.mrf.mxu0
  %v311 = vadd.f32 0.0, %v310
  %v312 = vpop.f32.mrf.mxu0
  %v313 = vadd.f32 0.0, %v312
  %314 = vmatmul.bf16.gmra.mxu0 %v173
  %v315 = vpop.f32.mrf.mxu0
  %v316 = vadd.f32 0.0, %v315
  %v317 = vpop.f32.mrf.mxu0
  %v318 = vadd.f32 0.0, %v317
  %319 = vdwg.mxu0
  %v324 = vunpack.c.l.b16 %v75
  %v325 = vunpack.c.h.b16 %v75
  %v326 = vunpack.c.l.b16 %v76
  %v327 = vunpack.c.h.b16 %v76
  %v328 = vunpack.c.l.b16 %v77
  %v329 = vunpack.c.h.b16 %v77
  %v330 = vunpack.c.l.b16 %v78
  %v331 = vunpack.c.h.b16 %v78
  %v332 = vpack.c.b16 %v326, %v324
  %v333 = vpack.c.b16 %v327, %v325
  %v334 = vpack.c.b16 %v330, %v328
  %v335 = vpack.c.b16 %v331, %v329
  %v339 = vsel %vm138, %v63, 0
  %v342 = vsel %vm138, %v64, 0
  %v345 = vsel %vm138, %v65, 0
  %v348 = vsel %vm138, %v66, 0
  %v351 = vsel %vm138, %v67, 0
  %v354 = vsel %vm138, %v68, 0
  %v357 = vsel %vm138, %v69, 0
  %v360 = vsel %vm138, %v70, 0
  %v363 = vsel %vm138, %v71, 0
  %v366 = vsel %vm138, %v72, 0
  %v369 = vsel %vm138, %v73, 0
  %v372 = vsel %vm138, %v74, 0
  %v375 = vsel %vm175, %v334, 0
  %v378 = vsel %vm175, %v335, 0
  %380 = vmatpush.bf16.msra.mxu0 0
  %381 = vmatpush.bf16.msra.mxu0 0
  %382 = vmatpush.bf16.msra.mxu0 0
  %383 = vmatpush.bf16.msra.mxu0 0
  %384 = vmatpush.bf16.msra.mxu0 0
  %385 = vmatpush.bf16.msra.mxu0 0
  %386 = vmatpush.bf16.msra.mxu0 %v375
  %387 = vmatpush.bf16.msra.mxu0 %v332
  %388 = vmatmul.bf16.gmra.mxu0 %v339
  %v389 = vpop.f32.mrf.mxu0
  %v390 = vadd.f32 %v192, %v389
  %v391 = vpop.f32.mrf.mxu0
  %v392 = vadd.f32 %v194, %v391
  %393 = vmatmul.bf16.gmra.mxu0 %v342
  %v394 = vpop.f32.mrf.mxu0
  %v395 = vadd.f32 %v197, %v394
  %v396 = vpop.f32.mrf.mxu0
  %v397 = vadd.f32 %v199, %v396
  %398 = vmatmul.bf16.gmra.mxu0 %v345
  %v399 = vpop.f32.mrf.mxu0
  %v400 = vadd.f32 %v202, %v399
  %v401 = vpop.f32.mrf.mxu0
  %v402 = vadd.f32 %v204, %v401
  %403 = vmatmul.bf16.gmra.mxu0 %v348
  %v404 = vpop.f32.mrf.mxu0
  %v405 = vadd.f32 %v207, %v404
  %v406 = vpop.f32.mrf.mxu0
  %v407 = vadd.f32 %v209, %v406
  %408 = vmatmul.bf16.gmra.mxu0 %v351
  %v409 = vpop.f32.mrf.mxu0
  %v410 = vadd.f32 %v212, %v409
  %v411 = vpop.f32.mrf.mxu0
  %v412 = vadd.f32 %v214, %v411
  %413 = vmatmul.bf16.gmra.mxu0 %v354
  %v414 = vpop.f32.mrf.mxu0
  %v415 = vadd.f32 %v217, %v414
  %v416 = vpop.f32.mrf.mxu0
  %v417 = vadd.f32 %v219, %v416
  %418 = vmatmul.bf16.gmra.mxu0 %v357
  %v419 = vpop.f32.mrf.mxu0
  %v420 = vadd.f32 %v222, %v419
  %v421 = vpop.f32.mrf.mxu0
  %v422 = vadd.f32 %v224, %v421
  %423 = vmatmul.bf16.gmra.mxu0 %v360
  %v424 = vpop.f32.mrf.mxu0
  %v425 = vadd.f32 %v227, %v424
  %v426 = vpop.f32.mrf.mxu0
  %v427 = vadd.f32 %v229, %v426
  %428 = vmatmul.bf16.gmra.mxu0 %v363
  %v429 = vpop.f32.mrf.mxu0
  %v430 = vadd.f32 %v232, %v429
  %v431 = vpop.f32.mrf.mxu0
  %v432 = vadd.f32 %v234, %v431
  %433 = vmatmul.bf16.gmra.mxu0 %v366
  %v434 = vpop.f32.mrf.mxu0
  %v435 = vadd.f32 %v237, %v434
  %v436 = vpop.f32.mrf.mxu0
  %v437 = vadd.f32 %v239, %v436
  %438 = vmatmul.bf16.gmra.mxu0 %v369
  %v439 = vpop.f32.mrf.mxu0
  %v440 = vadd.f32 %v242, %v439
  %v441 = vpop.f32.mrf.mxu0
  %v442 = vadd.f32 %v244, %v441
  %443 = vmatmul.bf16.gmra.mxu0 %v372
  %v444 = vpop.f32.mrf.mxu0
  %v445 = vadd.f32 %v247, %v444
  %v446 = vpop.f32.mrf.mxu0
  %v447 = vadd.f32 %v249, %v446
  %448 = vdwg.mxu0
  %449 = vmatpush.bf16.msra.mxu0 0
  %450 = vmatpush.bf16.msra.mxu0 0
  %451 = vmatpush.bf16.msra.mxu0 0
  %452 = vmatpush.bf16.msra.mxu0 0
  %453 = vmatpush.bf16.msra.mxu0 0
  %454 = vmatpush.bf16.msra.mxu0 0
  %455 = vmatpush.bf16.msra.mxu0 %v378
  %456 = vmatpush.bf16.msra.mxu0 %v333
  %457 = vmatmul.bf16.gmra.mxu0 %v339
  %v458 = vpop.f32.mrf.mxu0
  %v459 = vadd.f32 %v261, %v458
  %v460 = vpop.f32.mrf.mxu0
  %v461 = vadd.f32 %v263, %v460
  %462 = vmatmul.bf16.gmra.mxu0 %v342
  %v463 = vpop.f32.mrf.mxu0
  %v464 = vadd.f32 %v266, %v463
  %v465 = vpop.f32.mrf.mxu0
  %v466 = vadd.f32 %v268, %v465
  %467 = vmatmul.bf16.gmra.mxu0 %v345
  %v468 = vpop.f32.mrf.mxu0
  %v469 = vadd.f32 %v271, %v468
  %v470 = vpop.f32.mrf.mxu0
  %v471 = vadd.f32 %v273, %v470
  %472 = vmatmul.bf16.gmra.mxu0 %v348
  %v473 = vpop.f32.mrf.mxu0
  %v474 = vadd.f32 %v276, %v473
  %v475 = vpop.f32.mrf.mxu0
  %v476 = vadd.f32 %v278, %v475
  %477 = vmatmul.bf16.gmra.mxu0 %v351
  %v478 = vpop.f32.mrf.mxu0
  %v479 = vadd.f32 %v281, %v478
  %v480 = vpop.f32.mrf.mxu0
  %v481 = vadd.f32 %v283, %v480
  %482 = vmatmul.bf16.gmra.mxu0 %v354
  %v483 = vpop.f32.mrf.mxu0
  %v484 = vadd.f32 %v286, %v483
  %v485 = vpop.f32.mrf.mxu0
  %v486 = vadd.f32 %v288, %v485
  %487 = vmatmul.bf16.gmra.mxu0 %v357
  %v488 = vpop.f32.mrf.mxu0
  %v489 = vadd.f32 %v291, %v488
  %v490 = vpop.f32.mrf.mxu0
  %v491 = vadd.f32 %v293, %v490
  %492 = vmatmul.bf16.gmra.mxu0 %v360
  %v493 = vpop.f32.mrf.mxu0
  %v494 = vadd.f32 %v296, %v493
  %v495 = vpop.f32.mrf.mxu0
  %v496 = vadd.f32 %v298, %v495
  %497 = vmatmul.bf16.gmra.mxu0 %v363
  %v498 = vpop.f32.mrf.mxu0
  %v499 = vadd.f32 %v301, %v498
  %v500 = vpop.f32.mrf.mxu0
  %v501 = vadd.f32 %v303, %v500
  %502 = vmatmul.bf16.gmra.mxu0 %v366
  %v503 = vpop.f32.mrf.mxu0
  %v504 = vadd.f32 %v306, %v503
  %v505 = vpop.f32.mrf.mxu0
  %v506 = vadd.f32 %v308, %v505
  %507 = vmatmul.bf16.gmra.mxu0 %v369
  %v508 = vpop.f32.mrf.mxu0
  %v509 = vadd.f32 %v311, %v508
  %v510 = vpop.f32.mrf.mxu0
  %v511 = vadd.f32 %v313, %v510
  %512 = vmatmul.bf16.gmra.mxu0 %v372
  %v513 = vpop.f32.mrf.mxu0
  %v514 = vadd.f32 %v316, %v513
  %v515 = vpop.f32.mrf.mxu0
  %v516 = vadd.f32 %v318, %v515
  %517 = vdwg.mxu0
  %v518 = vld [vmem:[%s0 + $0x2] sm:$0xff]
  %v519 = vld [vmem:[%s0 + $0xa] sm:$0xff]
  %v520 = vld [vmem:[%s0 + $0x12] sm:$0xff]
  %v521 = vld [vmem:[%s0 + $0x22] sm:$0xff]
  %v522 = vld [vmem:[%s0 + $0x2a] sm:$0xff]
  %v523 = vld [vmem:[%s0 + $0x32] sm:$0xff]
  %v524 = vld [vmem:[%s0 + $0x42] sm:$0xff]
  %v525 = vld [vmem:[%s0 + $0x4a] sm:$0xff]
  %v526 = vld [vmem:[%s0 + $0x52] sm:$0xff]
  %v527 = vld [vmem:[%s0 + $0x62] sm:$0xff]
  %v528 = vld [vmem:[%s0 + $0x6a] sm:$0xff]
  %v529 = vld [vmem:[%s0 + $0x72] sm:$0xff]
  %v530 = vld [vmem:[%s0 + $0x82] sm:$0xff]
  %v531 = vld [vmem:[%s0 + $0x8a] sm:$0xff]
  %v532 = vld [vmem:[%s0 + $0x92] sm:$0xff]
  %v533 = vld [vmem:[%s0 + $0xa2] sm:$0xff]
  %v534 = vld [vmem:[%s0 + $0xaa] sm:$0xff]
  %v535 = vld [vmem:[%s0 + $0xb2] sm:$0xff]
  %v536 = vld [vmem:[%s0 + $0xc2] sm:$0xff]
  %v537 = vld [vmem:[%s0 + $0xca] sm:$0xff]
  %v538 = vld [vmem:[%s0 + $0xd2] sm:$0xff]
  %v539 = vld [vmem:[%s0 + $0xe2] sm:$0xff]
  %v540 = vld [vmem:[%s0 + $0xea] sm:$0xff]
  %v541 = vld [vmem:[%s0 + $0xf2] sm:$0xff]
  %v542 = vpack.c.bf16 %v519, %v518
  %v543 = vpack.c.bf16 %v521, %v520
  %v544 = vpack.c.bf16 %v523, %v522
  %v545 = vpack.c.bf16 %v525, %v524
  %v546 = vpack.c.bf16 %v527, %v526
  %v547 = vpack.c.bf16 %v529, %v528
  %v548 = vpack.c.bf16 %v531, %v530
  %v549 = vpack.c.bf16 %v533, %v532
  %v550 = vpack.c.bf16 %v535, %v534
  %v551 = vpack.c.bf16 %v537, %v536
  %v552 = vpack.c.bf16 %v539, %v538
  %v553 = vpack.c.bf16 %v541, %v540
  %s554 = scalar_lea.vmem %s1, 64
  %v555 = vld [vmem:[%s554] sm:$0xff]
  %v556 = vld [vmem:[%s554 + $0x8] sm:$0xff]
  %v557 = vld [vmem:[%s554 + $0x10] sm:$0xff]
  %v558 = vld [vmem:[%s554 + $0x18] sm:$0x33]
  %v563 = vunpack.c.l.b16 %v555
  %v564 = vunpack.c.h.b16 %v555
  %v565 = vunpack.c.l.b16 %v556
  %v566 = vunpack.c.h.b16 %v556
  %v567 = vunpack.c.l.b16 %v557
  %v568 = vunpack.c.h.b16 %v557
  %v569 = vunpack.c.l.b16 %v558
  %v570 = vunpack.c.h.b16 %v558
  %v571 = vpack.c.b16 %v565, %v563
  %v572 = vpack.c.b16 %v566, %v564
  %v573 = vpack.c.b16 %v569, %v567
  %v574 = vpack.c.b16 %v570, %v568
  %v578 = vsel %vm138, %v542, 0
  %v581 = vsel %vm138, %v543, 0
  %v584 = vsel %vm138, %v544, 0
  %v587 = vsel %vm138, %v545, 0
  %v590 = vsel %vm138, %v546, 0
  %v593 = vsel %vm138, %v547, 0
  %v596 = vsel %vm138, %v548, 0
  %v599 = vsel %vm138, %v549, 0
  %v602 = vsel %vm138, %v550, 0
  %v605 = vsel %vm138, %v551, 0
  %v608 = vsel %vm138, %v552, 0
  %v611 = vsel %vm138, %v553, 0
  %v614 = vsel %vm175, %v573, 0
  %v617 = vsel %vm175, %v574, 0
  %619 = vmatpush.bf16.msra.mxu0 0
  %620 = vmatpush.bf16.msra.mxu0 0
  %621 = vmatpush.bf16.msra.mxu0 0
  %622 = vmatpush.bf16.msra.mxu0 0
  %623 = vmatpush.bf16.msra.mxu0 0
  %624 = vmatpush.bf16.msra.mxu0 0
  %625 = vmatpush.bf16.msra.mxu0 %v614
  %626 = vmatpush.bf16.msra.mxu0 %v571
  %627 = vmatmul.bf16.gmra.mxu0 %v578
  %v628 = vpop.f32.mrf.mxu0
  %v629 = vadd.f32 0.0, %v628
  %v630 = vpop.f32.mrf.mxu0
  %v631 = vadd.f32 0.0, %v630
  %632 = vmatmul.bf16.gmra.mxu0 %v581
  %v633 = vpop.f32.mrf.mxu0
  %v634 = vadd.f32 0.0, %v633
  %v635 = vpop.f32.mrf.mxu0
  %v636 = vadd.f32 0.0, %v635
  %637 = vmatmul.bf16.gmra.mxu0 %v584
  %v638 = vpop.f32.mrf.mxu0
  %v639 = vadd.f32 0.0, %v638
  %v640 = vpop.f32.mrf.mxu0
  %v641 = vadd.f32 0.0, %v640
  %642 = vmatmul.bf16.gmra.mxu0 %v587
  %v643 = vpop.f32.mrf.mxu0
  %v644 = vadd.f32 0.0, %v643
  %v645 = vpop.f32.mrf.mxu0
  %v646 = vadd.f32 0.0, %v645
  %647 = vmatmul.bf16.gmra.mxu0 %v590
  %v648 = vpop.f32.mrf.mxu0
  %v649 = vadd.f32 0.0, %v648
  %v650 = vpop.f32.mrf.mxu0
  %v651 = vadd.f32 0.0, %v650
  %652 = vmatmul.bf16.gmra.mxu0 %v593
  %v653 = vpop.f32.mrf.mxu0
  %v654 = vadd.f32 0.0, %v653
  %v655 = vpop.f32.mrf.mxu0
  %v656 = vadd.f32 0.0, %v655
  %657 = vmatmul.bf16.gmra.mxu0 %v596
  %v658 = vpop.f32.mrf.mxu0
  %v659 = vadd.f32 0.0, %v658
  %v660 = vpop.f32.mrf.mxu0
  %v661 = vadd.f32 0.0, %v660
  %662 = vmatmul.bf16.gmra.mxu0 %v599
  %v663 = vpop.f32.mrf.mxu0
  %v664 = vadd.f32 0.0, %v663
  %v665 = vpop.f32.mrf.mxu0
  %v666 = vadd.f32 0.0, %v665
  %667 = vmatmul.bf16.gmra.mxu0 %v602
  %v668 = vpop.f32.mrf.mxu0
  %v669 = vadd.f32 0.0, %v668
  %v670 = vpop.f32.mrf.mxu0
  %v671 = vadd.f32 0.0, %v670
  %672 = vmatmul.bf16.gmra.mxu0 %v605
  %v673 = vpop.f32.mrf.mxu0
  %v674 = vadd.f32 0.0, %v673
  %v675 = vpop.f32.mrf.mxu0
  %v676 = vadd.f32 0.0, %v675
  %677 = vmatmul.bf16.gmra.mxu0 %v608
  %v678 = vpop.f32.mrf.mxu0
  %v679 = vadd.f32 0.0, %v678
  %v680 = vpop.f32.mrf.mxu0
  %v681 = vadd.f32 0.0, %v680
  %682 = vmatmul.bf16.gmra.mxu0 %v611
  %v683 = vpop.f32.mrf.mxu0
  %v684 = vadd.f32 0.0, %v683
  %v685 = vpop.f32.mrf.mxu0
  %v686 = vadd.f32 0.0, %v685
  %687 = vdwg.mxu0
  %688 = vmatpush.bf16.msra.mxu0 0
  %689 = vmatpush.bf16.msra.mxu0 0
  %690 = vmatpush.bf16.msra.mxu0 0
  %691 = vmatpush.bf16.msra.mxu0 0
  %692 = vmatpush.bf16.msra.mxu0 0
  %693 = vmatpush.bf16.msra.mxu0 0
  %694 = vmatpush.bf16.msra.mxu0 %v617
  %695 = vmatpush.bf16.msra.mxu0 %v572
  %696 = vmatmul.bf16.gmra.mxu0 %v578
  %v697 = vpop.f32.mrf.mxu0
  %v698 = vadd.f32 0.0, %v697
  %v699 = vpop.f32.mrf.mxu0
  %v700 = vadd.f32 0.0, %v699
  %701 = vmatmul.bf16.gmra.mxu0 %v581
  %v702 = vpop.f32.mrf.mxu0
  %v703 = vadd.f32 0.0, %v702
  %v704 = vpop.f32.mrf.mxu0
  %v705 = vadd.f32 0.0, %v704
  %706 = vmatmul.bf16.gmra.mxu0 %v584
  %v707 = vpop.f32.mrf.mxu0
  %v708 = vadd.f32 0.0, %v707
  %v709 = vpop.f32.mrf.mxu0
  %v710 = vadd.f32 0.0, %v709
  %711 = vmatmul.bf16.gmra.mxu0 %v587
  %v712 = vpop.f32.mrf.mxu0
  %v713 = vadd.f32 0.0, %v712
  %v714 = vpop.f32.mrf.mxu0
  %v715 = vadd.f32 0.0, %v714
  %716 = vmatmul.bf16.gmra.mxu0 %v590
  %v717 = vpop.f32.mrf.mxu0
  %v718 = vadd.f32 0.0, %v717
  %v719 = vpop.f32.mrf.mxu0
  %v720 = vadd.f32 0.0, %v719
  %721 = vmatmul.bf16.gmra.mxu0 %v593
  %v722 = vpop.f32.mrf.mxu0
  %v723 = vadd.f32 0.0, %v722
  %v724 = vpop.f32.mrf.mxu0
  %v725 = vadd.f32 0.0, %v724
  %726 = vmatmul.bf16.gmra.mxu0 %v596
  %v727 = vpop.f32.mrf.mxu0
  %v728 = vadd.f32 0.0, %v727
  %v729 = vpop.f32.mrf.mxu0
  %v730 = vadd.f32 0.0, %v729
  %731 = vmatmul.bf16.gmra.mxu0 %v599
  %v732 = vpop.f32.mrf.mxu0
  %v733 = vadd.f32 0.0, %v732
  %v734 = vpop.f32.mrf.mxu0
  %v735 = vadd.f32 0.0, %v734
  %736 = vmatmul.bf16.gmra.mxu0 %v602
  %v737 = vpop.f32.mrf.mxu0
  %v738 = vadd.f32 0.0, %v737
  %v739 = vpop.f32.mrf.mxu0
  %v740 = vadd.f32 0.0, %v739
  %741 = vmatmul.bf16.gmra.mxu0 %v605
  %v742 = vpop.f32.mrf.mxu0
  %v743 = vadd.f32 0.0, %v742
  %v744 = vpop.f32.mrf.mxu0
  %v745 = vadd.f32 0.0, %v744
  %746 = vmatmul.bf16.gmra.mxu0 %v608
  %v747 = vpop.f32.mrf.mxu0
  %v748 = vadd.f32 0.0, %v747
  %v749 = vpop.f32.mrf.mxu0
  %v750 = vadd.f32 0.0, %v749
  %751 = vmatmul.bf16.gmra.mxu0 %v611
  %v752 = vpop.f32.mrf.mxu0
  %v753 = vadd.f32 0.0, %v752
  %v754 = vpop.f32.mrf.mxu0
  %v755 = vadd.f32 0.0, %v754
  %756 = vdwg.mxu0
  %v757 = vadd.f32 %v390, %v629
  %v758 = vadd.f32 %v459, %v698
  %v759 = vadd.f32 %v392, %v631
  %v760 = vadd.f32 %v461, %v700
  %v761 = vadd.f32 %v395, %v634
  %v762 = vadd.f32 %v464, %v703
  %v763 = vadd.f32 %v397, %v636
  %v764 = vadd.f32 %v466, %v705
  %v765 = vadd.f32 %v400, %v639
  %v766 = vadd.f32 %v469, %v708
  %v767 = vadd.f32 %v402, %v641
  %v768 = vadd.f32 %v471, %v710
  %v769 = vadd.f32 %v405, %v644
  %v770 = vadd.f32 %v474, %v713
  %v771 = vadd.f32 %v407, %v646
  %v772 = vadd.f32 %v476, %v715
  %v773 = vadd.f32 %v410, %v649
  %v774 = vadd.f32 %v479, %v718
  %v775 = vadd.f32 %v412, %v651
  %v776 = vadd.f32 %v481, %v720
  %v777 = vadd.f32 %v415, %v654
  %v778 = vadd.f32 %v484, %v723
  %v779 = vadd.f32 %v417, %v656
  %v780 = vadd.f32 %v486, %v725
  %v781 = vadd.f32 %v420, %v659
  %v782 = vadd.f32 %v489, %v728
  %v783 = vadd.f32 %v422, %v661
  %v784 = vadd.f32 %v491, %v730
  %v785 = vadd.f32 %v425, %v664
  %v786 = vadd.f32 %v494, %v733
  %v787 = vadd.f32 %v427, %v666
  %v788 = vadd.f32 %v496, %v735
  %v789 = vadd.f32 %v430, %v669
  %v790 = vadd.f32 %v499, %v738
  %v791 = vadd.f32 %v432, %v671
  %v792 = vadd.f32 %v501, %v740
  %v793 = vadd.f32 %v435, %v674
  %v794 = vadd.f32 %v504, %v743
  %v795 = vadd.f32 %v437, %v676
  %v796 = vadd.f32 %v506, %v745
  %v797 = vadd.f32 %v440, %v679
  %v798 = vadd.f32 %v509, %v748
  %v799 = vadd.f32 %v442, %v681
  %v800 = vadd.f32 %v511, %v750
  %v801 = vadd.f32 %v445, %v684
  %v802 = vadd.f32 %v514, %v753
  %v803 = vadd.f32 %v447, %v686
  %v804 = vadd.f32 %v516, %v755
  %v805 = vld [vmem:[%s0 + $0x3] sm:$0xff]
  %v806 = vld [vmem:[%s0 + $0xb] sm:$0xff]
  %v807 = vld [vmem:[%s0 + $0x13] sm:$0xff]
  %v808 = vld [vmem:[%s0 + $0x23] sm:$0xff]
  %v809 = vld [vmem:[%s0 + $0x2b] sm:$0xff]
  %v810 = vld [vmem:[%s0 + $0x33] sm:$0xff]
  %v811 = vld [vmem:[%s0 + $0x43] sm:$0xff]
  %v812 = vld [vmem:[%s0 + $0x4b] sm:$0xff]
  %v813 = vld [vmem:[%s0 + $0x53] sm:$0xff]
  %v814 = vld [vmem:[%s0 + $0x63] sm:$0xff]
  %v815 = vld [vmem:[%s0 + $0x6b] sm:$0xff]
  %v816 = vld [vmem:[%s0 + $0x73] sm:$0xff]
  %v817 = vld [vmem:[%s0 + $0x83] sm:$0xff]
  %v818 = vld [vmem:[%s0 + $0x8b] sm:$0xff]
  %v819 = vld [vmem:[%s0 + $0x93] sm:$0xff]
  %v820 = vld [vmem:[%s0 + $0xa3] sm:$0xff]
  %v821 = vld [vmem:[%s0 + $0xab] sm:$0xff]
  %v822 = vld [vmem:[%s0 + $0xb3] sm:$0xff]
  %v823 = vld [vmem:[%s0 + $0xc3] sm:$0xff]
  %v824 = vld [vmem:[%s0 + $0xcb] sm:$0xff]
  %v825 = vld [vmem:[%s0 + $0xd3] sm:$0xff]
  %v826 = vld [vmem:[%s0 + $0xe3] sm:$0xff]
  %v827 = vld [vmem:[%s0 + $0xeb] sm:$0xff]
  %v828 = vld [vmem:[%s0 + $0xf3] sm:$0xff]
  %v829 = vpack.c.bf16 %v806, %v805
  %v830 = vpack.c.bf16 %v808, %v807
  %v831 = vpack.c.bf16 %v810, %v809
  %v832 = vpack.c.bf16 %v812, %v811
  %v833 = vpack.c.bf16 %v814, %v813
  %v834 = vpack.c.bf16 %v816, %v815
  %v835 = vpack.c.bf16 %v818, %v817
  %v836 = vpack.c.bf16 %v820, %v819
  %v837 = vpack.c.bf16 %v822, %v821
  %v838 = vpack.c.bf16 %v824, %v823
  %v839 = vpack.c.bf16 %v826, %v825
  %v840 = vpack.c.bf16 %v828, %v827
  %s841 = scalar_lea.vmem %s1, 96
  %v842 = vld [vmem:[%s841] sm:$0xff]
  %v843 = vld [vmem:[%s841 + $0x8] sm:$0xff]
  %v844 = vld [vmem:[%s841 + $0x10] sm:$0xff]
  %v845 = vld [vmem:[%s841 + $0x18] sm:$0x33]
  %v850 = vunpack.c.l.b16 %v842
  %v851 = vunpack.c.h.b16 %v842
  %v852 = vunpack.c.l.b16 %v843
  %v853 = vunpack.c.h.b16 %v843
  %v854 = vunpack.c.l.b16 %v844
  %v855 = vunpack.c.h.b16 %v844
  %v856 = vunpack.c.l.b16 %v845
  %v857 = vunpack.c.h.b16 %v845
  %v858 = vpack.c.b16 %v852, %v850
  %v859 = vpack.c.b16 %v853, %v851
  %v860 = vpack.c.b16 %v856, %v854
  %v861 = vpack.c.b16 %v857, %v855
  %v865 = vsel %vm138, %v829, 0
  %v868 = vsel %vm138, %v830, 0
  %v871 = vsel %vm138, %v831, 0
  %v874 = vsel %vm138, %v832, 0
  %v877 = vsel %vm138, %v833, 0
  %v880 = vsel %vm138, %v834, 0
  %v883 = vsel %vm138, %v835, 0
  %v886 = vsel %vm138, %v836, 0
  %v889 = vsel %vm138, %v837, 0
  %v892 = vsel %vm138, %v838, 0
  %v895 = vsel %vm138, %v839, 0
  %v898 = vsel %vm138, %v840, 0
  %v901 = vsel %vm175, %v860, 0
  %v904 = vsel %vm175, %v861, 0
  %906 = vmatpush.bf16.msra.mxu0 0
  %907 = vmatpush.bf16.msra.mxu0 0
  %908 = vmatpush.bf16.msra.mxu0 0
  %909 = vmatpush.bf16.msra.mxu0 0
  %910 = vmatpush.bf16.msra.mxu0 0
  %911 = vmatpush.bf16.msra.mxu0 0
  %912 = vmatpush.bf16.msra.mxu0 %v901
  %913 = vmatpush.bf16.msra.mxu0 %v858
  %914 = vmatmul.bf16.gmra.mxu0 %v865
  %v915 = vpop.f32.mrf.mxu0
  %v916 = vadd.f32 0.0, %v915
  %v917 = vpop.f32.mrf.mxu0
  %v918 = vadd.f32 0.0, %v917
  %919 = vmatmul.bf16.gmra.mxu0 %v868
  %v920 = vpop.f32.mrf.mxu0
  %v921 = vadd.f32 0.0, %v920
  %v922 = vpop.f32.mrf.mxu0
  %v923 = vadd.f32 0.0, %v922
  %924 = vmatmul.bf16.gmra.mxu0 %v871
  %v925 = vpop.f32.mrf.mxu0
  %v926 = vadd.f32 0.0, %v925
  %v927 = vpop.f32.mrf.mxu0
  %v928 = vadd.f32 0.0, %v927
  %929 = vmatmul.bf16.gmra.mxu0 %v874
  %v930 = vpop.f32.mrf.mxu0
  %v931 = vadd.f32 0.0, %v930
  %v932 = vpop.f32.mrf.mxu0
  %v933 = vadd.f32 0.0, %v932
  %934 = vmatmul.bf16.gmra.mxu0 %v877
  %v935 = vpop.f32.mrf.mxu0
  %v936 = vadd.f32 0.0, %v935
  %v937 = vpop.f32.mrf.mxu0
  %v938 = vadd.f32 0.0, %v937
  %939 = vmatmul.bf16.gmra.mxu0 %v880
  %v940 = vpop.f32.mrf.mxu0
  %v941 = vadd.f32 0.0, %v940
  %v942 = vpop.f32.mrf.mxu0
  %v943 = vadd.f32 0.0, %v942
  %944 = vmatmul.bf16.gmra.mxu0 %v883
  %v945 = vpop.f32.mrf.mxu0
  %v946 = vadd.f32 0.0, %v945
  %v947 = vpop.f32.mrf.mxu0
  %v948 = vadd.f32 0.0, %v947
  %949 = vmatmul.bf16.gmra.mxu0 %v886
  %v950 = vpop.f32.mrf.mxu0
  %v951 = vadd.f32 0.0, %v950
  %v952 = vpop.f32.mrf.mxu0
  %v953 = vadd.f32 0.0, %v952
  %954 = vmatmul.bf16.gmra.mxu0 %v889
  %v955 = vpop.f32.mrf.mxu0
  %v956 = vadd.f32 0.0, %v955
  %v957 = vpop.f32.mrf.mxu0
  %v958 = vadd.f32 0.0, %v957
  %959 = vmatmul.bf16.gmra.mxu0 %v892
  %v960 = vpop.f32.mrf.mxu0
  %v961 = vadd.f32 0.0, %v960
  %v962 = vpop.f32.mrf.mxu0
  %v963 = vadd.f32 0.0, %v962
  %964 = vmatmul.bf16.gmra.mxu0 %v895
  %v965 = vpop.f32.mrf.mxu0
  %v966 = vadd.f32 0.0, %v965
  %v967 = vpop.f32.mrf.mxu0
  %v968 = vadd.f32 0.0, %v967
  %969 = vmatmul.bf16.gmra.mxu0 %v898
  %v970 = vpop.f32.mrf.mxu0
  %v971 = vadd.f32 0.0, %v970
  %v972 = vpop.f32.mrf.mxu0
  %v973 = vadd.f32 0.0, %v972
  %974 = vdwg.mxu0
  %975 = vmatpush.bf16.msra.mxu0 0
  %976 = vmatpush.bf16.msra.mxu0 0
  %977 = vmatpush.bf16.msra.mxu0 0
  %978 = vmatpush.bf16.msra.mxu0 0
  %979 = vmatpush.bf16.msra.mxu0 0
  %980 = vmatpush.bf16.msra.mxu0 0
  %981 = vmatpush.bf16.msra.mxu0 %v904
  %982 = vmatpush.bf16.msra.mxu0 %v859
  %983 = vmatmul.bf16.gmra.mxu0 %v865
  %v984 = vpop.f32.mrf.mxu0
  %v985 = vadd.f32 0.0, %v984
  %v986 = vpop.f32.mrf.mxu0
  %v987 = vadd.f32 0.0, %v986
  %988 = vmatmul.bf16.gmra.mxu0 %v868
  %v989 = vpop.f32.mrf.mxu0
  %v990 = vadd.f32 0.0, %v989
  %v991 = vpop.f32.mrf.mxu0
  %v992 = vadd.f32 0.0, %v991
  %993 = vmatmul.bf16.gmra.mxu0 %v871
  %v994 = vpop.f32.mrf.mxu0
  %v995 = vadd.f32 0.0, %v994
  %v996 = vpop.f32.mrf.mxu0
  %v997 = vadd.f32 0.0, %v996
  %998 = vmatmul.bf16.gmra.mxu0 %v874
  %v999 = vpop.f32.mrf.mxu0
  %v1000 = vadd.f32 0.0, %v999
  %v1001 = vpop.f32.mrf.mxu0
  %v1002 = vadd.f32 0.0, %v1001
  %1003 = vmatmul.bf16.gmra.mxu0 %v877
  %v1004 = vpop.f32.mrf.mxu0
  %v1005 = vadd.f32 0.0, %v1004
  %v1006 = vpop.f32.mrf.mxu0
  %v1007 = vadd.f32 0.0, %v1006
  %1008 = vmatmul.bf16.gmra.mxu0 %v880
  %v1009 = vpop.f32.mrf.mxu0
  %v1010 = vadd.f32 0.0, %v1009
  %v1011 = vpop.f32.mrf.mxu0
  %v1012 = vadd.f32 0.0, %v1011
  %1013 = vmatmul.bf16.gmra.mxu0 %v883
  %v1014 = vpop.f32.mrf.mxu0
  %v1015 = vadd.f32 0.0, %v1014
  %v1016 = vpop.f32.mrf.mxu0
  %v1017 = vadd.f32 0.0, %v1016
  %1018 = vmatmul.bf16.gmra.mxu0 %v886
  %v1019 = vpop.f32.mrf.mxu0
  %v1020 = vadd.f32 0.0, %v1019
  %v1021 = vpop.f32.mrf.mxu0
  %v1022 = vadd.f32 0.0, %v1021
  %1023 = vmatmul.bf16.gmra.mxu0 %v889
  %v1024 = vpop.f32.mrf.mxu0
  %v1025 = vadd.f32 0.0, %v1024
  %v1026 = vpop.f32.mrf.mxu0
  %v1027 = vadd.f32 0.0, %v1026
  %1028 = vmatmul.bf16.gmra.mxu0 %v892
  %v1029 = vpop.f32.mrf.mxu0
  %v1030 = vadd.f32 0.0, %v1029
  %v1031 = vpop.f32.mrf.mxu0
  %v1032 = vadd.f32 0.0, %v1031
  %1033 = vmatmul.bf16.gmra.mxu0 %v895
  %v1034 = vpop.f32.mrf.mxu0
  %v1035 = vadd.f32 0.0, %v1034
  %v1036 = vpop.f32.mrf.mxu0
  %v1037 = vadd.f32 0.0, %v1036
  %1038 = vmatmul.bf16.gmra.mxu0 %v898
  %v1039 = vpop.f32.mrf.mxu0
  %v1040 = vadd.f32 0.0, %v1039
  %v1041 = vpop.f32.mrf.mxu0
  %v1042 = vadd.f32 0.0, %v1041
  %1043 = vdwg.mxu0
  %v1044 = vadd.f32 %v757, %v916
  %v1045 = vadd.f32 %v758, %v985
  %v1046 = vadd.f32 %v759, %v918
  %v1047 = vadd.f32 %v760, %v987
  %v1048 = vadd.f32 %v761, %v921
  %v1049 = vadd.f32 %v762, %v990
  %v1050 = vadd.f32 %v763, %v923
  %v1051 = vadd.f32 %v764, %v992
  %v1052 = vadd.f32 %v765, %v926
  %v1053 = vadd.f32 %v766, %v995
  %v1054 = vadd.f32 %v767, %v928
  %v1055 = vadd.f32 %v768, %v997
  %v1056 = vadd.f32 %v769, %v931
  %v1057 = vadd.f32 %v770, %v1000
  %v1058 = vadd.f32 %v771, %v933
  %v1059 = vadd.f32 %v772, %v1002
  %v1060 = vadd.f32 %v773, %v936
  %v1061 = vadd.f32 %v774, %v1005
  %v1062 = vadd.f32 %v775, %v938
  %v1063 = vadd.f32 %v776, %v1007
  %v1064 = vadd.f32 %v777, %v941
  %v1065 = vadd.f32 %v778, %v1010
  %v1066 = vadd.f32 %v779, %v943
  %v1067 = vadd.f32 %v780, %v1012
  %v1068 = vadd.f32 %v781, %v946
  %v1069 = vadd.f32 %v782, %v1015
  %v1070 = vadd.f32 %v783, %v948
  %v1071 = vadd.f32 %v784, %v1017
  %v1072 = vadd.f32 %v785, %v951
  %v1073 = vadd.f32 %v786, %v1020
  %v1074 = vadd.f32 %v787, %v953
  %v1075 = vadd.f32 %v788, %v1022
  %v1076 = vadd.f32 %v789, %v956
  %v1077 = vadd.f32 %v790, %v1025
  %v1078 = vadd.f32 %v791, %v958
  %v1079 = vadd.f32 %v792, %v1027
  %v1080 = vadd.f32 %v793, %v961
  %v1081 = vadd.f32 %v794, %v1030
  %v1082 = vadd.f32 %v795, %v963
  %v1083 = vadd.f32 %v796, %v1032
  %v1084 = vadd.f32 %v797, %v966
  %v1085 = vadd.f32 %v798, %v1035
  %v1086 = vadd.f32 %v799, %v968
  %v1087 = vadd.f32 %v800, %v1037
  %v1088 = vadd.f32 %v801, %v971
  %v1089 = vadd.f32 %v802, %v1040
  %v1090 = vadd.f32 %v803, %v973
  %v1091 = vadd.f32 %v804, %v1042
  %v1092 = vld [vmem:[%s0 + $0x4] sm:$0xff]
  %v1093 = vld [vmem:[%s0 + $0xc] sm:$0xff]
  %v1094 = vld [vmem:[%s0 + $0x14] sm:$0xff]
  %v1095 = vld [vmem:[%s0 + $0x24] sm:$0xff]
  %v1096 = vld [vmem:[%s0 + $0x2c] sm:$0xff]
  %v1097 = vld [vmem:[%s0 + $0x34] sm:$0xff]
  %v1098 = vld [vmem:[%s0 + $0x44] sm:$0xff]
  %v1099 = vld [vmem:[%s0 + $0x4c] sm:$0xff]
  %v1100 = vld [vmem:[%s0 + $0x54] sm:$0xff]
  %v1101 = vld [vmem:[%s0 + $0x64] sm:$0xff]
  %v1102 = vld [vmem:[%s0 + $0x6c] sm:$0xff]
  %v1103 = vld [vmem:[%s0 + $0x74] sm:$0xff]
  %v1104 = vld [vmem:[%s0 + $0x84] sm:$0xff]
  %v1105 = vld [vmem:[%s0 + $0x8c] sm:$0xff]
  %v1106 = vld [vmem:[%s0 + $0x94] sm:$0xff]
  %v1107 = vld [vmem:[%s0 + $0xa4] sm:$0xff]
  %v1108 = vld [vmem:[%s0 + $0xac] sm:$0xff]
  %v1109 = vld [vmem:[%s0 + $0xb4] sm:$0xff]
  %v1110 = vld [vmem:[%s0 + $0xc4] sm:$0xff]
  %v1111 = vld [vmem:[%s0 + $0xcc] sm:$0xff]
  %v1112 = vld [vmem:[%s0 + $0xd4] sm:$0xff]
  %v1113 = vld [vmem:[%s0 + $0xe4] sm:$0xff]
  %v1114 = vld [vmem:[%s0 + $0xec] sm:$0xff]
  %v1115 = vld [vmem:[%s0 + $0xf4] sm:$0xff]
  %v1116 = vpack.c.bf16 %v1093, %v1092
  %v1117 = vpack.c.bf16 %v1095, %v1094
  %v1118 = vpack.c.bf16 %v1097, %v1096
  %v1119 = vpack.c.bf16 %v1099, %v1098
  %v1120 = vpack.c.bf16 %v1101, %v1100
  %v1121 = vpack.c.bf16 %v1103, %v1102
  %v1122 = vpack.c.bf16 %v1105, %v1104
  %v1123 = vpack.c.bf16 %v1107, %v1106
  %v1124 = vpack.c.bf16 %v1109, %v1108
  %v1125 = vpack.c.bf16 %v1111, %v1110
  %v1126 = vpack.c.bf16 %v1113, %v1112
  %v1127 = vpack.c.bf16 %v1115, %v1114
  %s1128 = scalar_lea.vmem %s1, 128
  %v1129 = vld [vmem:[%s1128] sm:$0xff]
  %v1130 = vld [vmem:[%s1128 + $0x8] sm:$0xff]
  %v1131 = vld [vmem:[%s1128 + $0x10] sm:$0xff]
  %v1132 = vld [vmem:[%s1128 + $0x18] sm:$0x33]
  %v1137 = vunpack.c.l.b16 %v1129
  %v1138 = vunpack.c.h.b16 %v1129
  %v1139 = vunpack.c.l.b16 %v1130
  %v1140 = vunpack.c.h.b16 %v1130
  %v1141 = vunpack.c.l.b16 %v1131
  %v1142 = vunpack.c.h.b16 %v1131
  %v1143 = vunpack.c.l.b16 %v1132
  %v1144 = vunpack.c.h.b16 %v1132
  %v1145 = vpack.c.b16 %v1139, %v1137
  %v1146 = vpack.c.b16 %v1140, %v1138
  %v1147 = vpack.c.b16 %v1143, %v1141
  %v1148 = vpack.c.b16 %v1144, %v1142
  %v1152 = vsel %vm138, %v1116, 0
  %v1155 = vsel %vm138, %v1117, 0
  %v1158 = vsel %vm138, %v1118, 0
  %v1161 = vsel %vm138, %v1119, 0
  %v1164 = vsel %vm138, %v1120, 0
  %v1167 = vsel %vm138, %v1121, 0
  %v1170 = vsel %vm138, %v1122, 0
  %v1173 = vsel %vm138, %v1123, 0
  %v1176 = vsel %vm138, %v1124, 0
  %v1179 = vsel %vm138, %v1125, 0
  %v1182 = vsel %vm138, %v1126, 0
  %v1185 = vsel %vm138, %v1127, 0
  %v1188 = vsel %vm175, %v1147, 0
  %v1191 = vsel %vm175, %v1148, 0
  %1193 = vmatpush.bf16.msra.mxu0 0
  %1194 = vmatpush.bf16.msra.mxu0 0
  %1195 = vmatpush.bf16.msra.mxu0 0
  %1196 = vmatpush.bf16.msra.mxu0 0
  %1197 = vmatpush.bf16.msra.mxu0 0
  %1198 = vmatpush.bf16.msra.mxu0 0
  %1199 = vmatpush.bf16.msra.mxu0 %v1188
  %1200 = vmatpush.bf16.msra.mxu0 %v1145
  %1201 = vmatmul.bf16.gmra.mxu0 %v1152
  %v1202 = vpop.f32.mrf.mxu0
  %v1203 = vadd.f32 0.0, %v1202
  %v1204 = vpop.f32.mrf.mxu0
  %v1205 = vadd.f32 0.0, %v1204
  %1206 = vmatmul.bf16.gmra.mxu0 %v1155
  %v1207 = vpop.f32.mrf.mxu0
  %v1208 = vadd.f32 0.0, %v1207
  %v1209 = vpop.f32.mrf.mxu0
  %v1210 = vadd.f32 0.0, %v1209
  %1211 = vmatmul.bf16.gmra.mxu0 %v1158
  %v1212 = vpop.f32.mrf.mxu0
  %v1213 = vadd.f32 0.0, %v1212
  %v1214 = vpop.f32.mrf.mxu0
  %v1215 = vadd.f32 0.0, %v1214
  %1216 = vmatmul.bf16.gmra.mxu0 %v1161
  %v1217 = vpop.f32.mrf.mxu0
  %v1218 = vadd.f32 0.0, %v1217
  %v1219 = vpop.f32.mrf.mxu0
  %v1220 = vadd.f32 0.0, %v1219
  %1221 = vmatmul.bf16.gmra.mxu0 %v1164
  %v1222 = vpop.f32.mrf.mxu0
  %v1223 = vadd.f32 0.0, %v1222
  %v1224 = vpop.f32.mrf.mxu0
  %v1225 = vadd.f32 0.0, %v1224
  %1226 = vmatmul.bf16.gmra.mxu0 %v1167
  %v1227 = vpop.f32.mrf.mxu0
  %v1228 = vadd.f32 0.0, %v1227
  %v1229 = vpop.f32.mrf.mxu0
  %v1230 = vadd.f32 0.0, %v1229
  %1231 = vmatmul.bf16.gmra.mxu0 %v1170
  %v1232 = vpop.f32.mrf.mxu0
  %v1233 = vadd.f32 0.0, %v1232
  %v1234 = vpop.f32.mrf.mxu0
  %v1235 = vadd.f32 0.0, %v1234
  %1236 = vmatmul.bf16.gmra.mxu0 %v1173
  %v1237 = vpop.f32.mrf.mxu0
  %v1238 = vadd.f32 0.0, %v1237
  %v1239 = vpop.f32.mrf.mxu0
  %v1240 = vadd.f32 0.0, %v1239
  %1241 = vmatmul.bf16.gmra.mxu0 %v1176
  %v1242 = vpop.f32.mrf.mxu0
  %v1243 = vadd.f32 0.0, %v1242
  %v1244 = vpop.f32.mrf.mxu0
  %v1245 = vadd.f32 0.0, %v1244
  %1246 = vmatmul.bf16.gmra.mxu0 %v1179
  %v1247 = vpop.f32.mrf.mxu0
  %v1248 = vadd.f32 0.0, %v1247
  %v1249 = vpop.f32.mrf.mxu0
  %v1250 = vadd.f32 0.0, %v1249
  %1251 = vmatmul.bf16.gmra.mxu0 %v1182
  %v1252 = vpop.f32.mrf.mxu0
  %v1253 = vadd.f32 0.0, %v1252
  %v1254 = vpop.f32.mrf.mxu0
  %v1255 = vadd.f32 0.0, %v1254
  %1256 = vmatmul.bf16.gmra.mxu0 %v1185
  %v1257 = vpop.f32.mrf.mxu0
  %v1258 = vadd.f32 0.0, %v1257
  %v1259 = vpop.f32.mrf.mxu0
  %v1260 = vadd.f32 0.0, %v1259
  %1261 = vdwg.mxu0
  %1262 = vmatpush.bf16.msra.mxu0 0
  %1263 = vmatpush.bf16.msra.mxu0 0
  %1264 = vmatpush.bf16.msra.mxu0 0
  %1265 = vmatpush.bf16.msra.mxu0 0
  %1266 = vmatpush.bf16.msra.mxu0 0
  %1267 = vmatpush.bf16.msra.mxu0 0
  %1268 = vmatpush.bf16.msra.mxu0 %v1191
  %1269 = vmatpush.bf16.msra.mxu0 %v1146
  %1270 = vmatmul.bf16.gmra.mxu0 %v1152
  %v1271 = vpop.f32.mrf.mxu0
  %v1272 = vadd.f32 0.0, %v1271
  %v1273 = vpop.f32.mrf.mxu0
  %v1274 = vadd.f32 0.0, %v1273
  %1275 = vmatmul.bf16.gmra.mxu0 %v1155
  %v1276 = vpop.f32.mrf.mxu0
  %v1277 = vadd.f32 0.0, %v1276
  %v1278 = vpop.f32.mrf.mxu0
  %v1279 = vadd.f32 0.0, %v1278
  %1280 = vmatmul.bf16.gmra.mxu0 %v1158
  %v1281 = vpop.f32.mrf.mxu0
  %v1282 = vadd.f32 0.0, %v1281
  %v1283 = vpop.f32.mrf.mxu0
  %v1284 = vadd.f32 0.0, %v1283
  %1285 = vmatmul.bf16.gmra.mxu0 %v1161
  %v1286 = vpop.f32.mrf.mxu0
  %v1287 = vadd.f32 0.0, %v1286
  %v1288 = vpop.f32.mrf.mxu0
  %v1289 = vadd.f32 0.0, %v1288
  %1290 = vmatmul.bf16.gmra.mxu0 %v1164
  %v1291 = vpop.f32.mrf.mxu0
  %v1292 = vadd.f32 0.0, %v1291
  %v1293 = vpop.f32.mrf.mxu0
  %v1294 = vadd.f32 0.0, %v1293
  %1295 = vmatmul.bf16.gmra.mxu0 %v1167
  %v1296 = vpop.f32.mrf.mxu0
  %v1297 = vadd.f32 0.0, %v1296
  %v1298 = vpop.f32.mrf.mxu0
  %v1299 = vadd.f32 0.0, %v1298
  %1300 = vmatmul.bf16.gmra.mxu0 %v1170
  %v1301 = vpop.f32.mrf.mxu0
  %v1302 = vadd.f32 0.0, %v1301
  %v1303 = vpop.f32.mrf.mxu0
  %v1304 = vadd.f32 0.0, %v1303
  %1305 = vmatmul.bf16.gmra.mxu0 %v1173
  %v1306 = vpop.f32.mrf.mxu0
  %v1307 = vadd.f32 0.0, %v1306
  %v1308 = vpop.f32.mrf.mxu0
  %v1309 = vadd.f32 0.0, %v1308
  %1310 = vmatmul.bf16.gmra.mxu0 %v1176
  %v1311 = vpop.f32.mrf.mxu0
  %v1312 = vadd.f32 0.0, %v1311
  %v1313 = vpop.f32.mrf.mxu0
  %v1314 = vadd.f32 0.0, %v1313
  %1315 = vmatmul.bf16.gmra.mxu0 %v1179
  %v1316 = vpop.f32.mrf.mxu0
  %v1317 = vadd.f32 0.0, %v1316
  %v1318 = vpop.f32.mrf.mxu0
  %v1319 = vadd.f32 0.0, %v1318
  %1320 = vmatmul.bf16.gmra.mxu0 %v1182
  %v1321 = vpop.f32.mrf.mxu0
  %v1322 = vadd.f32 0.0, %v1321
  %v1323 = vpop.f32.mrf.mxu0
  %v1324 = vadd.f32 0.0, %v1323
  %1325 = vmatmul.bf16.gmra.mxu0 %v1185
  %v1326 = vpop.f32.mrf.mxu0
  %v1327 = vadd.f32 0.0, %v1326
  %v1328 = vpop.f32.mrf.mxu0
  %v1329 = vadd.f32 0.0, %v1328
  %1330 = vdwg.mxu0
  %v1331 = vadd.f32 %v1044, %v1203
  %v1332 = vadd.f32 %v1045, %v1272
  %v1333 = vadd.f32 %v1046, %v1205
  %v1334 = vadd.f32 %v1047, %v1274
  %v1335 = vadd.f32 %v1048, %v1208
  %v1336 = vadd.f32 %v1049, %v1277
  %v1337 = vadd.f32 %v1050, %v1210
  %v1338 = vadd.f32 %v1051, %v1279
  %v1339 = vadd.f32 %v1052, %v1213
  %v1340 = vadd.f32 %v1053, %v1282
  %v1341 = vadd.f32 %v1054, %v1215
  %v1342 = vadd.f32 %v1055, %v1284
  %v1343 = vadd.f32 %v1056, %v1218
  %v1344 = vadd.f32 %v1057, %v1287
  %v1345 = vadd.f32 %v1058, %v1220
  %v1346 = vadd.f32 %v1059, %v1289
  %v1347 = vadd.f32 %v1060, %v1223
  %v1348 = vadd.f32 %v1061, %v1292
  %v1349 = vadd.f32 %v1062, %v1225
  %v1350 = vadd.f32 %v1063, %v1294
  %v1351 = vadd.f32 %v1064, %v1228
  %v1352 = vadd.f32 %v1065, %v1297
  %v1353 = vadd.f32 %v1066, %v1230
  %v1354 = vadd.f32 %v1067, %v1299
  %v1355 = vadd.f32 %v1068, %v1233
  %v1356 = vadd.f32 %v1069, %v1302
  %v1357 = vadd.f32 %v1070, %v1235
  %v1358 = vadd.f32 %v1071, %v1304
  %v1359 = vadd.f32 %v1072, %v1238
  %v1360 = vadd.f32 %v1073, %v1307
  %v1361 = vadd.f32 %v1074, %v1240
  %v1362 = vadd.f32 %v1075, %v1309
  %v1363 = vadd.f32 %v1076, %v1243
  %v1364 = vadd.f32 %v1077, %v1312
  %v1365 = vadd.f32 %v1078, %v1245
  %v1366 = vadd.f32 %v1079, %v1314
  %v1367 = vadd.f32 %v1080, %v1248
  %v1368 = vadd.f32 %v1081, %v1317
  %v1369 = vadd.f32 %v1082, %v1250
  %v1370 = vadd.f32 %v1083, %v1319
  %v1371 = vadd.f32 %v1084, %v1253
  %v1372 = vadd.f32 %v1085, %v1322
  %v1373 = vadd.f32 %v1086, %v1255
  %v1374 = vadd.f32 %v1087, %v1324
  %v1375 = vadd.f32 %v1088, %v1258
  %v1376 = vadd.f32 %v1089, %v1327
  %v1377 = vadd.f32 %v1090, %v1260
  %v1378 = vadd.f32 %v1091, %v1329
  %v1379 = vld [vmem:[%s2] sm:$0x3]
  %v1381 = vperm.slane %v1379, 0
  %v1382 = vperm.slane %v1379, 1
  %v1385 = vadd.f32 %v1331, %v1381
  %v1386 = vadd.f32 %v1332, %v1382
  %v1387 = vadd.f32 %v1333, %v1381
  %v1388 = vadd.f32 %v1334, %v1382
  %v1389 = vadd.f32 %v1335, %v1381
  %v1390 = vadd.f32 %v1336, %v1382
  %v1391 = vadd.f32 %v1337, %v1381
  %v1392 = vadd.f32 %v1338, %v1382
  %v1393 = vadd.f32 %v1339, %v1381
  %v1394 = vadd.f32 %v1340, %v1382
  %v1395 = vadd.f32 %v1341, %v1381
  %v1396 = vadd.f32 %v1342, %v1382
  %v1397 = vadd.f32 %v1343, %v1381
  %v1398 = vadd.f32 %v1344, %v1382
  %v1399 = vadd.f32 %v1345, %v1381
  %v1400 = vadd.f32 %v1346, %v1382
  %v1401 = vadd.f32 %v1347, %v1381
  %v1402 = vadd.f32 %v1348, %v1382
  %v1403 = vadd.f32 %v1349, %v1381
  %v1404 = vadd.f32 %v1350, %v1382
  %v1405 = vadd.f32 %v1351, %v1381
  %v1406 = vadd.f32 %v1352, %v1382
  %v1407 = vadd.f32 %v1353, %v1381
  %v1408 = vadd.f32 %v1354, %v1382
  %v1409 = vadd.f32 %v1355, %v1381
  %v1410 = vadd.f32 %v1356, %v1382
  %v1411 = vadd.f32 %v1357, %v1381
  %v1412 = vadd.f32 %v1358, %v1382
  %v1413 = vadd.f32 %v1359, %v1381
  %v1414 = vadd.f32 %v1360, %v1382
  %v1415 = vadd.f32 %v1361, %v1381
  %v1416 = vadd.f32 %v1362, %v1382
  %v1417 = vadd.f32 %v1363, %v1381
  %v1418 = vadd.f32 %v1364, %v1382
  %v1419 = vadd.f32 %v1365, %v1381
  %v1420 = vadd.f32 %v1366, %v1382
  %v1421 = vadd.f32 %v1367, %v1381
  %v1422 = vadd.f32 %v1368, %v1382
  %v1423 = vadd.f32 %v1369, %v1381
  %v1424 = vadd.f32 %v1370, %v1382
  %v1425 = vadd.f32 %v1371, %v1381
  %v1426 = vadd.f32 %v1372, %v1382
  %v1427 = vadd.f32 %v1373, %v1381
  %v1428 = vadd.f32 %v1374, %v1382
  %v1429 = vadd.f32 %v1375, %v1381
  %v1430 = vadd.f32 %v1376, %v1382
  %v1431 = vadd.f32 %v1377, %v1381
  %v1432 = vadd.f32 %v1378, %v1382
  %v1433 = vmax.f32 %v1385, 0.0
  %v1434 = vmax.f32 %v1386, 0.0
  %v1435 = vmax.f32 %v1387, 0.0
  %v1436 = vmax.f32 %v1388, 0.0
  %v1437 = vmax.f32 %v1389, 0.0
  %v1438 = vmax.f32 %v1390, 0.0
  %v1439 = vmax.f32 %v1391, 0.0
  %v1440 = vmax.f32 %v1392, 0.0
  %v1441 = vmax.f32 %v1393, 0.0
  %v1442 = vmax.f32 %v1394, 0.0
  %v1443 = vmax.f32 %v1395, 0.0
  %v1444 = vmax.f32 %v1396, 0.0
  %v1445 = vmax.f32 %v1397, 0.0
  %v1446 = vmax.f32 %v1398, 0.0
  %v1447 = vmax.f32 %v1399, 0.0
  %v1448 = vmax.f32 %v1400, 0.0
  %v1449 = vmax.f32 %v1401, 0.0
  %v1450 = vmax.f32 %v1402, 0.0
  %v1451 = vmax.f32 %v1403, 0.0
  %v1452 = vmax.f32 %v1404, 0.0
  %v1453 = vmax.f32 %v1405, 0.0
  %v1454 = vmax.f32 %v1406, 0.0
  %v1455 = vmax.f32 %v1407, 0.0
  %v1456 = vmax.f32 %v1408, 0.0
  %v1457 = vmax.f32 %v1409, 0.0
  %v1458 = vmax.f32 %v1410, 0.0
  %v1459 = vmax.f32 %v1411, 0.0
  %v1460 = vmax.f32 %v1412, 0.0
  %v1461 = vmax.f32 %v1413, 0.0
  %v1462 = vmax.f32 %v1414, 0.0
  %v1463 = vmax.f32 %v1415, 0.0
  %v1464 = vmax.f32 %v1416, 0.0
  %v1465 = vmax.f32 %v1417, 0.0
  %v1466 = vmax.f32 %v1418, 0.0
  %v1467 = vmax.f32 %v1419, 0.0
  %v1468 = vmax.f32 %v1420, 0.0
  %v1469 = vmax.f32 %v1421, 0.0
  %v1470 = vmax.f32 %v1422, 0.0
  %v1471 = vmax.f32 %v1423, 0.0
  %v1472 = vmax.f32 %v1424, 0.0
  %v1473 = vmax.f32 %v1425, 0.0
  %v1474 = vmax.f32 %v1426, 0.0
  %v1475 = vmax.f32 %v1427, 0.0
  %v1476 = vmax.f32 %v1428, 0.0
  %v1477 = vmax.f32 %v1429, 0.0
  %v1478 = vmax.f32 %v1430, 0.0
  %v1479 = vmax.f32 %v1431, 0.0
  %v1480 = vmax.f32 %v1432, 0.0
  %1529 = vrot.lane.b32.xlu0 %v1433, 118
  %v1530 = vpop.permute.xlu0 %1529
  %1531 = vrot.lane.b32.xlu0 %v1434, 118
  %v1532 = vpop.permute.xlu0 %1531
  %1533 = vrot.lane.b32.xlu0 %v1435, 118
  %v1534 = vpop.permute.xlu0 %1533
  %1535 = vrot.lane.b32.xlu0 %v1436, 118
  %v1536 = vpop.permute.xlu0 %1535
  %1537 = vrot.lane.b32.xlu0 %v1437, 118
  %v1538 = vpop.permute.xlu0 %1537
  %1539 = vrot.lane.b32.xlu0 %v1438, 118
  %v1540 = vpop.permute.xlu0 %1539
  %1541 = vrot.lane.b32.xlu0 %v1439, 118
  %v1542 = vpop.permute.xlu0 %1541
  %1543 = vrot.lane.b32.xlu0 %v1440, 118
  %v1544 = vpop.permute.xlu0 %1543
  %1545 = vrot.lane.b32.xlu0 %v1441, 118
  %v1546 = vpop.permute.xlu0 %1545
  %1547 = vrot.lane.b32.xlu0 %v1442, 118
  %v1548 = vpop.permute.xlu0 %1547
  %1549 = vrot.lane.b32.xlu0 %v1443, 118
  %v1550 = vpop.permute.xlu0 %1549
  %1551 = vrot.lane.b32.xlu0 %v1444, 118
  %v1552 = vpop.permute.xlu0 %1551
  %1553 = vrot.lane.b32.xlu0 %v1445, 118
  %v1554 = vpop.permute.xlu0 %1553
  %1555 = vrot.lane.b32.xlu0 %v1446, 118
  %v1556 = vpop.permute.xlu0 %1555
  %1557 = vrot.lane.b32.xlu0 %v1447, 118
  %v1558 = vpop.permute.xlu0 %1557
  %1559 = vrot.lane.b32.xlu0 %v1448, 118
  %v1560 = vpop.permute.xlu0 %1559
  %1561 = vrot.lane.b32.xlu0 %v1449, 118
  %v1562 = vpop.permute.xlu0 %1561
  %1563 = vrot.lane.b32.xlu0 %v1450, 118
  %v1564 = vpop.permute.xlu0 %1563
  %1565 = vrot.lane.b32.xlu0 %v1451, 118
  %v1566 = vpop.permute.xlu0 %1565
  %1567 = vrot.lane.b32.xlu0 %v1452, 118
  %v1568 = vpop.permute.xlu0 %1567
  %1569 = vrot.lane.b32.xlu0 %v1453, 118
  %v1570 = vpop.permute.xlu0 %1569
  %1571 = vrot.lane.b32.xlu0 %v1454, 118
  %v1572 = vpop.permute.xlu0 %1571
  %1573 = vrot.lane.b32.xlu0 %v1455, 118
  %v1574 = vpop.permute.xlu0 %1573
  %1575 = vrot.lane.b32.xlu0 %v1456, 118
  %v1576 = vpop.permute.xlu0 %1575
  %1577 = vrot.lane.b32.xlu0 %v1457, 118
  %v1578 = vpop.permute.xlu0 %1577
  %1579 = vrot.lane.b32.xlu0 %v1458, 118
  %v1580 = vpop.permute.xlu0 %1579
  %1581 = vrot.lane.b32.xlu0 %v1459, 118
  %v1582 = vpop.permute.xlu0 %1581
  %1583 = vrot.lane.b32.xlu0 %v1460, 118
  %v1584 = vpop.permute.xlu0 %1583
  %1585 = vrot.lane.b32.xlu0 %v1461, 118
  %v1586 = vpop.permute.xlu0 %1585
  %1587 = vrot.lane.b32.xlu0 %v1462, 118
  %v1588 = vpop.permute.xlu0 %1587
  %1589 = vrot.lane.b32.xlu0 %v1463, 118
  %v1590 = vpop.permute.xlu0 %1589
  %1591 = vrot.lane.b32.xlu0 %v1464, 118
  %v1592 = vpop.permute.xlu0 %1591
  %1593 = vrot.lane.b32.xlu0 %v1465, 118
  %v1594 = vpop.permute.xlu0 %1593
  %1595 = vrot.lane.b32.xlu0 %v1466, 118
  %v1596 = vpop.permute.xlu0 %1595
  %1597 = vrot.lane.b32.xlu0 %v1467, 118
  %v1598 = vpop.permute.xlu0 %1597
  %1599 = vrot.lane.b32.xlu0 %v1468, 118
  %v1600 = vpop.permute.xlu0 %1599
  %1601 = vrot.lane.b32.xlu0 %v1469, 118
  %v1602 = vpop.permute.xlu0 %1601
  %1603 = vrot.lane.b32.xlu0 %v1470, 118
  %v1604 = vpop.permute.xlu0 %1603
  %1605 = vrot.lane.b32.xlu0 %v1471, 118
  %v1606 = vpop.permute.xlu0 %1605
  %1607 = vrot.lane.b32.xlu0 %v1472, 118
  %v1608 = vpop.permute.xlu0 %1607
  %1609 = vrot.lane.b32.xlu0 %v1473, 118
  %v1610 = vpop.permute.xlu0 %1609
  %1611 = vrot.lane.b32.xlu0 %v1474, 118
  %v1612 = vpop.permute.xlu0 %1611
  %1613 = vrot.lane.b32.xlu0 %v1475, 118
  %v1614 = vpop.permute.xlu0 %1613
  %1615 = vrot.lane.b32.xlu0 %v1476, 118
  %v1616 = vpop.permute.xlu0 %1615
  %1617 = vrot.lane.b32.xlu0 %v1477, 118
  %v1618 = vpop.permute.xlu0 %1617
  %1619 = vrot.lane.b32.xlu0 %v1478, 118
  %v1620 = vpop.permute.xlu0 %1619
  %1621 = vrot.lane.b32.xlu0 %v1479, 118
  %v1622 = vpop.permute.xlu0 %1621
  %1623 = vrot.lane.b32.xlu0 %v1480, 118
  %v1624 = vpop.permute.xlu0 %1623
  %vm1625 = vcmask 965632
  %v1626 = vsel %vm1625, %v1530, %v1532
  %v1627 = vsel %vm1625, %v1534, %v1536
  %v1628 = vsel %vm1625, %v1538, %v1540
  %v1629 = vsel %vm1625, %v1542, %v1544
  %v1630 = vsel %vm1625, %v1546, %v1548
  %v1631 = vsel %vm1625, %v1550, %v1552
  %v1632 = vsel %vm1625, %v1554, %v1556
  %v1633 = vsel %vm1625, %v1558, %v1560
  %v1634 = vsel %vm1625, %v1562, %v1564
  %v1635 = vsel %vm1625, %v1566, %v1568
  %v1636 = vsel %vm1625, %v1570, %v1572
  %v1637 = vsel %vm1625, %v1574, %v1576
  %v1638 = vsel %vm1625, %v1578, %v1580
  %v1639 = vsel %vm1625, %v1582, %v1584
  %v1640 = vsel %vm1625, %v1586, %v1588
  %v1641 = vsel %vm1625, %v1590, %v1592
  %v1642 = vsel %vm1625, %v1594, %v1596
  %v1643 = vsel %vm1625, %v1598, %v1600
  %v1644 = vsel %vm1625, %v1602, %v1604
  %v1645 = vsel %vm1625, %v1606, %v1608
  %v1646 = vsel %vm1625, %v1610, %v1612
  %v1647 = vsel %vm1625, %v1614, %v1616
  %v1648 = vsel %vm1625, %v1618, %v1620
  %v1649 = vsel %vm1625, %v1622, %v1624
  %v1698 = vmax.f32 %v1433, %v1626
  %v1699 = vmax.f32 %v1434, %v1532
  %v1700 = vmax.f32 %v1435, %v1627
  %v1701 = vmax.f32 %v1436, %v1536
  %v1702 = vmax.f32 %v1437, %v1628
  %v1703 = vmax.f32 %v1438, %v1540
  %v1704 = vmax.f32 %v1439, %v1629
  %v1705 = vmax.f32 %v1440, %v1544
  %v1706 = vmax.f32 %v1441, %v1630
  %v1707 = vmax.f32 %v1442, %v1548
  %v1708 = vmax.f32 %v1443, %v1631
  %v1709 = vmax.f32 %v1444, %v1552
  %v1710 = vmax.f32 %v1445, %v1632
  %v1711 = vmax.f32 %v1446, %v1556
  %v1712 = vmax.f32 %v1447, %v1633
  %v1713 = vmax.f32 %v1448, %v1560
  %v1714 = vmax.f32 %v1449, %v1634
  %v1715 = vmax.f32 %v1450, %v1564
  %v1716 = vmax.f32 %v1451, %v1635
  %v1717 = vmax.f32 %v1452, %v1568
  %v1718 = vmax.f32 %v1453, %v1636
  %v1719 = vmax.f32 %v1454, %v1572
  %v1720 = vmax.f32 %v1455, %v1637
  %v1721 = vmax.f32 %v1456, %v1576
  %v1722 = vmax.f32 %v1457, %v1638
  %v1723 = vmax.f32 %v1458, %v1580
  %v1724 = vmax.f32 %v1459, %v1639
  %v1725 = vmax.f32 %v1460, %v1584
  %v1726 = vmax.f32 %v1461, %v1640
  %v1727 = vmax.f32 %v1462, %v1588
  %v1728 = vmax.f32 %v1463, %v1641
  %v1729 = vmax.f32 %v1464, %v1592
  %v1730 = vmax.f32 %v1465, %v1642
  %v1731 = vmax.f32 %v1466, %v1596
  %v1732 = vmax.f32 %v1467, %v1643
  %v1733 = vmax.f32 %v1468, %v1600
  %v1734 = vmax.f32 %v1469, %v1644
  %v1735 = vmax.f32 %v1470, %v1604
  %v1736 = vmax.f32 %v1471, %v1645
  %v1737 = vmax.f32 %v1472, %v1608
  %v1738 = vmax.f32 %v1473, %v1646
  %v1739 = vmax.f32 %v1474, %v1612
  %v1740 = vmax.f32 %v1475, %v1647
  %v1741 = vmax.f32 %v1476, %v1616
  %v1742 = vmax.f32 %v1477, %v1648
  %v1743 = vmax.f32 %v1478, %v1620
  %v1744 = vmax.f32 %v1479, %v1649
  %v1745 = vmax.f32 %v1480, %v1624
  %vm1794 = vcmask 1046528
  %v1795 = vrot.slane %v1698, 1
  %v1796 = vrot.slane %v1700, 1
  %v1797 = vsel %vm1794, %v1795, %v1796
  %v1798 = vrot.slane %v1699, 1
  %v1799 = vrot.slane %v1701, 1
  %v1800 = vsel %vm1794, %v1798, %v1799
  %v1801 = vrot.slane %v1702, 1
  %v1802 = vsel %vm1794, %v1796, %v1801
  %v1803 = vrot.slane %v1703, 1
  %v1804 = vsel %vm1794, %v1799, %v1803
  %v1805 = vrot.slane %v1704, 1
  %v1806 = vsel %vm1794, %v1801, %v1805
  %v1807 = vrot.slane %v1705, 1
  %v1808 = vsel %vm1794, %v1803, %v1807
  %v1809 = vrot.slane %v1706, 1
  %v1810 = vsel %vm1794, %v1805, %v1809
  %v1811 = vrot.slane %v1707, 1
  %v1812 = vsel %vm1794, %v1807, %v1811
  %v1813 = vrot.slane %v1708, 1
  %v1814 = vsel %vm1794, %v1809, %v1813
  %v1815 = vrot.slane %v1709, 1
  %v1816 = vsel %vm1794, %v1811, %v1815
  %v1817 = vrot.slane %v1710, 1
  %v1818 = vsel %vm1794, %v1813, %v1817
  %v1819 = vrot.slane %v1711, 1
  %v1820 = vsel %vm1794, %v1815, %v1819
  %v1821 = vrot.slane %v1712, 1
  %v1822 = vsel %vm1794, %v1817, %v1821
  %v1823 = vrot.slane %v1713, 1
  %v1824 = vsel %vm1794, %v1819, %v1823
  %v1825 = vrot.slane %v1714, 1
  %v1826 = vsel %vm1794, %v1821, %v1825
  %v1827 = vrot.slane %v1715, 1
  %v1828 = vsel %vm1794, %v1823, %v1827
  %v1829 = vrot.slane %v1716, 1
  %v1830 = vsel %vm1794, %v1825, %v1829
  %v1831 = vrot.slane %v1717, 1
  %v1832 = vsel %vm1794, %v1827, %v1831
  %v1833 = vrot.slane %v1718, 1
  %v1834 = vsel %vm1794, %v1829, %v1833
  %v1835 = vrot.slane %v1719, 1
  %v1836 = vsel %vm1794, %v1831, %v1835
  %v1837 = vrot.slane %v1720, 1
  %v1838 = vsel %vm1794, %v1833, %v1837
  %v1839 = vrot.slane %v1721, 1
  %v1840 = vsel %vm1794, %v1835, %v1839
  %v1841 = vrot.slane %v1722, 1
  %v1842 = vsel %vm1794, %v1837, %v1841
  %v1843 = vrot.slane %v1723, 1
  %v1844 = vsel %vm1794, %v1839, %v1843
  %v1845 = vrot.slane %v1724, 1
  %v1846 = vsel %vm1794, %v1841, %v1845
  %v1847 = vrot.slane %v1725, 1
  %v1848 = vsel %vm1794, %v1843, %v1847
  %v1849 = vrot.slane %v1726, 1
  %v1850 = vsel %vm1794, %v1845, %v1849
  %v1851 = vrot.slane %v1727, 1
  %v1852 = vsel %vm1794, %v1847, %v1851
  %v1853 = vrot.slane %v1728, 1
  %v1854 = vsel %vm1794, %v1849, %v1853
  %v1855 = vrot.slane %v1729, 1
  %v1856 = vsel %vm1794, %v1851, %v1855
  %v1857 = vrot.slane %v1730, 1
  %v1858 = vsel %vm1794, %v1853, %v1857
  %v1859 = vrot.slane %v1731, 1
  %v1860 = vsel %vm1794, %v1855, %v1859
  %v1861 = vrot.slane %v1732, 1
  %v1862 = vsel %vm1794, %v1857, %v1861
  %v1863 = vrot.slane %v1733, 1
  %v1864 = vsel %vm1794, %v1859, %v1863
  %v1865 = vrot.slane %v1734, 1
  %v1866 = vsel %vm1794, %v1861, %v1865
  %v1867 = vrot.slane %v1735, 1
  %v1868 = vsel %vm1794, %v1863, %v1867
  %v1869 = vrot.slane %v1736, 1
  %v1870 = vsel %vm1794, %v1865, %v1869
  %v1871 = vrot.slane %v1737, 1
  %v1872 = vsel %vm1794, %v1867, %v1871
  %v1873 = vrot.slane %v1738, 1
  %v1874 = vsel %vm1794, %v1869, %v1873
  %v1875 = vrot.slane %v1739, 1
  %v1876 = vsel %vm1794, %v1871, %v1875
  %v1877 = vrot.slane %v1740, 1
  %v1878 = vsel %vm1794, %v1873, %v1877
  %v1879 = vrot.slane %v1741, 1
  %v1880 = vsel %vm1794, %v1875, %v1879
  %v1881 = vrot.slane %v1742, 1
  %v1882 = vsel %vm1794, %v1877, %v1881
  %v1883 = vrot.slane %v1743, 1
  %v1884 = vsel %vm1794, %v1879, %v1883
  %v1885 = vrot.slane %v1744, 1
  %v1886 = vsel %vm1794, %v1881, %v1885
  %v1887 = vrot.slane %v1745, 1
  %v1888 = vsel %vm1794, %v1883, %v1887
  %v1937 = vmax.f32 %v1698, %v1797
  %v1938 = vmax.f32 %v1699, %v1800
  %v1939 = vmax.f32 %v1700, %v1802
  %v1940 = vmax.f32 %v1701, %v1804
  %v1941 = vmax.f32 %v1702, %v1806
  %v1942 = vmax.f32 %v1703, %v1808
  %v1943 = vmax.f32 %v1704, %v1810
  %v1944 = vmax.f32 %v1705, %v1812
  %v1945 = vmax.f32 %v1706, %v1814
  %v1946 = vmax.f32 %v1707, %v1816
  %v1947 = vmax.f32 %v1708, %v1818
  %v1948 = vmax.f32 %v1709, %v1820
  %v1949 = vmax.f32 %v1710, %v1822
  %v1950 = vmax.f32 %v1711, %v1824
  %v1951 = vmax.f32 %v1712, %v1826
  %v1952 = vmax.f32 %v1713, %v1828
  %v1953 = vmax.f32 %v1714, %v1830
  %v1954 = vmax.f32 %v1715, %v1832
  %v1955 = vmax.f32 %v1716, %v1834
  %v1956 = vmax.f32 %v1717, %v1836
  %v1957 = vmax.f32 %v1718, %v1838
  %v1958 = vmax.f32 %v1719, %v1840
  %v1959 = vmax.f32 %v1720, %v1842
  %v1960 = vmax.f32 %v1721, %v1844
  %v1961 = vmax.f32 %v1722, %v1846
  %v1962 = vmax.f32 %v1723, %v1848
  %v1963 = vmax.f32 %v1724, %v1850
  %v1964 = vmax.f32 %v1725, %v1852
  %v1965 = vmax.f32 %v1726, %v1854
  %v1966 = vmax.f32 %v1727, %v1856
  %v1967 = vmax.f32 %v1728, %v1858
  %v1968 = vmax.f32 %v1729, %v1860
  %v1969 = vmax.f32 %v1730, %v1862
  %v1970 = vmax.f32 %v1731, %v1864
  %v1971 = vmax.f32 %v1732, %v1866
  %v1972 = vmax.f32 %v1733, %v1868
  %v1973 = vmax.f32 %v1734, %v1870
  %v1974 = vmax.f32 %v1735, %v1872
  %v1975 = vmax.f32 %v1736, %v1874
  %v1976 = vmax.f32 %v1737, %v1876
  %v1977 = vmax.f32 %v1738, %v1878
  %v1978 = vmax.f32 %v1739, %v1880
  %v1979 = vmax.f32 %v1740, %v1882
  %v1980 = vmax.f32 %v1741, %v1884
  %v1981 = vmax.f32 %v1742, %v1886
  %v1982 = vmax.f32 %v1743, %v1888
  %v1983 = vmax.f32 %v1744, %v1885
  %v1984 = vmax.f32 %v1745, %v1887
  %v1985 = vpack.c.bf16 %v1939, %v1937
  %v1986 = vpack.c.bf16 %v1940, %v1938
  %v1987 = vpack.c.bf16 %v1943, %v1941
  %v1988 = vpack.c.bf16 %v1944, %v1942
  %v1989 = vpack.c.bf16 %v1947, %v1945
  %v1990 = vpack.c.bf16 %v1948, %v1946
  %v1991 = vpack.c.bf16 %v1951, %v1949
  %v1992 = vpack.c.bf16 %v1952, %v1950
  %v1993 = vpack.c.bf16 %v1955, %v1953
  %v1994 = vpack.c.bf16 %v1956, %v1954
  %v1995 = vpack.c.bf16 %v1959, %v1957
  %v1996 = vpack.c.bf16 %v1960, %v1958
  %v1997 = vpack.c.bf16 %v1963, %v1961
  %v1998 = vpack.c.bf16 %v1964, %v1962
  %v1999 = vpack.c.bf16 %v1967, %v1965
  %v2000 = vpack.c.bf16 %v1968, %v1966
  %v2001 = vpack.c.bf16 %v1971, %v1969
  %v2002 = vpack.c.bf16 %v1972, %v1970
  %v2003 = vpack.c.bf16 %v1975, %v1973
  %v2004 = vpack.c.bf16 %v1976, %v1974
  %v2005 = vpack.c.bf16 %v1979, %v1977
  %v2006 = vpack.c.bf16 %v1980, %v1978
  %v2007 = vpack.c.bf16 %v1983, %v1981
  %v2008 = vpack.c.bf16 %v1984, %v1982
  %v2009 = vld [vmem:[%s3] sm:$0xff]
  %v2010 = vld [vmem:[%s3 + $0x8] sm:$0xff]
  %v2011 = vld [vmem:[%s3 + $0x10] sm:$0xff]
  %v2012 = vld [vmem:[%s3 + $0x18] sm:$0xff]
  %v2013 = vld [vmem:[%s3 + $0x20] sm:$0xff]
  %v2014 = vld [vmem:[%s3 + $0x28] sm:$0xff]
  %v2015 = vld [vmem:[%s3 + $0x30] sm:$0xff]
  %v2016 = vld [vmem:[%s3 + $0x38] sm:$0xff]
  %v2017 = vld [vmem:[%s3 + $0x40] sm:$0xff]
  %v2018 = vld [vmem:[%s3 + $0x48] sm:$0xff]
  %v2019 = vld [vmem:[%s3 + $0x50] sm:$0xff]
  %v2020 = vld [vmem:[%s3 + $0x58] sm:$0xff]
  %v2033 = vunpack.c.l.b16 %v2009
  %v2034 = vunpack.c.h.b16 %v2009
  %v2035 = vunpack.c.l.b16 %v2010
  %v2036 = vunpack.c.h.b16 %v2010
  %v2037 = vunpack.c.l.b16 %v2011
  %v2038 = vunpack.c.h.b16 %v2011
  %v2039 = vunpack.c.l.b16 %v2012
  %v2040 = vunpack.c.h.b16 %v2012
  %v2041 = vunpack.c.l.b16 %v2013
  %v2042 = vunpack.c.h.b16 %v2013
  %v2043 = vunpack.c.l.b16 %v2014
  %v2044 = vunpack.c.h.b16 %v2014
  %v2045 = vunpack.c.l.b16 %v2015
  %v2046 = vunpack.c.h.b16 %v2015
  %v2047 = vunpack.c.l.b16 %v2016
  %v2048 = vunpack.c.h.b16 %v2016
  %v2049 = vunpack.c.l.b16 %v2017
  %v2050 = vunpack.c.h.b16 %v2017
  %v2051 = vunpack.c.l.b16 %v2018
  %v2052 = vunpack.c.h.b16 %v2018
  %v2053 = vunpack.c.l.b16 %v2019
  %v2054 = vunpack.c.h.b16 %v2019
  %v2055 = vunpack.c.l.b16 %v2020
  %v2056 = vunpack.c.h.b16 %v2020
  %v2057 = vpack.c.b16 %v2035, %v2033
  %v2058 = vpack.c.b16 %v2036, %v2034
  %v2059 = vpack.c.b16 %v2039, %v2037
  %v2060 = vpack.c.b16 %v2040, %v2038
  %v2061 = vpack.c.b16 %v2043, %v2041
  %v2062 = vpack.c.b16 %v2044, %v2042
  %v2063 = vpack.c.b16 %v2047, %v2045
  %v2064 = vpack.c.b16 %v2048, %v2046
  %v2065 = vpack.c.b16 %v2051, %v2049
  %v2066 = vpack.c.b16 %v2052, %v2050
  %v2067 = vpack.c.b16 %v2055, %v2053
  %v2068 = vpack.c.b16 %v2056, %v2054
  %vm2075 = vcmask 515072
  %v2077 = vsel %vm2075, %v2058, 0
  %v2080 = vsel %vm2075, %v2060, 0
  %v2083 = vsel %vm2075, %v2062, 0
  %v2086 = vsel %vm2075, %v2064, 0
  %v2089 = vsel %vm2075, %v2066, 0
  %v2092 = vsel %vm2075, %v2068, 0
  %vm2094 = vcmask 1047552
  %v2095 = vsel %vm1794, 4294967295, 65535
  %v2096 = vsel %vm2094, %v2095, 0
  %v2098 = vand.u32 %v2007, %v2096
  %v2101 = vand.u32 %v2008, %v2096
  %2103 = vmatpush.bf16.msra.mxu0 %v1999
  %2104 = vmatpush.bf16.msra.mxu0 %v1997
  %2105 = vmatpush.bf16.msra.mxu0 %v1995
  %2106 = vmatpush.bf16.msra.mxu0 %v1993
  %2107 = vmatpush.bf16.msra.mxu0 %v1991
  %2108 = vmatpush.bf16.msra.mxu0 %v1989
  %2109 = vmatpush.bf16.msra.mxu0 %v1987
  %2110 = vmatpush.bf16.msra.mxu0 %v1985
  %2111 = vmatmul.bf16.gmra.mxu0 %v2057
  %v2112 = vpop.f32.mrf.mxu0
  %v2113 = vadd.f32 0.0, %v2112
  %v2114 = vpop.f32.mrf.mxu0
  %v2115 = vadd.f32 0.0, %v2114
  %2116 = vmatmul.bf16.gmra.mxu0 %v2059
  %v2117 = vpop.f32.mrf.mxu0
  %v2118 = vadd.f32 0.0, %v2117
  %v2119 = vpop.f32.mrf.mxu0
  %v2120 = vadd.f32 0.0, %v2119
  %2121 = vmatmul.bf16.gmra.mxu0 %v2061
  %v2122 = vpop.f32.mrf.mxu0
  %v2123 = vadd.f32 0.0, %v2122
  %v2124 = vpop.f32.mrf.mxu0
  %v2125 = vadd.f32 0.0, %v2124
  %2126 = vmatmul.bf16.gmra.mxu0 %v2063
  %v2127 = vpop.f32.mrf.mxu0
  %v2128 = vadd.f32 0.0, %v2127
  %v2129 = vpop.f32.mrf.mxu0
  %v2130 = vadd.f32 0.0, %v2129
  %2131 = vmatmul.bf16.gmra.mxu0 %v2065
  %v2132 = vpop.f32.mrf.mxu0
  %v2133 = vadd.f32 0.0, %v2132
  %v2134 = vpop.f32.mrf.mxu0
  %v2135 = vadd.f32 0.0, %v2134
  %2136 = vmatmul.bf16.gmra.mxu0 %v2067
  %v2137 = vpop.f32.mrf.mxu0
  %v2138 = vadd.f32 0.0, %v2137
  %v2139 = vpop.f32.mrf.mxu0
  %v2140 = vadd.f32 0.0, %v2139
  %2141 = vdwg.mxu0
  %2142 = vmatpush.bf16.msra.mxu0 0
  %2143 = vmatpush.bf16.msra.mxu0 0
  %2144 = vmatpush.bf16.msra.mxu0 0
  %2145 = vmatpush.bf16.msra.mxu0 0
  %2146 = vmatpush.bf16.msra.mxu0 %v2098
  %2147 = vmatpush.bf16.msra.mxu0 %v2005
  %2148 = vmatpush.bf16.msra.mxu0 %v2003
  %2149 = vmatpush.bf16.msra.mxu0 %v2001
  %2150 = vmatmul.bf16.gmra.mxu0 %v2077
  %v2151 = vpop.f32.mrf.mxu0
  %v2152 = vadd.f32 %v2113, %v2151
  %v2153 = vpop.f32.mrf.mxu0
  %v2154 = vadd.f32 %v2115, %v2153
  %2155 = vmatmul.bf16.gmra.mxu0 %v2080
  %v2156 = vpop.f32.mrf.mxu0
  %v2157 = vadd.f32 %v2118, %v2156
  %v2158 = vpop.f32.mrf.mxu0
  %v2159 = vadd.f32 %v2120, %v2158
  %2160 = vmatmul.bf16.gmra.mxu0 %v2083
  %v2161 = vpop.f32.mrf.mxu0
  %v2162 = vadd.f32 %v2123, %v2161
  %v2163 = vpop.f32.mrf.mxu0
  %v2164 = vadd.f32 %v2125, %v2163
  %2165 = vmatmul.bf16.gmra.mxu0 %v2086
  %v2166 = vpop.f32.mrf.mxu0
  %v2167 = vadd.f32 %v2128, %v2166
  %v2168 = vpop.f32.mrf.mxu0
  %v2169 = vadd.f32 %v2130, %v2168
  %2170 = vmatmul.bf16.gmra.mxu0 %v2089
  %v2171 = vpop.f32.mrf.mxu0
  %v2172 = vadd.f32 %v2133, %v2171
  %v2173 = vpop.f32.mrf.mxu0
  %v2174 = vadd.f32 %v2135, %v2173
  %2175 = vmatmul.bf16.gmra.mxu0 %v2092
  %v2176 = vpop.f32.mrf.mxu0
  %v2177 = vadd.f32 %v2138, %v2176
  %v2178 = vpop.f32.mrf.mxu0
  %v2179 = vadd.f32 %v2140, %v2178
  %2180 = vdwg.mxu0
  %2181 = vmatpush.bf16.msra.mxu0 %v2000
  %2182 = vmatpush.bf16.msra.mxu0 %v1998
  %2183 = vmatpush.bf16.msra.mxu0 %v1996
  %2184 = vmatpush.bf16.msra.mxu0 %v1994
  %2185 = vmatpush.bf16.msra.mxu0 %v1992
  %2186 = vmatpush.bf16.msra.mxu0 %v1990
  %2187 = vmatpush.bf16.msra.mxu0 %v1988
  %2188 = vmatpush.bf16.msra.mxu0 %v1986
  %2189 = vmatmul.bf16.gmra.mxu0 %v2057
  %v2190 = vpop.f32.mrf.mxu0
  %v2191 = vadd.f32 0.0, %v2190
  %v2192 = vpop.f32.mrf.mxu0
  %v2193 = vadd.f32 0.0, %v2192
  %2194 = vmatmul.bf16.gmra.mxu0 %v2059
  %v2195 = vpop.f32.mrf.mxu0
  %v2196 = vadd.f32 0.0, %v2195
  %v2197 = vpop.f32.mrf.mxu0
  %v2198 = vadd.f32 0.0, %v2197
  %2199 = vmatmul.bf16.gmra.mxu0 %v2061
  %v2200 = vpop.f32.mrf.mxu0
  %v2201 = vadd.f32 0.0, %v2200
  %v2202 = vpop.f32.mrf.mxu0
  %v2203 = vadd.f32 0.0, %v2202
  %2204 = vmatmul.bf16.gmra.mxu0 %v2063
  %v2205 = vpop.f32.mrf.mxu0
  %v2206 = vadd.f32 0.0, %v2205
  %v2207 = vpop.f32.mrf.mxu0
  %v2208 = vadd.f32 0.0, %v2207
  %2209 = vmatmul.bf16.gmra.mxu0 %v2065
  %v2210 = vpop.f32.mrf.mxu0
  %v2211 = vadd.f32 0.0, %v2210
  %v2212 = vpop.f32.mrf.mxu0
  %v2213 = vadd.f32 0.0, %v2212
  %2214 = vmatmul.bf16.gmra.mxu0 %v2067
  %v2215 = vpop.f32.mrf.mxu0
  %v2216 = vadd.f32 0.0, %v2215
  %v2217 = vpop.f32.mrf.mxu0
  %v2218 = vadd.f32 0.0, %v2217
  %2219 = vdwg.mxu0
  %2220 = vmatpush.bf16.msra.mxu0 0
  %2221 = vmatpush.bf16.msra.mxu0 0
  %2222 = vmatpush.bf16.msra.mxu0 0
  %2223 = vmatpush.bf16.msra.mxu0 0
  %2224 = vmatpush.bf16.msra.mxu0 %v2101
  %2225 = vmatpush.bf16.msra.mxu0 %v2006
  %2226 = vmatpush.bf16.msra.mxu0 %v2004
  %2227 = vmatpush.bf16.msra.mxu0 %v2002
  %2228 = vmatmul.bf16.gmra.mxu0 %v2077
  %v2229 = vpop.f32.mrf.mxu0
  %v2230 = vadd.f32 %v2191, %v2229
  %v2231 = vpop.f32.mrf.mxu0
  %v2232 = vadd.f32 %v2193, %v2231
  %2233 = vmatmul.bf16.gmra.mxu0 %v2080
  %v2234 = vpop.f32.mrf.mxu0
  %v2235 = vadd.f32 %v2196, %v2234
  %v2236 = vpop.f32.mrf.mxu0
  %v2237 = vadd.f32 %v2198, %v2236
  %2238 = vmatmul.bf16.gmra.mxu0 %v2083
  %v2239 = vpop.f32.mrf.mxu0
  %v2240 = vadd.f32 %v2201, %v2239
  %v2241 = vpop.f32.mrf.mxu0
  %v2242 = vadd.f32 %v2203, %v2241
  %2243 = vmatmul.bf16.gmra.mxu0 %v2086
  %v2244 = vpop.f32.mrf.mxu0
  %v2245 = vadd.f32 %v2206, %v2244
  %v2246 = vpop.f32.mrf.mxu0
  %v2247 = vadd.f32 %v2208, %v2246
  %2248 = vmatmul.bf16.gmra.mxu0 %v2089
  %v2249 = vpop.f32.mrf.mxu0
  %v2250 = vadd.f32 %v2211, %v2249
  %v2251 = vpop.f32.mrf.mxu0
  %v2252 = vadd.f32 %v2213, %v2251
  %2253 = vmatmul.bf16.gmra.mxu0 %v2092
  %v2254 = vpop.f32.mrf.mxu0
  %v2255 = vadd.f32 %v2216, %v2254
  %v2256 = vpop.f32.mrf.mxu0
  %v2257 = vadd.f32 %v2218, %v2256
  %2258 = vdwg.mxu0
  %v2283 = vrot.slane %v2230, 4
  %v2284 = vrot.slane %v2232, 4
  %v2285 = vrot.slane %v2235, 4
  %v2286 = vrot.slane %v2237, 4
  %v2287 = vrot.slane %v2240, 4
  %v2288 = vrot.slane %v2242, 4
  %v2289 = vrot.slane %v2245, 4
  %v2290 = vrot.slane %v2247, 4
  %v2291 = vrot.slane %v2250, 4
  %v2292 = vrot.slane %v2252, 4
  %v2293 = vrot.slane %v2255, 4
  %v2294 = vrot.slane %v2257, 4
  %vm2295 = vcmask 1043456
  %v2296 = vsel %vm2295, %v2152, %v2283
  %v2297 = vsel %vm2295, %v2283, %v2152
  %v2298 = vrot.slane %v2297, 4
  %v2299 = vsel %vm2295, %v2154, %v2284
  %v2300 = vsel %vm2295, %v2284, %v2154
  %v2301 = vrot.slane %v2300, 4
  %v2302 = vsel %vm2295, %v2157, %v2285
  %v2303 = vsel %vm2295, %v2285, %v2157
  %v2304 = vrot.slane %v2303, 4
  %v2305 = vsel %vm2295, %v2159, %v2286
  %v2306 = vsel %vm2295, %v2286, %v2159
  %v2307 = vrot.slane %v2306, 4
  %v2308 = vsel %vm2295, %v2162, %v2287
  %v2309 = vsel %vm2295, %v2287, %v2162
  %v2310 = vrot.slane %v2309, 4
  %v2311 = vsel %vm2295, %v2164, %v2288
  %v2312 = vsel %vm2295, %v2288, %v2164
  %v2313 = vrot.slane %v2312, 4
  %v2314 = vsel %vm2295, %v2167, %v2289
  %v2315 = vsel %vm2295, %v2289, %v2167
  %v2316 = vrot.slane %v2315, 4
  %v2317 = vsel %vm2295, %v2169, %v2290
  %v2318 = vsel %vm2295, %v2290, %v2169
  %v2319 = vrot.slane %v2318, 4
  %v2320 = vsel %vm2295, %v2172, %v2291
  %v2321 = vsel %vm2295, %v2291, %v2172
  %v2322 = vrot.slane %v2321, 4
  %v2323 = vsel %vm2295, %v2174, %v2292
  %v2324 = vsel %vm2295, %v2292, %v2174
  %v2325 = vrot.slane %v2324, 4
  %v2326 = vsel %vm2295, %v2177, %v2293
  %v2327 = vsel %vm2295, %v2293, %v2177
  %v2328 = vrot.slane %v2327, 4
  %v2329 = vsel %vm2295, %v2179, %v2294
  %v2330 = vsel %vm2295, %v2294, %v2179
  %v2331 = vrot.slane %v2330, 4
  %2332 = vst [vmem:[#allocation1] ss:$2 sm:$0xff] %v2296
  %s2333 = scalar_lea.vmem [#allocation1], 1
  %2334 = vst [vmem:[%s2333] ss:$2 sm:$0xff] %v2298
  %s2335 = scalar_lea.vmem [#allocation1], 16
  %2336 = vst [vmem:[%s2335] ss:$2 sm:$0xff] %v2301
  %s2337 = scalar_lea.vmem [#allocation1], 17
  %2338 = vst [vmem:[%s2337] ss:$2 sm:$0xff] %v2302
  %s2339 = scalar_lea.vmem [#allocation1], 32
  %2340 = vst [vmem:[%s2339] ss:$2 sm:$0xff] %v2305
  %s2341 = scalar_lea.vmem [#allocation1], 33
  %2342 = vst [vmem:[%s2341] ss:$2 sm:$0xff] %v2307
  %s2343 = scalar_lea.vmem [#allocation1], 48
  %2344 = vst [vmem:[%s2343] ss:$2 sm:$0xff] %v2310
  %s2345 = scalar_lea.vmem [#allocation1], 49
  %2346 = vst [vmem:[%s2345] ss:$2 sm:$0xff] %v2311
  %v2347 = vld.sshfl [vmem:[#allocation1] sm:$0xff pattern:$0x75316420]
  %v2348 = vld.sshfl [vmem:[#allocation1 + $0x8] sm:$0xff pattern:$0x75316420]
  %v2349 = vld.sshfl [vmem:[#allocation1 + $0x10] sm:$0xff pattern:$0x75316420]
  %v2350 = vld.sshfl [vmem:[#allocation1 + $0x18] sm:$0xff pattern:$0x75316420]
  %v2351 = vld.sshfl [vmem:[#allocation1 + $0x20] sm:$0xff pattern:$0x75316420]
  %v2352 = vld.sshfl [vmem:[#allocation1 + $0x28] sm:$0xff pattern:$0x75316420]
  %v2353 = vld.sshfl [vmem:[#allocation1 + $0x30] sm:$0xff pattern:$0x75316420]
  %v2354 = vld.sshfl [vmem:[#allocation1 + $0x38] sm:$0xff pattern:$0x75316420]
  %2355 = vst [vmem:[#allocation1] ss:$2 sm:$0xff] %v2314
  %2356 = vst [vmem:[%s2333] ss:$2 sm:$0xff] %v2316
  %2357 = vst [vmem:[%s2335] ss:$2 sm:$0xff] %v2319
  %2358 = vst [vmem:[%s2337] ss:$2 sm:$0xff] %v2320
  %2359 = vst [vmem:[%s2339] ss:$2 sm:$0xff] %v2323
  %2360 = vst [vmem:[%s2341] ss:$2 sm:$0xff] %v2325
  %2361 = vst [vmem:[%s2343] ss:$2 sm:$0xff] %v2328
  %2362 = vst [vmem:[%s2345] ss:$2 sm:$0xff] %v2329
  %v2363 = vld.sshfl [vmem:[#allocation1] sm:$0xff pattern:$0x75316420]
  %v2364 = vld.sshfl [vmem:[#allocation1 + $0x8] sm:$0xff pattern:$0x75316420]
  %v2365 = vld.sshfl [vmem:[#allocation1 + $0x10] sm:$0xff pattern:$0x75316420]
  %v2366 = vld.sshfl [vmem:[#allocation1 + $0x18] sm:$0xff pattern:$0x75316420]
  %v2367 = vld.sshfl [vmem:[#allocation1 + $0x20] sm:$0xff pattern:$0x75316420]
  %v2368 = vld.sshfl [vmem:[#allocation1 + $0x28] sm:$0xff pattern:$0x75316420]
  %v2369 = vld.sshfl [vmem:[#allocation1 + $0x30] sm:$0xff pattern:$0x75316420]
  %v2370 = vld.sshfl [vmem:[#allocation1 + $0x38] sm:$0xff pattern:$0x75316420]
  %v2387 = vpack.c.bf16 %v2349, %v2347
  %v2388 = vpack.c.bf16 %v2350, %v2348
  %v2389 = vpack.c.bf16 %v2353, %v2351
  %v2390 = vpack.c.bf16 %v2354, %v2352
  %v2391 = vpack.c.bf16 %v2365, %v2363
  %v2392 = vpack.c.bf16 %v2366, %v2364
  %v2393 = vpack.c.bf16 %v2369, %v2367
  %v2394 = vpack.c.bf16 %v2370, %v2368
  %v2395 = vld [vmem:[%s4] sm:$0xff]
  %v2396 = vld [vmem:[%s4 + $0x8] sm:$0xff]
  %v2397 = vld [vmem:[%s4 + $0x10] sm:$0xff]
  %v2398 = vld [vmem:[%s4 + $0x18] sm:$0xff]
  %v2399 = vld [vmem:[%s4 + $0x20] sm:$0xff]
  %v2400 = vld [vmem:[%s4 + $0x28] sm:$0xff]
  %v2401 = vld [vmem:[%s4 + $0x30] sm:$0xff]
  %v2402 = vld [vmem:[%s4 + $0x38] sm:$0xff]
  %v2403 = vld [vmem:[%s4 + $0x40] sm:$0xff]
  %v2404 = vld [vmem:[%s4 + $0x48] sm:$0xff]
  %v2405 = vld [vmem:[%s4 + $0x50] sm:$0xff]
  %v2406 = vld [vmem:[%s4 + $0x58] sm:$0xff]
  %v2407 = vld [vmem:[%s4 + $0x60] sm:$0xff]
  %v2408 = vld [vmem:[%s4 + $0x68] sm:$0xff]
  %v2409 = vld [vmem:[%s4 + $0x70] sm:$0xff]
  %v2410 = vld [vmem:[%s4 + $0x78] sm:$0xff]
  %v2411 = vld [vmem:[%s4 + $0x80] sm:$0xff]
  %v2412 = vld [vmem:[%s4 + $0x88] sm:$0xff]
  %v2413 = vld [vmem:[%s4 + $0x90] sm:$0xff]
  %v2414 = vld [vmem:[%s4 + $0x98] sm:$0xff]
  %v2415 = vld [vmem:[%s4 + $0xa0] sm:$0xff]
  %v2416 = vld [vmem:[%s4 + $0xa8] sm:$0xff]
  %v2417 = vld [vmem:[%s4 + $0xb0] sm:$0xff]
  %v2418 = vld [vmem:[%s4 + $0xb8] sm:$0xff]
  %v2419 = vld [vmem:[%s4 + $0xc0] sm:$0xff]
  %v2420 = vld [vmem:[%s4 + $0xc8] sm:$0xff]
  %v2421 = vld [vmem:[%s4 + $0xd0] sm:$0xff]
  %v2422 = vld [vmem:[%s4 + $0xd8] sm:$0xff]
  %v2423 = vld [vmem:[%s4 + $0xe0] sm:$0x77]
  %vm2424 = vcmask 1042432
  %vm2425 = vcmask 1046532
  %vm2426 = vmor %vm2424, %vm2425
  %v2427 = vrot.slane %v2296, 5
  %v2428 = vrot.slane %v2427, 4
  %v2429 = vrot.slane %v2298, 5
  %v2430 = vsel %vm2426, %v2428, %v2429
  %v2431 = vrot.slane %v2429, 4
  %v2432 = vrot.slane %v2299, 5
  %v2433 = vsel %vm2426, %v2431, %v2432
  %v2434 = vrot.slane %v2301, 5
  %v2435 = vrot.slane %v2434, 4
  %v2436 = vrot.slane %v2302, 5
  %v2437 = vsel %vm2426, %v2435, %v2436
  %v2438 = vrot.slane %v2436, 4
  %v2439 = vrot.slane %v2304, 5
  %v2440 = vsel %vm2426, %v2438, %v2439
  %v2441 = vrot.slane %v2305, 5
  %v2442 = vrot.slane %v2441, 4
  %v2443 = vrot.slane %v2307, 5
  %v2444 = vsel %vm2426, %v2442, %v2443
  %v2445 = vrot.slane %v2443, 4
  %v2446 = vrot.slane %v2308, 5
  %v2447 = vsel %vm2426, %v2445, %v2446
  %v2448 = vrot.slane %v2310, 5
  %v2449 = vrot.slane %v2448, 4
  %v2450 = vrot.slane %v2311, 5
  %v2451 = vsel %vm2426, %v2449, %v2450
  %v2452 = vrot.slane %v2450, 4
  %v2453 = vrot.slane %v2313, 5
  %v2454 = vsel %vm2426, %v2452, %v2453
  %v2455 = vrot.slane %v2314, 5
  %v2456 = vrot.slane %v2455, 4
  %v2457 = vrot.slane %v2316, 5
  %v2458 = vsel %vm2426, %v2456, %v2457
  %v2459 = vrot.slane %v2457, 4
  %v2460 = vrot.slane %v2317, 5
  %v2461 = vsel %vm2426, %v2459, %v2460
  %v2462 = vrot.slane %v2319, 5
  %v2463 = vrot.slane %v2462, 4
  %v2464 = vrot.slane %v2320, 5
  %v2465 = vsel %vm2426, %v2463, %v2464
  %v2466 = vrot.slane %v2464, 4
  %v2467 = vrot.slane %v2322, 5
  %v2468 = vsel %vm2426, %v2466, %v2467
  %v2469 = vrot.slane %v2323, 5
  %v2470 = vrot.slane %v2469, 4
  %v2471 = vrot.slane %v2325, 5
  %v2472 = vsel %vm2426, %v2470, %v2471
  %v2473 = vrot.slane %v2471, 4
  %v2474 = vrot.slane %v2326, 5
  %v2475 = vsel %vm2426, %v2473, %v2474
  %v2476 = vrot.slane %v2328, 5
  %v2477 = vrot.slane %v2476, 4
  %v2478 = vrot.slane %v2329, 5
  %v2479 = vsel %vm2426, %v2477, %v2478
  %v2480 = vrot.slane %v2478, 4
  %v2481 = vrot.slane %v2331, 5
  %v2482 = vsel %vm2426, %v2480, %v2481
  %2483 = vst [vmem:[#allocation1] ss:$2 sm:$0xff] %v2430
  %s2484 = scalar_lea.vmem [#allocation1], 1
  %2485 = vst [vmem:[%s2484] ss:$2 sm:$0xff] %v2433
  %s2486 = scalar_lea.vmem [#allocation1], 16
  %2487 = vst [vmem:[%s2486] ss:$2 sm:$0xff] %v2437
  %s2488 = scalar_lea.vmem [#allocation1], 17
  %2489 = vst [vmem:[%s2488] ss:$2 sm:$0xff] %v2440
  %s2490 = scalar_lea.vmem [#allocation1], 32
  %2491 = vst [vmem:[%s2490] ss:$2 sm:$0xff] %v2444
  %s2492 = scalar_lea.vmem [#allocation1], 33
  %2493 = vst [vmem:[%s2492] ss:$2 sm:$0xff] %v2447
  %s2494 = scalar_lea.vmem [#allocation1], 48
  %2495 = vst [vmem:[%s2494] ss:$2 sm:$0xff] %v2451
  %s2496 = scalar_lea.vmem [#allocation1], 49
  %2497 = vst [vmem:[%s2496] ss:$2 sm:$0xff] %v2454
  %v2498 = vld.sshfl [vmem:[#allocation1] sm:$0xff pattern:$0x75316420]
  %v2499 = vld.sshfl [vmem:[#allocation1 + $0x8] sm:$0xff pattern:$0x75316420]
  %v2500 = vld.sshfl [vmem:[#allocation1 + $0x10] sm:$0xff pattern:$0x75316420]
  %v2501 = vld.sshfl [vmem:[#allocation1 + $0x18] sm:$0xff pattern:$0x75316420]
  %v2502 = vld.sshfl [vmem:[#allocation1 + $0x20] sm:$0xff pattern:$0x75316420]
  %v2503 = vld.sshfl [vmem:[#allocation1 + $0x28] sm:$0xff pattern:$0x75316420]
  %v2504 = vld.sshfl [vmem:[#allocation1 + $0x30] sm:$0xff pattern:$0x75316420]
  %v2505 = vld.sshfl [vmem:[#allocation1 + $0x38] sm:$0xff pattern:$0x75316420]
  %2506 = vst [vmem:[#allocation1] ss:$2 sm:$0xff] %v2458
  %2507 = vst [vmem:[%s2484] ss:$2 sm:$0xff] %v2461
  %2508 = vst [vmem:[%s2486] ss:$2 sm:$0xff] %v2465
  %2509 = vst [vmem:[%s2488] ss:$2 sm:$0xff] %v2468
  %2510 = vst [vmem:[%s2490] ss:$2 sm:$0xff] %v2472
  %2511 = vst [vmem:[%s2492] ss:$2 sm:$0xff] %v2475
  %2512 = vst [vmem:[%s2494] ss:$2 sm:$0xff] %v2479
  %2513 = vst [vmem:[%s2496] ss:$2 sm:$0xff] %v2482
  %v2514 = vld.sshfl [vmem:[#allocation1] sm:$0xff pattern:$0x75316420]
  %v2515 = vld.sshfl [vmem:[#allocation1 + $0x8] sm:$0xff pattern:$0x75316420]
  %v2516 = vld.sshfl [vmem:[#allocation1 + $0x10] sm:$0xff pattern:$0x75316420]
  %v2517 = vld.sshfl [vmem:[#allocation1 + $0x18] sm:$0xff pattern:$0x75316420]
  %v2518 = vld.sshfl [vmem:[#allocation1 + $0x20] sm:$0xff pattern:$0x75316420]
  %v2519 = vld.sshfl [vmem:[#allocation1 + $0x28] sm:$0xff pattern:$0x75316420]
  %v2520 = vld.sshfl [vmem:[#allocation1 + $0x30] sm:$0xff pattern:$0x75316420]
  %v2521 = vld.sshfl [vmem:[#allocation1 + $0x38] sm:$0xff pattern:$0x75316420]
  %v2538 = vpack.c.bf16 %v2500, %v2498
  %v2539 = vpack.c.bf16 %v2501, %v2499
  %v2540 = vpack.c.bf16 %v2504, %v2502
  %v2541 = vpack.c.bf16 %v2505, %v2503
  %v2542 = vpack.c.bf16 %v2516, %v2514
  %v2543 = vpack.c.bf16 %v2517, %v2515
  %v2544 = vpack.c.bf16 %v2520, %v2518
  %v2545 = vpack.c.bf16 %v2521, %v2519
  %s2546 = scalar_lea.vmem %s4, 232
  %v2547 = vld [vmem:[%s2546] sm:$0xff]
  %v2548 = vld [vmem:[%s2546 + $0x8] sm:$0xff]
  %v2549 = vld [vmem:[%s2546 + $0x10] sm:$0xff]
  %v2550 = vld [vmem:[%s2546 + $0x18] sm:$0xff]
  %v2551 = vld [vmem:[%s2546 + $0x20] sm:$0xff]
  %v2552 = vld [vmem:[%s2546 + $0x28] sm:$0xff]
  %v2553 = vld [vmem:[%s2546 + $0x30] sm:$0xff]
  %v2554 = vld [vmem:[%s2546 + $0x38] sm:$0xff]
  %v2555 = vld [vmem:[%s2546 + $0x40] sm:$0xff]
  %v2556 = vld [vmem:[%s2546 + $0x48] sm:$0xff]
  %v2557 = vld [vmem:[%s2546 + $0x50] sm:$0xff]
  %v2558 = vld [vmem:[%s2546 + $0x58] sm:$0xff]
  %v2559 = vld [vmem:[%s2546 + $0x60] sm:$0xff]
  %v2560 = vld [vmem:[%s2546 + $0x68] sm:$0xff]
  %v2561 = vld [vmem:[%s2546 + $0x70] sm:$0xff]
  %v2562 = vld [vmem:[%s2546 + $0x78] sm:$0xff]
  %v2563 = vld [vmem:[%s2546 + $0x80] sm:$0xff]
  %v2564 = vld [vmem:[%s2546 + $0x88] sm:$0xff]
  %v2565 = vld [vmem:[%s2546 + $0x90] sm:$0xff]
  %v2566 = vld [vmem:[%s2546 + $0x98] sm:$0xff]
  %v2567 = vld [vmem:[%s2546 + $0xa0] sm:$0xff]
  %v2568 = vld [vmem:[%s2546 + $0xa8] sm:$0xff]
  %v2569 = vld [vmem:[%s2546 + $0xb0] sm:$0xff]
  %v2570 = vld [vmem:[%s2546 + $0xb8] sm:$0xff]
  %v2571 = vld [vmem:[%s2546 + $0xc0] sm:$0xff]
  %v2572 = vld [vmem:[%s2546 + $0xc8] sm:$0xff]
  %v2573 = vld [vmem:[%s2546 + $0xd0] sm:$0xff]
  %v2574 = vld [vmem:[%s2546 + $0xd8] sm:$0xff]
  %v2575 = vld [vmem:[%s2546 + $0xe0] sm:$0x77]
  %v2605 = vunpack.c.l.b16 %v2547
  %v2606 = vunpack.c.h.b16 %v2547
  %v2607 = vunpack.c.l.b16 %v2548
  %v2608 = vunpack.c.h.b16 %v2548
  %v2609 = vunpack.c.l.b16 %v2549
  %v2610 = vunpack.c.h.b16 %v2549
  %v2611 = vunpack.c.l.b16 %v2550
  %v2612 = vunpack.c.h.b16 %v2550
  %v2613 = vunpack.c.l.b16 %v2551
  %v2614 = vunpack.c.h.b16 %v2551
  %v2615 = vunpack.c.l.b16 %v2552
  %v2616 = vunpack.c.h.b16 %v2552
  %v2617 = vunpack.c.l.b16 %v2553
  %v2618 = vunpack.c.h.b16 %v2553
  %v2619 = vunpack.c.l.b16 %v2554
  %v2620 = vunpack.c.h.b16 %v2554
  %v2621 = vunpack.c.l.b16 %v2555
  %v2622 = vunpack.c.h.b16 %v2555
  %v2623 = vunpack.c.l.b16 %v2556
  %v2624 = vunpack.c.h.b16 %v2556
  %v2625 = vunpack.c.l.b16 %v2557
  %v2626 = vunpack.c.h.b16 %v2557
  %v2627 = vunpack.c.l.b16 %v2558
  %v2628 = vunpack.c.h.b16 %v2558
  %v2629 = vunpack.c.l.b16 %v2559
  %v2630 = vunpack.c.h.b16 %v2559
  %v2631 = vunpack.c.l.b16 %v2560
  %v2632 = vunpack.c.h.b16 %v2560
  %v2633 = vunpack.c.l.b16 %v2561
  %v2634 = vunpack.c.h.b16 %v2561
  %v2635 = vunpack.c.l.b16 %v2562
  %v2636 = vunpack.c.h.b16 %v2562
  %v2637 = vunpack.c.l.b16 %v2563
  %v2638 = vunpack.c.h.b16 %v2563
  %v2639 = vunpack.c.l.b16 %v2564
  %v2640 = vunpack.c.h.b16 %v2564
  %v2641 = vunpack.c.l.b16 %v2565
  %v2642 = vunpack.c.h.b16 %v2565
  %v2643 = vunpack.c.l.b16 %v2566
  %v2644 = vunpack.c.h.b16 %v2566
  %v2645 = vunpack.c.l.b16 %v2567
  %v2646 = vunpack.c.h.b16 %v2567
  %v2647 = vunpack.c.l.b16 %v2568
  %v2648 = vunpack.c.h.b16 %v2568
  %v2649 = vunpack.c.l.b16 %v2569
  %v2650 = vunpack.c.h.b16 %v2569
  %v2651 = vunpack.c.l.b16 %v2570
  %v2652 = vunpack.c.h.b16 %v2570
  %v2653 = vunpack.c.l.b16 %v2571
  %v2654 = vunpack.c.h.b16 %v2571
  %v2655 = vunpack.c.l.b16 %v2572
  %v2656 = vunpack.c.h.b16 %v2572
  %v2657 = vunpack.c.l.b16 %v2573
  %v2658 = vunpack.c.h.b16 %v2573
  %v2659 = vunpack.c.l.b16 %v2574
  %v2660 = vunpack.c.h.b16 %v2574
  %v2661 = vunpack.c.l.b16 %v2575
  %v2662 = vunpack.c.h.b16 %v2575
  %v2663 = vpack.c.b16 %v2607, %v2605
  %v2664 = vpack.c.b16 %v2608, %v2606
  %v2665 = vpack.c.b16 %v2611, %v2609
  %v2666 = vpack.c.b16 %v2612, %v2610
  %v2667 = vpack.c.b16 %v2615, %v2613
  %v2668 = vpack.c.b16 %v2616, %v2614
  %v2669 = vpack.c.b16 %v2619, %v2617
  %v2670 = vpack.c.b16 %v2620, %v2618
  %v2671 = vpack.c.b16 %v2623, %v2621
  %v2672 = vpack.c.b16 %v2624, %v2622
  %v2673 = vpack.c.b16 %v2627, %v2625
  %v2674 = vpack.c.b16 %v2628, %v2626
  %v2675 = vpack.c.b16 %v2631, %v2629
  %v2676 = vpack.c.b16 %v2632, %v2630
  %v2677 = vpack.c.b16 %v2635, %v2633
  %v2678 = vpack.c.b16 %v2636, %v2634
  %v2679 = vpack.c.b16 %v2639, %v2637
  %v2680 = vpack.c.b16 %v2640, %v2638
  %v2681 = vpack.c.b16 %v2643, %v2641
  %v2682 = vpack.c.b16 %v2644, %v2642
  %v2683 = vpack.c.b16 %v2647, %v2645
  %v2684 = vpack.c.b16 %v2648, %v2646
  %v2685 = vpack.c.b16 %v2651, %v2649
  %v2686 = vpack.c.b16 %v2652, %v2650
  %v2687 = vpack.c.b16 %v2655, %v2653
  %v2688 = vpack.c.b16 %v2656, %v2654
  %v2689 = vpack.c.b16 %v2659, %v2657
  %v2690 = vpack.c.b16 %v2660, %v2658
  %v2691 = vpack.c.b16 %v2661, %v2661
  %v2692 = vpack.c.b16 %v2662, %v2662
  %vm2721 = vcmask 834560
  %v2723 = vsel %vm2721, %v2539, 0
  %v2726 = vsel %vm2721, %v2541, 0
  %v2729 = vsel %vm2721, %v2543, 0
  %v2732 = vsel %vm2721, %v2545, 0
  %v2735 = vsel %vm2424, %v2691, 0
  %v2738 = vsel %vm2424, %v2692, 0
  %2740 = vmatpush.bf16.msra.mxu0 %v2677
  %2741 = vmatpush.bf16.msra.mxu0 %v2675
  %2742 = vmatpush.bf16.msra.mxu0 %v2673
  %2743 = vmatpush.bf16.msra.mxu0 %v2671
  %2744 = vmatpush.bf16.msra.mxu0 %v2669
  %2745 = vmatpush.bf16.msra.mxu0 %v2667
  %2746 = vmatpush.bf16.msra.mxu0 %v2665
  %2747 = vmatpush.bf16.msra.mxu0 %v2663
  %2748 = vmatmul.bf16.gmra.mxu0 %v2538
  %v2749 = vpop.f32.mrf.mxu0
  %v2750 = vadd.f32 0.0, %v2749
  %v2751 = vpop.f32.mrf.mxu0
  %v2752 = vadd.f32 0.0, %v2751
  %2753 = vmatmul.bf16.gmra.mxu0 %v2540
  %v2754 = vpop.f32.mrf.mxu0
  %v2755 = vadd.f32 0.0, %v2754
  %v2756 = vpop.f32.mrf.mxu0
  %v2757 = vadd.f32 0.0, %v2756
  %2758 = vmatmul.bf16.gmra.mxu0 %v2542
  %v2759 = vpop.f32.mrf.mxu0
  %v2760 = vadd.f32 0.0, %v2759
  %v2761 = vpop.f32.mrf.mxu0
  %v2762 = vadd.f32 0.0, %v2761
  %2763 = vmatmul.bf16.gmra.mxu0 %v2544
  %v2764 = vpop.f32.mrf.mxu0
  %v2765 = vadd.f32 0.0, %v2764
  %v2766 = vpop.f32.mrf.mxu0
  %v2767 = vadd.f32 0.0, %v2766
  %2768 = vdwg.mxu0
  %2769 = vmatpush.bf16.msra.mxu0 0
  %2770 = vmatpush.bf16.msra.mxu0 %v2735
  %2771 = vmatpush.bf16.msra.mxu0 %v2689
  %2772 = vmatpush.bf16.msra.mxu0 %v2687
  %2773 = vmatpush.bf16.msra.mxu0 %v2685
  %2774 = vmatpush.bf16.msra.mxu0 %v2683
  %2775 = vmatpush.bf16.msra.mxu0 %v2681
  %2776 = vmatpush.bf16.msra.mxu0 %v2679
  %2777 = vmatmul.bf16.gmra.mxu0 %v2723
  %v2778 = vpop.f32.mrf.mxu0
  %v2779 = vadd.f32 %v2750, %v2778
  %v2780 = vpop.f32.mrf.mxu0
  %v2781 = vadd.f32 %v2752, %v2780
  %2782 = vmatmul.bf16.gmra.mxu0 %v2726
  %v2783 = vpop.f32.mrf.mxu0
  %v2784 = vadd.f32 %v2755, %v2783
  %v2785 = vpop.f32.mrf.mxu0
  %v2786 = vadd.f32 %v2757, %v2785
  %2787 = vmatmul.bf16.gmra.mxu0 %v2729
  %v2788 = vpop.f32.mrf.mxu0
  %v2789 = vadd.f32 %v2760, %v2788
  %v2790 = vpop.f32.mrf.mxu0
  %v2791 = vadd.f32 %v2762, %v2790
  %2792 = vmatmul.bf16.gmra.mxu0 %v2732
  %v2793 = vpop.f32.mrf.mxu0
  %v2794 = vadd.f32 %v2765, %v2793
  %v2795 = vpop.f32.mrf.mxu0
  %v2796 = vadd.f32 %v2767, %v2795
  %2797 = vdwg.mxu0
  %2798 = vmatpush.bf16.msra.mxu0 %v2678
  %2799 = vmatpush.bf16.msra.mxu0 %v2676
  %2800 = vmatpush.bf16.msra.mxu0 %v2674
  %2801 = vmatpush.bf16.msra.mxu0 %v2672
  %2802 = vmatpush.bf16.msra.mxu0 %v2670
  %2803 = vmatpush.bf16.msra.mxu0 %v2668
  %2804 = vmatpush.bf16.msra.mxu0 %v2666
  %2805 = vmatpush.bf16.msra.mxu0 %v2664
  %2806 = vmatmul.bf16.gmra.mxu0 %v2538
  %v2807 = vpop.f32.mrf.mxu0
  %v2808 = vadd.f32 0.0, %v2807
  %v2809 = vpop.f32.mrf.mxu0
  %v2810 = vadd.f32 0.0, %v2809
  %2811 = vmatmul.bf16.gmra.mxu0 %v2540
  %v2812 = vpop.f32.mrf.mxu0
  %v2813 = vadd.f32 0.0, %v2812
  %v2814 = vpop.f32.mrf.mxu0
  %v2815 = vadd.f32 0.0, %v2814
  %2816 = vmatmul.bf16.gmra.mxu0 %v2542
  %v2817 = vpop.f32.mrf.mxu0
  %v2818 = vadd.f32 0.0, %v2817
  %v2819 = vpop.f32.mrf.mxu0
  %v2820 = vadd.f32 0.0, %v2819
  %2821 = vmatmul.bf16.gmra.mxu0 %v2544
  %v2822 = vpop.f32.mrf.mxu0
  %v2823 = vadd.f32 0.0, %v2822
  %v2824 = vpop.f32.mrf.mxu0
  %v2825 = vadd.f32 0.0, %v2824
  %2826 = vdwg.mxu0
  %2827 = vmatpush.bf16.msra.mxu0 0
  %2828 = vmatpush.bf16.msra.mxu0 %v2738
  %2829 = vmatpush.bf16.msra.mxu0 %v2690
  %2830 = vmatpush.bf16.msra.mxu0 %v2688
  %2831 = vmatpush.bf16.msra.mxu0 %v2686
  %2832 = vmatpush.bf16.msra.mxu0 %v2684
  %2833 = vmatpush.bf16.msra.mxu0 %v2682
  %2834 = vmatpush.bf16.msra.mxu0 %v2680
  %2835 = vmatmul.bf16.gmra.mxu0 %v2723
  %v2836 = vpop.f32.mrf.mxu0
  %v2837 = vadd.f32 %v2808, %v2836
  %v2838 = vpop.f32.mrf.mxu0
  %v2839 = vadd.f32 %v2810, %v2838
  %2840 = vmatmul.bf16.gmra.mxu0 %v2726
  %v2841 = vpop.f32.mrf.mxu0
  %v2842 = vadd.f32 %v2813, %v2841
  %v2843 = vpop.f32.mrf.mxu0
  %v2844 = vadd.f32 %v2815, %v2843
  %2845 = vmatmul.bf16.gmra.mxu0 %v2729
  %v2846 = vpop.f32.mrf.mxu0
  %v2847 = vadd.f32 %v2818, %v2846
  %v2848 = vpop.f32.mrf.mxu0
  %v2849 = vadd.f32 %v2820, %v2848
  %2850 = vmatmul.bf16.gmra.mxu0 %v2732
  %v2851 = vpop.f32.mrf.mxu0
  %v2852 = vadd.f32 %v2823, %v2851
  %v2853 = vpop.f32.mrf.mxu0
  %v2854 = vadd.f32 %v2825, %v2853
  %2855 = vdwg.mxu0
  %v2885 = vunpack.c.l.b16 %v2395
  %v2886 = vunpack.c.h.b16 %v2395
  %v2887 = vunpack.c.l.b16 %v2396
  %v2888 = vunpack.c.h.b16 %v2396
  %v2889 = vunpack.c.l.b16 %v2397
  %v2890 = vunpack.c.h.b16 %v2397
  %v2891 = vunpack.c.l.b16 %v2398
  %v2892 = vunpack.c.h.b16 %v2398
  %v2893 = vunpack.c.l.b16 %v2399
  %v2894 = vunpack.c.h.b16 %v2399
  %v2895 = vunpack.c.l.b16 %v2400
  %v2896 = vunpack.c.h.b16 %v2400
  %v2897 = vunpack.c.l.b16 %v2401
  %v2898 = vunpack.c.h.b16 %v2401
  %v2899 = vunpack.c.l.b16 %v2402
  %v2900 = vunpack.c.h.b16 %v2402
  %v2901 = vunpack.c.l.b16 %v2403
  %v2902 = vunpack.c.h.b16 %v2403
  %v2903 = vunpack.c.l.b16 %v2404
  %v2904 = vunpack.c.h.b16 %v2404
  %v2905 = vunpack.c.l.b16 %v2405
  %v2906 = vunpack.c.h.b16 %v2405
  %v2907 = vunpack.c.l.b16 %v2406
  %v2908 = vunpack.c.h.b16 %v2406
  %v2909 = vunpack.c.l.b16 %v2407
  %v2910 = vunpack.c.h.b16 %v2407
  %v2911 = vunpack.c.l.b16 %v2408
  %v2912 = vunpack.c.h.b16 %v2408
  %v2913 = vunpack.c.l.b16 %v2409
  %v2914 = vunpack.c.h.b16 %v2409
  %v2915 = vunpack.c.l.b16 %v2410
  %v2916 = vunpack.c.h.b16 %v2410
  %v2917 = vunpack.c.l.b16 %v2411
  %v2918 = vunpack.c.h.b16 %v2411
  %v2919 = vunpack.c.l.b16 %v2412
  %v2920 = vunpack.c.h.b16 %v2412
  %v2921 = vunpack.c.l.b16 %v2413
  %v2922 = vunpack.c.h.b16 %v2413
  %v2923 = vunpack.c.l.b16 %v2414
  %v2924 = vunpack.c.h.b16 %v2414
  %v2925 = vunpack.c.l.b16 %v2415
  %v2926 = vunpack.c.h.b16 %v2415
  %v2927 = vunpack.c.l.b16 %v2416
  %v2928 = vunpack.c.h.b16 %v2416
  %v2929 = vunpack.c.l.b16 %v2417
  %v2930 = vunpack.c.h.b16 %v2417
  %v2931 = vunpack.c.l.b16 %v2418
  %v2932 = vunpack.c.h.b16 %v2418
  %v2933 = vunpack.c.l.b16 %v2419
  %v2934 = vunpack.c.h.b16 %v2419
  %v2935 = vunpack.c.l.b16 %v2420
  %v2936 = vunpack.c.h.b16 %v2420
  %v2937 = vunpack.c.l.b16 %v2421
  %v2938 = vunpack.c.h.b16 %v2421
  %v2939 = vunpack.c.l.b16 %v2422
  %v2940 = vunpack.c.h.b16 %v2422
  %v2941 = vunpack.c.l.b16 %v2423
  %v2942 = vunpack.c.h.b16 %v2423
  %v2943 = vpack.c.b16 %v2887, %v2885
  %v2944 = vpack.c.b16 %v2888, %v2886
  %v2945 = vpack.c.b16 %v2891, %v2889
  %v2946 = vpack.c.b16 %v2892, %v2890
  %v2947 = vpack.c.b16 %v2895, %v2893
  %v2948 = vpack.c.b16 %v2896, %v2894
  %v2949 = vpack.c.b16 %v2899, %v2897
  %v2950 = vpack.c.b16 %v2900, %v2898
  %v2951 = vpack.c.b16 %v2903, %v2901
  %v2952 = vpack.c.b16 %v2904, %v2902
  %v2953 = vpack.c.b16 %v2907, %v2905
  %v2954 = vpack.c.b16 %v2908, %v2906
  %v2955 = vpack.c.b16 %v2911, %v2909
  %v2956 = vpack.c.b16 %v2912, %v2910
  %v2957 = vpack.c.b16 %v2915, %v2913
  %v2958 = vpack.c.b16 %v2916, %v2914
  %v2959 = vpack.c.b16 %v2919, %v2917
  %v2960 = vpack.c.b16 %v2920, %v2918
  %v2961 = vpack.c.b16 %v2923, %v2921
  %v2962 = vpack.c.b16 %v2924, %v2922
  %v2963 = vpack.c.b16 %v2927, %v2925
  %v2964 = vpack.c.b16 %v2928, %v2926
  %v2965 = vpack.c.b16 %v2931, %v2929
  %v2966 = vpack.c.b16 %v2932, %v2930
  %v2967 = vpack.c.b16 %v2935, %v2933
  %v2968 = vpack.c.b16 %v2936, %v2934
  %v2969 = vpack.c.b16 %v2939, %v2937
  %v2970 = vpack.c.b16 %v2940, %v2938
  %v2971 = vpack.c.b16 %v2941, %v2941
  %v2972 = vpack.c.b16 %v2942, %v2942
  %v3002 = vsel %vm2721, %v2388, 0
  %v3005 = vsel %vm2721, %v2390, 0
  %v3008 = vsel %vm2721, %v2392, 0
  %v3011 = vsel %vm2721, %v2394, 0
  %v3014 = vsel %vm2424, %v2971, 0
  %v3017 = vsel %vm2424, %v2972, 0
  %3019 = vmatpush.bf16.msra.mxu0 %v2957
  %3020 = vmatpush.bf16.msra.mxu0 %v2955
  %3021 = vmatpush.bf16.msra.mxu0 %v2953
  %3022 = vmatpush.bf16.msra.mxu0 %v2951
  %3023 = vmatpush.bf16.msra.mxu0 %v2949
  %3024 = vmatpush.bf16.msra.mxu0 %v2947
  %3025 = vmatpush.bf16.msra.mxu0 %v2945
  %3026 = vmatpush.bf16.msra.mxu0 %v2943
  %3027 = vmatmul.bf16.gmra.mxu0 %v2387
  %v3028 = vpop.f32.mrf.mxu0
  %v3029 = vadd.f32 %v2779, %v3028
  %v3030 = vpop.f32.mrf.mxu0
  %v3031 = vadd.f32 %v2781, %v3030
  %3032 = vmatmul.bf16.gmra.mxu0 %v2389
  %v3033 = vpop.f32.mrf.mxu0
  %v3034 = vadd.f32 %v2784, %v3033
  %v3035 = vpop.f32.mrf.mxu0
  %v3036 = vadd.f32 %v2786, %v3035
  %3037 = vmatmul.bf16.gmra.mxu0 %v2391
  %v3038 = vpop.f32.mrf.mxu0
  %v3039 = vadd.f32 %v2789, %v3038
  %v3040 = vpop.f32.mrf.mxu0
  %v3041 = vadd.f32 %v2791, %v3040
  %3042 = vmatmul.bf16.gmra.mxu0 %v2393
  %v3043 = vpop.f32.mrf.mxu0
  %v3044 = vadd.f32 %v2794, %v3043
  %v3045 = vpop.f32.mrf.mxu0
  %v3046 = vadd.f32 %v2796, %v3045
  %3047 = vdwg.mxu0
  %3048 = vmatpush.bf16.msra.mxu0 0
  %3049 = vmatpush.bf16.msra.mxu0 %v3014
  %3050 = vmatpush.bf16.msra.mxu0 %v2969
  %3051 = vmatpush.bf16.msra.mxu0 %v2967
  %3052 = vmatpush.bf16.msra.mxu0 %v2965
  %3053 = vmatpush.bf16.msra.mxu0 %v2963
  %3054 = vmatpush.bf16.msra.mxu0 %v2961
  %3055 = vmatpush.bf16.msra.mxu0 %v2959
  %3056 = vmatmul.bf16.gmra.mxu0 %v3002
  %v3057 = vpop.f32.mrf.mxu0
  %v3058 = vadd.f32 %v3029, %v3057
  %v3059 = vpop.f32.mrf.mxu0
  %v3060 = vadd.f32 %v3031, %v3059
  %3061 = vmatmul.bf16.gmra.mxu0 %v3005
  %v3062 = vpop.f32.mrf.mxu0
  %v3063 = vadd.f32 %v3034, %v3062
  %v3064 = vpop.f32.mrf.mxu0
  %v3065 = vadd.f32 %v3036, %v3064
  %3066 = vmatmul.bf16.gmra.mxu0 %v3008
  %v3067 = vpop.f32.mrf.mxu0
  %v3068 = vadd.f32 %v3039, %v3067
  %v3069 = vpop.f32.mrf.mxu0
  %v3070 = vadd.f32 %v3041, %v3069
  %3071 = vmatmul.bf16.gmra.mxu0 %v3011
  %v3072 = vpop.f32.mrf.mxu0
  %v3073 = vadd.f32 %v3044, %v3072
  %v3074 = vpop.f32.mrf.mxu0
  %v3075 = vadd.f32 %v3046, %v3074
  %3076 = vdwg.mxu0
  %3077 = vmatpush.bf16.msra.mxu0 %v2958
  %3078 = vmatpush.bf16.msra.mxu0 %v2956
  %3079 = vmatpush.bf16.msra.mxu0 %v2954
  %3080 = vmatpush.bf16.msra.mxu0 %v2952
  %3081 = vmatpush.bf16.msra.mxu0 %v2950
  %3082 = vmatpush.bf16.msra.mxu0 %v2948
  %3083 = vmatpush.bf16.msra.mxu0 %v2946
  %3084 = vmatpush.bf16.msra.mxu0 %v2944
  %3085 = vmatmul.bf16.gmra.mxu0 %v2387
  %v3086 = vpop.f32.mrf.mxu0
  %v3087 = vadd.f32 %v2837, %v3086
  %v3088 = vpop.f32.mrf.mxu0
  %v3089 = vadd.f32 %v2839, %v3088
  %3090 = vmatmul.bf16.gmra.mxu0 %v2389
  %v3091 = vpop.f32.mrf.mxu0
  %v3092 = vadd.f32 %v2842, %v3091
  %v3093 = vpop.f32.mrf.mxu0
  %v3094 = vadd.f32 %v2844, %v3093
  %3095 = vmatmul.bf16.gmra.mxu0 %v2391
  %v3096 = vpop.f32.mrf.mxu0
  %v3097 = vadd.f32 %v2847, %v3096
  %v3098 = vpop.f32.mrf.mxu0
  %v3099 = vadd.f32 %v2849, %v3098
  %3100 = vmatmul.bf16.gmra.mxu0 %v2393
  %v3101 = vpop.f32.mrf.mxu0
  %v3102 = vadd.f32 %v2852, %v3101
  %v3103 = vpop.f32.mrf.mxu0
  %v3104 = vadd.f32 %v2854, %v3103
  %3105 = vdwg.mxu0
  %3106 = vmatpush.bf16.msra.mxu0 0
  %3107 = vmatpush.bf16.msra.mxu0 %v3017
  %3108 = vmatpush.bf16.msra.mxu0 %v2970
  %3109 = vmatpush.bf16.msra.mxu0 %v2968
  %3110 = vmatpush.bf16.msra.mxu0 %v2966
  %3111 = vmatpush.bf16.msra.mxu0 %v2964
  %3112 = vmatpush.bf16.msra.mxu0 %v2962
  %3113 = vmatpush.bf16.msra.mxu0 %v2960
  %3114 = vmatmul.bf16.gmra.mxu0 %v3002
  %v3115 = vpop.f32.mrf.mxu0
  %v3116 = vadd.f32 %v3087, %v3115
  %v3117 = vpop.f32.mrf.mxu0
  %v3118 = vadd.f32 %v3089, %v3117
  %3119 = vmatmul.bf16.gmra.mxu0 %v3005
  %v3120 = vpop.f32.mrf.mxu0
  %v3121 = vadd.f32 %v3092, %v3120
  %v3122 = vpop.f32.mrf.mxu0
  %v3123 = vadd.f32 %v3094, %v3122
  %3124 = vmatmul.bf16.gmra.mxu0 %v3008
  %v3125 = vpop.f32.mrf.mxu0
  %v3126 = vadd.f32 %v3097, %v3125
  %v3127 = vpop.f32.mrf.mxu0
  %v3128 = vadd.f32 %v3099, %v3127
  %3129 = vmatmul.bf16.gmra.mxu0 %v3011
  %v3130 = vpop.f32.mrf.mxu0
  %v3131 = vadd.f32 %v3102, %v3130
  %v3132 = vpop.f32.mrf.mxu0
  %v3133 = vadd.f32 %v3104, %v3132
  %3134 = vdwg.mxu0
  %vm3135 = vcmask 1041408
  %vm3136 = vcmask 1045508
  %vm3137 = vmor %vm3135, %vm3136
  %v3138 = vrot.slane %v2296, 6
  %v3139 = vrot.slane %v3138, 4
  %v3140 = vrot.slane %v2298, 6
  %v3141 = vsel %vm3137, %v3139, %v3140
  %v3142 = vrot.slane %v3140, 4
  %v3143 = vrot.slane %v2299, 6
  %v3144 = vsel %vm3137, %v3142, %v3143
  %v3145 = vrot.slane %v2301, 6
  %v3146 = vrot.slane %v3145, 4
  %v3147 = vrot.slane %v2302, 6
  %v3148 = vsel %vm3137, %v3146, %v3147
  %v3149 = vrot.slane %v3147, 4
  %v3150 = vrot.slane %v2304, 6
  %v3151 = vsel %vm3137, %v3149, %v3150
  %v3152 = vrot.slane %v2305, 6
  %v3153 = vrot.slane %v3152, 4
  %v3154 = vrot.slane %v2307, 6
  %v3155 = vsel %vm3137, %v3153, %v3154
  %v3156 = vrot.slane %v3154, 4
  %v3157 = vrot.slane %v2308, 6
  %v3158 = vsel %vm3137, %v3156, %v3157
  %v3159 = vrot.slane %v2310, 6
  %v3160 = vrot.slane %v3159, 4
  %v3161 = vrot.slane %v2311, 6
  %v3162 = vsel %vm3137, %v3160, %v3161
  %v3163 = vrot.slane %v3161, 4
  %v3164 = vrot.slane %v2313, 6
  %v3165 = vsel %vm3137, %v3163, %v3164
  %v3166 = vrot.slane %v2314, 6
  %v3167 = vrot.slane %v3166, 4
  %v3168 = vrot.slane %v2316, 6
  %v3169 = vsel %vm3137, %v3167, %v3168
  %v3170 = vrot.slane %v3168, 4
  %v3171 = vrot.slane %v2317, 6
  %v3172 = vsel %vm3137, %v3170, %v3171
  %v3173 = vrot.slane %v2319, 6
  %v3174 = vrot.slane %v3173, 4
  %v3175 = vrot.slane %v2320, 6
  %v3176 = vsel %vm3137, %v3174, %v3175
  %v3177 = vrot.slane %v3175, 4
  %v3178 = vrot.slane %v2322, 6
  %v3179 = vsel %vm3137, %v3177, %v3178
  %v3180 = vrot.slane %v2323, 6
  %v3181 = vrot.slane %v3180, 4
  %v3182 = vrot.slane %v2325, 6
  %v3183 = vsel %vm3137, %v3181, %v3182
  %v3184 = vrot.slane %v3182, 4
  %v3185 = vrot.slane %v2326, 6
  %v3186 = vsel %vm3137, %v3184, %v3185
  %v3187 = vrot.slane %v2328, 6
  %v3188 = vrot.slane %v3187, 4
  %v3189 = vrot.slane %v2329, 6
  %v3190 = vsel %vm3137, %v3188, %v3189
  %v3191 = vrot.slane %v3189, 4
  %v3192 = vrot.slane %v2331, 6
  %v3193 = vsel %vm3137, %v3191, %v3192
  %3194 = vst [vmem:[#allocation1] ss:$2 sm:$0xff] %v3141
  %s3195 = scalar_lea.vmem [#allocation1], 1
  %3196 = vst [vmem:[%s3195] ss:$2 sm:$0xff] %v3144
  %s3197 = scalar_lea.vmem [#allocation1], 16
  %3198 = vst [vmem:[%s3197] ss:$2 sm:$0xff] %v3148
  %s3199 = scalar_lea.vmem [#allocation1], 17
  %3200 = vst [vmem:[%s3199] ss:$2 sm:$0xff] %v3151
  %s3201 = scalar_lea.vmem [#allocation1], 32
  %3202 = vst [vmem:[%s3201] ss:$2 sm:$0xff] %v3155
  %s3203 = scalar_lea.vmem [#allocation1], 33
  %3204 = vst [vmem:[%s3203] ss:$2 sm:$0xff] %v3158
  %s3205 = scalar_lea.vmem [#allocation1], 48
  %3206 = vst [vmem:[%s3205] ss:$2 sm:$0xff] %v3162
  %s3207 = scalar_lea.vmem [#allocation1], 49
  %3208 = vst [vmem:[%s3207] ss:$2 sm:$0xff] %v3165
  %v3209 = vld.sshfl [vmem:[#allocation1] sm:$0xff pattern:$0x75316420]
  %v3210 = vld.sshfl [vmem:[#allocation1 + $0x8] sm:$0xff pattern:$0x75316420]
  %v3211 = vld.sshfl [vmem:[#allocation1 + $0x10] sm:$0xff pattern:$0x75316420]
  %v3212 = vld.sshfl [vmem:[#allocation1 + $0x18] sm:$0xff pattern:$0x75316420]
  %v3213 = vld.sshfl [vmem:[#allocation1 + $0x20] sm:$0xff pattern:$0x75316420]
  %v3214 = vld.sshfl [vmem:[#allocation1 + $0x28] sm:$0xff pattern:$0x75316420]
  %v3215 = vld.sshfl [vmem:[#allocation1 + $0x30] sm:$0xff pattern:$0x75316420]
  %v3216 = vld.sshfl [vmem:[#allocation1 + $0x38] sm:$0xff pattern:$0x75316420]
  %3217 = vst [vmem:[#allocation1] ss:$2 sm:$0xff] %v3169
  %3218 = vst [vmem:[%s3195] ss:$2 sm:$0xff] %v3172
  %3219 = vst [vmem:[%s3197] ss:$2 sm:$0xff] %v3176
  %3220 = vst [vmem:[%s3199] ss:$2 sm:$0xff] %v3179
  %3221 = vst [vmem:[%s3201] ss:$2 sm:$0xff] %v3183
  %3222 = vst [vmem:[%s3203] ss:$2 sm:$0xff] %v3186
  %3223 = vst [vmem:[%s3205] ss:$2 sm:$0xff] %v3190
  %3224 = vst [vmem:[%s3207] ss:$2 sm:$0xff] %v3193
  %v3225 = vld.sshfl [vmem:[#allocation1] sm:$0xff pattern:$0x75316420]
  %v3226 = vld.sshfl [vmem:[#allocation1 + $0x8] sm:$0xff pattern:$0x75316420]
  %v3227 = vld.sshfl [vmem:[#allocation1 + $0x10] sm:$0xff pattern:$0x75316420]
  %v3228 = vld.sshfl [vmem:[#allocation1 + $0x18] sm:$0xff pattern:$0x75316420]
  %v3229 = vld.sshfl [vmem:[#allocation1 + $0x20] sm:$0xff pattern:$0x75316420]
  %v3230 = vld.sshfl [vmem:[#allocation1 + $0x28] sm:$0xff pattern:$0x75316420]
  %v3231 = vld.sshfl [vmem:[#allocation1 + $0x30] sm:$0xff pattern:$0x75316420]
  %v3232 = vld.sshfl [vmem:[#allocation1 + $0x38] sm:$0xff pattern:$0x75316420]
  %v3249 = vpack.c.bf16 %v3211, %v3209
  %v3250 = vpack.c.bf16 %v3212, %v3210
  %v3251 = vpack.c.bf16 %v3215, %v3213
  %v3252 = vpack.c.bf16 %v3216, %v3214
  %v3253 = vpack.c.bf16 %v3227, %v3225
  %v3254 = vpack.c.bf16 %v3228, %v3226
  %v3255 = vpack.c.bf16 %v3231, %v3229
  %v3256 = vpack.c.bf16 %v3232, %v3230
  %s3257 = scalar_lea.vmem %s4, 464
  %v3258 = vld [vmem:[%s3257] sm:$0xff]
  %v3259 = vld [vmem:[%s3257 + $0x8] sm:$0xff]
  %v3260 = vld [vmem:[%s3257 + $0x10] sm:$0xff]
  %v3261 = vld [vmem:[%s3257 + $0x18] sm:$0xff]
  %v3262 = vld [vmem:[%s3257 + $0x20] sm:$0xff]
  %v3263 = vld [vmem:[%s3257 + $0x28] sm:$0xff]
  %v3264 = vld [vmem:[%s3257 + $0x30] sm:$0xff]
  %v3265 = vld [vmem:[%s3257 + $0x38] sm:$0xff]
  %v3266 = vld [vmem:[%s3257 + $0x40] sm:$0xff]
  %v3267 = vld [vmem:[%s3257 + $0x48] sm:$0xff]
  %v3268 = vld [vmem:[%s3257 + $0x50] sm:$0xff]
  %v3269 = vld [vmem:[%s3257 + $0x58] sm:$0xff]
  %v3270 = vld [vmem:[%s3257 + $0x60] sm:$0xff]
  %v3271 = vld [vmem:[%s3257 + $0x68] sm:$0xff]
  %v3272 = vld [vmem:[%s3257 + $0x70] sm:$0xff]
  %v3273 = vld [vmem:[%s3257 + $0x78] sm:$0xff]
  %v3274 = vld [vmem:[%s3257 + $0x80] sm:$0xff]
  %v3275 = vld [vmem:[%s3257 + $0x88] sm:$0xff]
  %v3276 = vld [vmem:[%s3257 + $0x90] sm:$0xff]
  %v3277 = vld [vmem:[%s3257 + $0x98] sm:$0xff]
  %v3278 = vld [vmem:[%s3257 + $0xa0] sm:$0xff]
  %v3279 = vld [vmem:[%s3257 + $0xa8] sm:$0xff]
  %v3280 = vld [vmem:[%s3257 + $0xb0] sm:$0xff]
  %v3281 = vld [vmem:[%s3257 + $0xb8] sm:$0xff]
  %v3282 = vld [vmem:[%s3257 + $0xc0] sm:$0xff]
  %v3283 = vld [vmem:[%s3257 + $0xc8] sm:$0xff]
  %v3284 = vld [vmem:[%s3257 + $0xd0] sm:$0xff]
  %v3285 = vld [vmem:[%s3257 + $0xd8] sm:$0xff]
  %v3286 = vld [vmem:[%s3257 + $0xe0] sm:$0x77]
  %v3316 = vunpack.c.l.b16 %v3258
  %v3317 = vunpack.c.h.b16 %v3258
  %v3318 = vunpack.c.l.b16 %v3259
  %v3319 = vunpack.c.h.b16 %v3259
  %v3320 = vunpack.c.l.b16 %v3260
  %v3321 = vunpack.c.h.b16 %v3260
  %v3322 = vunpack.c.l.b16 %v3261
  %v3323 = vunpack.c.h.b16 %v3261
  %v3324 = vunpack.c.l.b16 %v3262
  %v3325 = vunpack.c.h.b16 %v3262
  %v3326 = vunpack.c.l.b16 %v3263
  %v3327 = vunpack.c.h.b16 %v3263
  %v3328 = vunpack.c.l.b16 %v3264
  %v3329 = vunpack.c.h.b16 %v3264
  %v3330 = vunpack.c.l.b16 %v3265
  %v3331 = vunpack.c.h.b16 %v3265
  %v3332 = vunpack.c.l.b16 %v3266
  %v3333 = vunpack.c.h.b16 %v3266
  %v3334 = vunpack.c.l.b16 %v3267
  %v3335 = vunpack.c.h.b16 %v3267
  %v3336 = vunpack.c.l.b16 %v3268
  %v3337 = vunpack.c.h.b16 %v3268
  %v3338 = vunpack.c.l.b16 %v3269
  %v3339 = vunpack.c.h.b16 %v3269
  %v3340 = vunpack.c.l.b16 %v3270
  %v3341 = vunpack.c.h.b16 %v3270
  %v3342 = vunpack.c.l.b16 %v3271
  %v3343 = vunpack.c.h.b16 %v3271
  %v3344 = vunpack.c.l.b16 %v3272
  %v3345 = vunpack.c.h.b16 %v3272
  %v3346 = vunpack.c.l.b16 %v3273
  %v3347 = vunpack.c.h.b16 %v3273
  %v3348 = vunpack.c.l.b16 %v3274
  %v3349 = vunpack.c.h.b16 %v3274
  %v3350 = vunpack.c.l.b16 %v3275
  %v3351 = vunpack.c.h.b16 %v3275
  %v3352 = vunpack.c.l.b16 %v3276
  %v3353 = vunpack.c.h.b16 %v3276
  %v3354 = vunpack.c.l.b16 %v3277
  %v3355 = vunpack.c.h.b16 %v3277
  %v3356 = vunpack.c.l.b16 %v3278
  %v3357 = vunpack.c.h.b16 %v3278
  %v3358 = vunpack.c.l.b16 %v3279
  %v3359 = vunpack.c.h.b16 %v3279
  %v3360 = vunpack.c.l.b16 %v3280
  %v3361 = vunpack.c.h.b16 %v3280
  %v3362 = vunpack.c.l.b16 %v3281
  %v3363 = vunpack.c.h.b16 %v3281
  %v3364 = vunpack.c.l.b16 %v3282
  %v3365 = vunpack.c.h.b16 %v3282
  %v3366 = vunpack.c.l.b16 %v3283
  %v3367 = vunpack.c.h.b16 %v3283
  %v3368 = vunpack.c.l.b16 %v3284
  %v3369 = vunpack.c.h.b16 %v3284
  %v3370 = vunpack.c.l.b16 %v3285
  %v3371 = vunpack.c.h.b16 %v3285
  %v3372 = vunpack.c.l.b16 %v3286
  %v3373 = vunpack.c.h.b16 %v3286
  %v3374 = vpack.c.b16 %v3318, %v3316
  %v3375 = vpack.c.b16 %v3319, %v3317
  %v3376 = vpack.c.b16 %v3322, %v3320
  %v3377 = vpack.c.b16 %v3323, %v3321
  %v3378 = vpack.c.b16 %v3326, %v3324
  %v3379 = vpack.c.b16 %v3327, %v3325
  %v3380 = vpack.c.b16 %v3330, %v3328
  %v3381 = vpack.c.b16 %v3331, %v3329
  %v3382 = vpack.c.b16 %v3334, %v3332
  %v3383 = vpack.c.b16 %v3335, %v3333
  %v3384 = vpack.c.b16 %v3338, %v3336
  %v3385 = vpack.c.b16 %v3339, %v3337
  %v3386 = vpack.c.b16 %v3342, %v3340
  %v3387 = vpack.c.b16 %v3343, %v3341
  %v3388 = vpack.c.b16 %v3346, %v3344
  %v3389 = vpack.c.b16 %v3347, %v3345
  %v3390 = vpack.c.b16 %v3350, %v3348
  %v3391 = vpack.c.b16 %v3351, %v3349
  %v3392 = vpack.c.b16 %v3354, %v3352
  %v3393 = vpack.c.b16 %v3355, %v3353
  %v3394 = vpack.c.b16 %v3358, %v3356
  %v3395 = vpack.c.b16 %v3359, %v3357
  %v3396 = vpack.c.b16 %v3362, %v3360
  %v3397 = vpack.c.b16 %v3363, %v3361
  %v3398 = vpack.c.b16 %v3366, %v3364
  %v3399 = vpack.c.b16 %v3367, %v3365
  %v3400 = vpack.c.b16 %v3370, %v3368
  %v3401 = vpack.c.b16 %v3371, %v3369
  %v3402 = vpack.c.b16 %v3372, %v3372
  %v3403 = vpack.c.b16 %v3373, %v3373
  %v3433 = vsel %vm2721, %v3250, 0
  %v3436 = vsel %vm2721, %v3252, 0
  %v3439 = vsel %vm2721, %v3254, 0
  %v3442 = vsel %vm2721, %v3256, 0
  %v3445 = vsel %vm2424, %v3402, 0
  %v3448 = vsel %vm2424, %v3403, 0
  %3450 = vmatpush.bf16.msra.mxu0 %v3388
  %3451 = vmatpush.bf16.msra.mxu0 %v3386
  %3452 = vmatpush.bf16.msra.mxu0 %v3384
  %3453 = vmatpush.bf16.msra.mxu0 %v3382
  %3454 = vmatpush.bf16.msra.mxu0 %v3380
  %3455 = vmatpush.bf16.msra.mxu0 %v3378
  %3456 = vmatpush.bf16.msra.mxu0 %v3376
  %3457 = vmatpush.bf16.msra.mxu0 %v3374
  %3458 = vmatmul.bf16.gmra.mxu0 %v3249
  %v3459 = vpop.f32.mrf.mxu0
  %v3460 = vadd.f32 0.0, %v3459
  %v3461 = vpop.f32.mrf.mxu0
  %v3462 = vadd.f32 0.0, %v3461
  %3463 = vmatmul.bf16.gmra.mxu0 %v3251
  %v3464 = vpop.f32.mrf.mxu0
  %v3465 = vadd.f32 0.0, %v3464
  %v3466 = vpop.f32.mrf.mxu0
  %v3467 = vadd.f32 0.0, %v3466
  %3468 = vmatmul.bf16.gmra.mxu0 %v3253
  %v3469 = vpop.f32.mrf.mxu0
  %v3470 = vadd.f32 0.0, %v3469
  %v3471 = vpop.f32.mrf.mxu0
  %v3472 = vadd.f32 0.0, %v3471
  %3473 = vmatmul.bf16.gmra.mxu0 %v3255
  %v3474 = vpop.f32.mrf.mxu0
  %v3475 = vadd.f32 0.0, %v3474
  %v3476 = vpop.f32.mrf.mxu0
  %v3477 = vadd.f32 0.0, %v3476
  %3478 = vdwg.mxu0
  %3479 = vmatpush.bf16.msra.mxu0 0
  %3480 = vmatpush.bf16.msra.mxu0 %v3445
  %3481 = vmatpush.bf16.msra.mxu0 %v3400
  %3482 = vmatpush.bf16.msra.mxu0 %v3398
  %3483 = vmatpush.bf16.msra.mxu0 %v3396
  %3484 = vmatpush.bf16.msra.mxu0 %v3394
  %3485 = vmatpush.bf16.msra.mxu0 %v3392
  %3486 = vmatpush.bf16.msra.mxu0 %v3390
  %3487 = vmatmul.bf16.gmra.mxu0 %v3433
  %v3488 = vpop.f32.mrf.mxu0
  %v3489 = vadd.f32 %v3460, %v3488
  %v3490 = vpop.f32.mrf.mxu0
  %v3491 = vadd.f32 %v3462, %v3490
  %3492 = vmatmul.bf16.gmra.mxu0 %v3436
  %v3493 = vpop.f32.mrf.mxu0
  %v3494 = vadd.f32 %v3465, %v3493
  %v3495 = vpop.f32.mrf.mxu0
  %v3496 = vadd.f32 %v3467, %v3495
  %3497 = vmatmul.bf16.gmra.mxu0 %v3439
  %v3498 = vpop.f32.mrf.mxu0
  %v3499 = vadd.f32 %v3470, %v3498
  %v3500 = vpop.f32.mrf.mxu0
  %v3501 = vadd.f32 %v3472, %v3500
  %3502 = vmatmul.bf16.gmra.mxu0 %v3442
  %v3503 = vpop.f32.mrf.mxu0
  %v3504 = vadd.f32 %v3475, %v3503
  %v3505 = vpop.f32.mrf.mxu0
  %v3506 = vadd.f32 %v3477, %v3505
  %3507 = vdwg.mxu0
  %3508 = vmatpush.bf16.msra.mxu0 %v3389
  %3509 = vmatpush.bf16.msra.mxu0 %v3387
  %3510 = vmatpush.bf16.msra.mxu0 %v3385
  %3511 = vmatpush.bf16.msra.mxu0 %v3383
  %3512 = vmatpush.bf16.msra.mxu0 %v3381
  %3513 = vmatpush.bf16.msra.mxu0 %v3379
  %3514 = vmatpush.bf16.msra.mxu0 %v3377
  %3515 = vmatpush.bf16.msra.mxu0 %v3375
  %3516 = vmatmul.bf16.gmra.mxu0 %v3249
  %v3517 = vpop.f32.mrf.mxu0
  %v3518 = vadd.f32 0.0, %v3517
  %v3519 = vpop.f32.mrf.mxu0
  %v3520 = vadd.f32 0.0, %v3519
  %3521 = vmatmul.bf16.gmra.mxu0 %v3251
  %v3522 = vpop.f32.mrf.mxu0
  %v3523 = vadd.f32 0.0, %v3522
  %v3524 = vpop.f32.mrf.mxu0
  %v3525 = vadd.f32 0.0, %v3524
  %3526 = vmatmul.bf16.gmra.mxu0 %v3253
  %v3527 = vpop.f32.mrf.mxu0
  %v3528 = vadd.f32 0.0, %v3527
  %v3529 = vpop.f32.mrf.mxu0
  %v3530 = vadd.f32 0.0, %v3529
  %3531 = vmatmul.bf16.gmra.mxu0 %v3255
  %v3532 = vpop.f32.mrf.mxu0
  %v3533 = vadd.f32 0.0, %v3532
  %v3534 = vpop.f32.mrf.mxu0
  %v3535 = vadd.f32 0.0, %v3534
  %3536 = vdwg.mxu0
  %3537 = vmatpush.bf16.msra.mxu0 0
  %3538 = vmatpush.bf16.msra.mxu0 %v3448
  %3539 = vmatpush.bf16.msra.mxu0 %v3401
  %3540 = vmatpush.bf16.msra.mxu0 %v3399
  %3541 = vmatpush.bf16.msra.mxu0 %v3397
  %3542 = vmatpush.bf16.msra.mxu0 %v3395
  %3543 = vmatpush.bf16.msra.mxu0 %v3393
  %3544 = vmatpush.bf16.msra.mxu0 %v3391
  %3545 = vmatmul.bf16.gmra.mxu0 %v3433
  %v3546 = vpop.f32.mrf.mxu0
  %v3547 = vadd.f32 %v3518, %v3546
  %v3548 = vpop.f32.mrf.mxu0
  %v3549 = vadd.f32 %v3520, %v3548
  %3550 = vmatmul.bf16.gmra.mxu0 %v3436
  %v3551 = vpop.f32.mrf.mxu0
  %v3552 = vadd.f32 %v3523, %v3551
  %v3553 = vpop.f32.mrf.mxu0
  %v3554 = vadd.f32 %v3525, %v3553
  %3555 = vmatmul.bf16.gmra.mxu0 %v3439
  %v3556 = vpop.f32.mrf.mxu0
  %v3557 = vadd.f32 %v3528, %v3556
  %v3558 = vpop.f32.mrf.mxu0
  %v3559 = vadd.f32 %v3530, %v3558
  %3560 = vmatmul.bf16.gmra.mxu0 %v3442
  %v3561 = vpop.f32.mrf.mxu0
  %v3562 = vadd.f32 %v3533, %v3561
  %v3563 = vpop.f32.mrf.mxu0
  %v3564 = vadd.f32 %v3535, %v3563
  %3565 = vdwg.mxu0
  %v3566 = vadd.f32 %v3058, %v3489
  %v3567 = vadd.f32 %v3116, %v3547
  %v3568 = vadd.f32 %v3060, %v3491
  %v3569 = vadd.f32 %v3118, %v3549
  %v3570 = vadd.f32 %v3063, %v3494
  %v3571 = vadd.f32 %v3121, %v3552
  %v3572 = vadd.f32 %v3065, %v3496
  %v3573 = vadd.f32 %v3123, %v3554
  %v3574 = vadd.f32 %v3068, %v3499
  %v3575 = vadd.f32 %v3126, %v3557
  %v3576 = vadd.f32 %v3070, %v3501
  %v3577 = vadd.f32 %v3128, %v3559
  %v3578 = vadd.f32 %v3073, %v3504
  %v3579 = vadd.f32 %v3131, %v3562
  %v3580 = vadd.f32 %v3075, %v3506
  %v3581 = vadd.f32 %v3133, %v3564
  %vm3582 = vcmask 1040384
  %vm3583 = vcmask 1044484
  %vm3584 = vmor %vm3582, %vm3583
  %v3585 = vrot.slane %v2296, 7
  %v3586 = vrot.slane %v3585, 4
  %v3587 = vrot.slane %v2298, 7
  %v3588 = vsel %vm3584, %v3586, %v3587
  %v3589 = vrot.slane %v3587, 4
  %v3590 = vrot.slane %v2299, 7
  %v3591 = vsel %vm3584, %v3589, %v3590
  %v3592 = vrot.slane %v2301, 7
  %v3593 = vrot.slane %v3592, 4
  %v3594 = vrot.slane %v2302, 7
  %v3595 = vsel %vm3584, %v3593, %v3594
  %v3596 = vrot.slane %v3594, 4
  %v3597 = vrot.slane %v2304, 7
  %v3598 = vsel %vm3584, %v3596, %v3597
  %v3599 = vrot.slane %v2305, 7
  %v3600 = vrot.slane %v3599, 4
  %v3601 = vrot.slane %v2307, 7
  %v3602 = vsel %vm3584, %v3600, %v3601
  %v3603 = vrot.slane %v3601, 4
  %v3604 = vrot.slane %v2308, 7
  %v3605 = vsel %vm3584, %v3603, %v3604
  %v3606 = vrot.slane %v2310, 7
  %v3607 = vrot.slane %v3606, 4
  %v3608 = vrot.slane %v2311, 7
  %v3609 = vsel %vm3584, %v3607, %v3608
  %v3610 = vrot.slane %v3608, 4
  %v3611 = vrot.slane %v2313, 7
  %v3612 = vsel %vm3584, %v3610, %v3611
  %v3613 = vrot.slane %v2314, 7
  %v3614 = vrot.slane %v3613, 4
  %v3615 = vrot.slane %v2316, 7
  %v3616 = vsel %vm3584, %v3614, %v3615
  %v3617 = vrot.slane %v3615, 4
  %v3618 = vrot.slane %v2317, 7
  %v3619 = vsel %vm3584, %v3617, %v3618
  %v3620 = vrot.slane %v2319, 7
  %v3621 = vrot.slane %v3620, 4
  %v3622 = vrot.slane %v2320, 7
  %v3623 = vsel %vm3584, %v3621, %v3622
  %v3624 = vrot.slane %v3622, 4
  %v3625 = vrot.slane %v2322, 7
  %v3626 = vsel %vm3584, %v3624, %v3625
  %v3627 = vrot.slane %v2323, 7
  %v3628 = vrot.slane %v3627, 4
  %v3629 = vrot.slane %v2325, 7
  %v3630 = vsel %vm3584, %v3628, %v3629
  %v3631 = vrot.slane %v3629, 4
  %v3632 = vrot.slane %v2326, 7
  %v3633 = vsel %vm3584, %v3631, %v3632
  %v3634 = vrot.slane %v2328, 7
  %v3635 = vrot.slane %v3634, 4
  %v3636 = vrot.slane %v2329, 7
  %v3637 = vsel %vm3584, %v3635, %v3636
  %v3638 = vrot.slane %v3636, 4
  %v3639 = vrot.slane %v2331, 7
  %v3640 = vsel %vm3584, %v3638, %v3639
  %3641 = vst [vmem:[#allocation1] ss:$2 sm:$0xff] %v3588
  %s3642 = scalar_lea.vmem [#allocation1], 1
  %3643 = vst [vmem:[%s3642] ss:$2 sm:$0xff] %v3591
  %s3644 = scalar_lea.vmem [#allocation1], 16
  %3645 = vst [vmem:[%s3644] ss:$2 sm:$0xff] %v3595
  %s3646 = scalar_lea.vmem [#allocation1], 17
  %3647 = vst [vmem:[%s3646] ss:$2 sm:$0xff] %v3598
  %s3648 = scalar_lea.vmem [#allocation1], 32
  %3649 = vst [vmem:[%s3648] ss:$2 sm:$0xff] %v3602
  %s3650 = scalar_lea.vmem [#allocation1], 33
  %3651 = vst [vmem:[%s3650] ss:$2 sm:$0xff] %v3605
  %s3652 = scalar_lea.vmem [#allocation1], 48
  %3653 = vst [vmem:[%s3652] ss:$2 sm:$0xff] %v3609
  %s3654 = scalar_lea.vmem [#allocation1], 49
  %3655 = vst [vmem:[%s3654] ss:$2 sm:$0xff] %v3612
  %v3656 = vld.sshfl [vmem:[#allocation1] sm:$0xff pattern:$0x75316420]
  %v3657 = vld.sshfl [vmem:[#allocation1 + $0x8] sm:$0xff pattern:$0x75316420]
  %v3658 = vld.sshfl [vmem:[#allocation1 + $0x10] sm:$0xff pattern:$0x75316420]
  %v3659 = vld.sshfl [vmem:[#allocation1 + $0x18] sm:$0xff pattern:$0x75316420]
  %v3660 = vld.sshfl [vmem:[#allocation1 + $0x20] sm:$0xff pattern:$0x75316420]
  %v3661 = vld.sshfl [vmem:[#allocation1 + $0x28] sm:$0xff pattern:$0x75316420]
  %v3662 = vld.sshfl [vmem:[#allocation1 + $0x30] sm:$0xff pattern:$0x75316420]
  %v3663 = vld.sshfl [vmem:[#allocation1 + $0x38] sm:$0xff pattern:$0x75316420]
  %3664 = vst [vmem:[#allocation1] ss:$2 sm:$0xff] %v3616
  %3665 = vst [vmem:[%s3642] ss:$2 sm:$0xff] %v3619
  %3666 = vst [vmem:[%s3644] ss:$2 sm:$0xff] %v3623
  %3667 = vst [vmem:[%s3646] ss:$2 sm:$0xff] %v3626
  %3668 = vst [vmem:[%s3648] ss:$2 sm:$0xff] %v3630
  %3669 = vst [vmem:[%s3650] ss:$2 sm:$0xff] %v3633
  %3670 = vst [vmem:[%s3652] ss:$2 sm:$0xff] %v3637
  %3671 = vst [vmem:[%s3654] ss:$2 sm:$0xff] %v3640
  %v3672 = vld.sshfl [vmem:[#allocation1] sm:$0xff pattern:$0x75316420]
  %v3673 = vld.sshfl [vmem:[#allocation1 + $0x8] sm:$0xff pattern:$0x75316420]
  %v3674 = vld.sshfl [vmem:[#allocation1 + $0x10] sm:$0xff pattern:$0x75316420]
  %v3675 = vld.sshfl [vmem:[#allocation1 + $0x18] sm:$0xff pattern:$0x75316420]
  %v3676 = vld.sshfl [vmem:[#allocation1 + $0x20] sm:$0xff pattern:$0x75316420]
  %v3677 = vld.sshfl [vmem:[#allocation1 + $0x28] sm:$0xff pattern:$0x75316420]
  %v3678 = vld.sshfl [vmem:[#allocation1 + $0x30] sm:$0xff pattern:$0x75316420]
  %v3679 = vld.sshfl [vmem:[#allocation1 + $0x38] sm:$0xff pattern:$0x75316420]
  %v3696 = vpack.c.bf16 %v3658, %v3656
  %v3697 = vpack.c.bf16 %v3659, %v3657
  %v3698 = vpack.c.bf16 %v3662, %v3660
  %v3699 = vpack.c.bf16 %v3663, %v3661
  %v3700 = vpack.c.bf16 %v3674, %v3672
  %v3701 = vpack.c.bf16 %v3675, %v3673
  %v3702 = vpack.c.bf16 %v3678, %v3676
  %v3703 = vpack.c.bf16 %v3679, %v3677
  %s3704 = scalar_lea.vmem %s4, 696
  %v3705 = vld [vmem:[%s3704] sm:$0xff]
  %v3706 = vld [vmem:[%s3704 + $0x8] sm:$0xff]
  %v3707 = vld [vmem:[%s3704 + $0x10] sm:$0xff]
  %v3708 = vld [vmem:[%s3704 + $0x18] sm:$0xff]
  %v3709 = vld [vmem:[%s3704 + $0x20] sm:$0xff]
  %v3710 = vld [vmem:[%s3704 + $0x28] sm:$0xff]
  %v3711 = vld [vmem:[%s3704 + $0x30] sm:$0xff]
  %v3712 = vld [vmem:[%s3704 + $0x38] sm:$0xff]
  %v3713 = vld [vmem:[%s3704 + $0x40] sm:$0xff]
  %v3714 = vld [vmem:[%s3704 + $0x48] sm:$0xff]
  %v3715 = vld [vmem:[%s3704 + $0x50] sm:$0xff]
  %v3716 = vld [vmem:[%s3704 + $0x58] sm:$0xff]
  %v3717 = vld [vmem:[%s3704 + $0x60] sm:$0xff]
  %v3718 = vld [vmem:[%s3704 + $0x68] sm:$0xff]
  %v3719 = vld [vmem:[%s3704 + $0x70] sm:$0xff]
  %v3720 = vld [vmem:[%s3704 + $0x78] sm:$0xff]
  %v3721 = vld [vmem:[%s3704 + $0x80] sm:$0xff]
  %v3722 = vld [vmem:[%s3704 + $0x88] sm:$0xff]
  %v3723 = vld [vmem:[%s3704 + $0x90] sm:$0xff]
  %v3724 = vld [vmem:[%s3704 + $0x98] sm:$0xff]
  %v3725 = vld [vmem:[%s3704 + $0xa0] sm:$0xff]
  %v3726 = vld [vmem:[%s3704 + $0xa8] sm:$0xff]
  %v3727 = vld [vmem:[%s3704 + $0xb0] sm:$0xff]
  %v3728 = vld [vmem:[%s3704 + $0xb8] sm:$0xff]
  %v3729 = vld [vmem:[%s3704 + $0xc0] sm:$0xff]
  %v3730 = vld [vmem:[%s3704 + $0xc8] sm:$0xff]
  %v3731 = vld [vmem:[%s3704 + $0xd0] sm:$0xff]
  %v3732 = vld [vmem:[%s3704 + $0xd8] sm:$0xff]
  %v3733 = vld [vmem:[%s3704 + $0xe0] sm:$0x77]
  %v3763 = vunpack.c.l.b16 %v3705
  %v3764 = vunpack.c.h.b16 %v3705
  %v3765 = vunpack.c.l.b16 %v3706
  %v3766 = vunpack.c.h.b16 %v3706
  %v3767 = vunpack.c.l.b16 %v3707
  %v3768 = vunpack.c.h.b16 %v3707
  %v3769 = vunpack.c.l.b16 %v3708
  %v3770 = vunpack.c.h.b16 %v3708
  %v3771 = vunpack.c.l.b16 %v3709
  %v3772 = vunpack.c.h.b16 %v3709
  %v3773 = vunpack.c.l.b16 %v3710
  %v3774 = vunpack.c.h.b16 %v3710
  %v3775 = vunpack.c.l.b16 %v3711
  %v3776 = vunpack.c.h.b16 %v3711
  %v3777 = vunpack.c.l.b16 %v3712
  %v3778 = vunpack.c.h.b16 %v3712
  %v3779 = vunpack.c.l.b16 %v3713
  %v3780 = vunpack.c.h.b16 %v3713
  %v3781 = vunpack.c.l.b16 %v3714
  %v3782 = vunpack.c.h.b16 %v3714
  %v3783 = vunpack.c.l.b16 %v3715
  %v3784 = vunpack.c.h.b16 %v3715
  %v3785 = vunpack.c.l.b16 %v3716
  %v3786 = vunpack.c.h.b16 %v3716
  %v3787 = vunpack.c.l.b16 %v3717
  %v3788 = vunpack.c.h.b16 %v3717
  %v3789 = vunpack.c.l.b16 %v3718
  %v3790 = vunpack.c.h.b16 %v3718
  %v3791 = vunpack.c.l.b16 %v3719
  %v3792 = vunpack.c.h.b16 %v3719
  %v3793 = vunpack.c.l.b16 %v3720
  %v3794 = vunpack.c.h.b16 %v3720
  %v3795 = vunpack.c.l.b16 %v3721
  %v3796 = vunpack.c.h.b16 %v3721
  %v3797 = vunpack.c.l.b16 %v3722
  %v3798 = vunpack.c.h.b16 %v3722
  %v3799 = vunpack.c.l.b16 %v3723
  %v3800 = vunpack.c.h.b16 %v3723
  %v3801 = vunpack.c.l.b16 %v3724
  %v3802 = vunpack.c.h.b16 %v3724
  %v3803 = vunpack.c.l.b16 %v3725
  %v3804 = vunpack.c.h.b16 %v3725
  %v3805 = vunpack.c.l.b16 %v3726
  %v3806 = vunpack.c.h.b16 %v3726
  %v3807 = vunpack.c.l.b16 %v3727
  %v3808 = vunpack.c.h.b16 %v3727
  %v3809 = vunpack.c.l.b16 %v3728
  %v3810 = vunpack.c.h.b16 %v3728
  %v3811 = vunpack.c.l.b16 %v3729
  %v3812 = vunpack.c.h.b16 %v3729
  %v3813 = vunpack.c.l.b16 %v3730
  %v3814 = vunpack.c.h.b16 %v3730
  %v3815 = vunpack.c.l.b16 %v3731
  %v3816 = vunpack.c.h.b16 %v3731
  %v3817 = vunpack.c.l.b16 %v3732
  %v3818 = vunpack.c.h.b16 %v3732
  %v3819 = vunpack.c.l.b16 %v3733
  %v3820 = vunpack.c.h.b16 %v3733
  %v3821 = vpack.c.b16 %v3765, %v3763
  %v3822 = vpack.c.b16 %v3766, %v3764
  %v3823 = vpack.c.b16 %v3769, %v3767
  %v3824 = vpack.c.b16 %v3770, %v3768
  %v3825 = vpack.c.b16 %v3773, %v3771
  %v3826 = vpack.c.b16 %v3774, %v3772
  %v3827 = vpack.c.b16 %v3777, %v3775
  %v3828 = vpack.c.b16 %v3778, %v3776
  %v3829 = vpack.c.b16 %v3781, %v3779
  %v3830 = vpack.c.b16 %v3782, %v3780
  %v3831 = vpack.c.b16 %v3785, %v3783
  %v3832 = vpack.c.b16 %v3786, %v3784
  %v3833 = vpack.c.b16 %v3789, %v3787
  %v3834 = vpack.c.b16 %v3790, %v3788
  %v3835 = vpack.c.b16 %v3793, %v3791
  %v3836 = vpack.c.b16 %v3794, %v3792
  %v3837 = vpack.c.b16 %v3797, %v3795
  %v3838 = vpack.c.b16 %v3798, %v3796
  %v3839 = vpack.c.b16 %v3801, %v3799
  %v3840 = vpack.c.b16 %v3802, %v3800
  %v3841 = vpack.c.b16 %v3805, %v3803
  %v3842 = vpack.c.b16 %v3806, %v3804
  %v3843 = vpack.c.b16 %v3809, %v3807
  %v3844 = vpack.c.b16 %v3810, %v3808
  %v3845 = vpack.c.b16 %v3813, %v3811
  %v3846 = vpack.c.b16 %v3814, %v3812
  %v3847 = vpack.c.b16 %v3817, %v3815
  %v3848 = vpack.c.b16 %v3818, %v3816
  %v3849 = vpack.c.b16 %v3819, %v3819
  %v3850 = vpack.c.b16 %v3820, %v3820
  %v3880 = vsel %vm2721, %v3697, 0
  %v3883 = vsel %vm2721, %v3699, 0
  %v3886 = vsel %vm2721, %v3701, 0
  %v3889 = vsel %vm2721, %v3703, 0
  %v3892 = vsel %vm2424, %v3849, 0
  %v3895 = vsel %vm2424, %v3850, 0
  %3897 = vmatpush.bf16.msra.mxu0 %v3835
  %3898 = vmatpush.bf16.msra.mxu0 %v3833
  %3899 = vmatpush.bf16.msra.mxu0 %v3831
  %3900 = vmatpush.bf16.msra.mxu0 %v3829
  %3901 = vmatpush.bf16.msra.mxu0 %v3827
  %3902 = vmatpush.bf16.msra.mxu0 %v3825
  %3903 = vmatpush.bf16.msra.mxu0 %v3823
  %3904 = vmatpush.bf16.msra.mxu0 %v3821
  %3905 = vmatmul.bf16.gmra.mxu0 %v3696
  %v3906 = vpop.f32.mrf.mxu0
  %v3907 = vadd.f32 0.0, %v3906
  %v3908 = vpop.f32.mrf.mxu0
  %v3909 = vadd.f32 0.0, %v3908
  %3910 = vmatmul.bf16.gmra.mxu0 %v3698
  %v3911 = vpop.f32.mrf.mxu0
  %v3912 = vadd.f32 0.0, %v3911
  %v3913 = vpop.f32.mrf.mxu0
  %v3914 = vadd.f32 0.0, %v3913
  %3915 = vmatmul.bf16.gmra.mxu0 %v3700
  %v3916 = vpop.f32.mrf.mxu0
  %v3917 = vadd.f32 0.0, %v3916
  %v3918 = vpop.f32.mrf.mxu0
  %v3919 = vadd.f32 0.0, %v3918
  %3920 = vmatmul.bf16.gmra.mxu0 %v3702
  %v3921 = vpop.f32.mrf.mxu0
  %v3922 = vadd.f32 0.0, %v3921
  %v3923 = vpop.f32.mrf.mxu0
  %v3924 = vadd.f32 0.0, %v3923
  %3925 = vdwg.mxu0
  %3926 = vmatpush.bf16.msra.mxu0 0
  %3927 = vmatpush.bf16.msra.mxu0 %v3892
  %3928 = vmatpush.bf16.msra.mxu0 %v3847
  %3929 = vmatpush.bf16.msra.mxu0 %v3845
  %3930 = vmatpush.bf16.msra.mxu0 %v3843
  %3931 = vmatpush.bf16.msra.mxu0 %v3841
  %3932 = vmatpush.bf16.msra.mxu0 %v3839
  %3933 = vmatpush.bf16.msra.mxu0 %v3837
  %3934 = vmatmul.bf16.gmra.mxu0 %v3880
  %v3935 = vpop.f32.mrf.mxu0
  %v3936 = vadd.f32 %v3907, %v3935
  %v3937 = vpop.f32.mrf.mxu0
  %v3938 = vadd.f32 %v3909, %v3937
  %3939 = vmatmul.bf16.gmra.mxu0 %v3883
  %v3940 = vpop.f32.mrf.mxu0
  %v3941 = vadd.f32 %v3912, %v3940
  %v3942 = vpop.f32.mrf.mxu0
  %v3943 = vadd.f32 %v3914, %v3942
  %3944 = vmatmul.bf16.gmra.mxu0 %v3886
  %v3945 = vpop.f32.mrf.mxu0
  %v3946 = vadd.f32 %v3917, %v3945
  %v3947 = vpop.f32.mrf.mxu0
  %v3948 = vadd.f32 %v3919, %v3947
  %3949 = vmatmul.bf16.gmra.mxu0 %v3889
  %v3950 = vpop.f32.mrf.mxu0
  %v3951 = vadd.f32 %v3922, %v3950
  %v3952 = vpop.f32.mrf.mxu0
  %v3953 = vadd.f32 %v3924, %v3952
  %3954 = vdwg.mxu0
  %3955 = vmatpush.bf16.msra.mxu0 %v3836
  %3956 = vmatpush.bf16.msra.mxu0 %v3834
  %3957 = vmatpush.bf16.msra.mxu0 %v3832
  %3958 = vmatpush.bf16.msra.mxu0 %v3830
  %3959 = vmatpush.bf16.msra.mxu0 %v3828
  %3960 = vmatpush.bf16.msra.mxu0 %v3826
  %3961 = vmatpush.bf16.msra.mxu0 %v3824
  %3962 = vmatpush.bf16.msra.mxu0 %v3822
  %3963 = vmatmul.bf16.gmra.mxu0 %v3696
  %v3964 = vpop.f32.mrf.mxu0
  %v3965 = vadd.f32 0.0, %v3964
  %v3966 = vpop.f32.mrf.mxu0
  %v3967 = vadd.f32 0.0, %v3966
  %3968 = vmatmul.bf16.gmra.mxu0 %v3698
  %v3969 = vpop.f32.mrf.mxu0
  %v3970 = vadd.f32 0.0, %v3969
  %v3971 = vpop.f32.mrf.mxu0
  %v3972 = vadd.f32 0.0, %v3971
  %3973 = vmatmul.bf16.gmra.mxu0 %v3700
  %v3974 = vpop.f32.mrf.mxu0
  %v3975 = vadd.f32 0.0, %v3974
  %v3976 = vpop.f32.mrf.mxu0
  %v3977 = vadd.f32 0.0, %v3976
  %3978 = vmatmul.bf16.gmra.mxu0 %v3702
  %v3979 = vpop.f32.mrf.mxu0
  %v3980 = vadd.f32 0.0, %v3979
  %v3981 = vpop.f32.mrf.mxu0
  %v3982 = vadd.f32 0.0, %v3981
  %3983 = vdwg.mxu0
  %3984 = vmatpush.bf16.msra.mxu0 0
  %3985 = vmatpush.bf16.msra.mxu0 %v3895
  %3986 = vmatpush.bf16.msra.mxu0 %v3848
  %3987 = vmatpush.bf16.msra.mxu0 %v3846
  %3988 = vmatpush.bf16.msra.mxu0 %v3844
  %3989 = vmatpush.bf16.msra.mxu0 %v3842
  %3990 = vmatpush.bf16.msra.mxu0 %v3840
  %3991 = vmatpush.bf16.msra.mxu0 %v3838
  %3992 = vmatmul.bf16.gmra.mxu0 %v3880
  %v3993 = vpop.f32.mrf.mxu0
  %v3994 = vadd.f32 %v3965, %v3993
  %v3995 = vpop.f32.mrf.mxu0
  %v3996 = vadd.f32 %v3967, %v3995
  %3997 = vmatmul.bf16.gmra.mxu0 %v3883
  %v3998 = vpop.f32.mrf.mxu0
  %v3999 = vadd.f32 %v3970, %v3998
  %v4000 = vpop.f32.mrf.mxu0
  %v4001 = vadd.f32 %v3972, %v4000
  %4002 = vmatmul.bf16.gmra.mxu0 %v3886
  %v4003 = vpop.f32.mrf.mxu0
  %v4004 = vadd.f32 %v3975, %v4003
  %v4005 = vpop.f32.mrf.mxu0
  %v4006 = vadd.f32 %v3977, %v4005
  %4007 = vmatmul.bf16.gmra.mxu0 %v3889
  %v4008 = vpop.f32.mrf.mxu0
  %v4009 = vadd.f32 %v3980, %v4008
  %v4010 = vpop.f32.mrf.mxu0
  %v4011 = vadd.f32 %v3982, %v4010
  %4012 = vdwg.mxu0
  %v4013 = vadd.f32 %v3566, %v3936
  %v4014 = vadd.f32 %v3567, %v3994
  %v4015 = vadd.f32 %v3568, %v3938
  %v4016 = vadd.f32 %v3569, %v3996
  %v4017 = vadd.f32 %v3570, %v3941
  %v4018 = vadd.f32 %v3571, %v3999
  %v4019 = vadd.f32 %v3572, %v3943
  %v4020 = vadd.f32 %v3573, %v4001
  %v4021 = vadd.f32 %v3574, %v3946
  %v4022 = vadd.f32 %v3575, %v4004
  %v4023 = vadd.f32 %v3576, %v3948
  %v4024 = vadd.f32 %v3577, %v4006
  %v4025 = vadd.f32 %v3578, %v3951
  %v4026 = vadd.f32 %v3579, %v4009
  %v4027 = vadd.f32 %v3580, %v3953
  %v4028 = vadd.f32 %v3581, %v4011
  %4029 = vst [vmem:[#allocation1] ss:$2 sm:$0xff] %v2298
  %s4030 = scalar_lea.vmem [#allocation1], 1
  %4031 = vst [vmem:[%s4030] ss:$2 sm:$0xff] %v2299
  %s4032 = scalar_lea.vmem [#allocation1], 16
  %4033 = vst [vmem:[%s4032] ss:$2 sm:$0xff] %v2302
  %s4034 = scalar_lea.vmem [#allocation1], 17
  %4035 = vst [vmem:[%s4034] ss:$2 sm:$0xff] %v2304
  %s4036 = scalar_lea.vmem [#allocation1], 32
  %4037 = vst [vmem:[%s4036] ss:$2 sm:$0xff] %v2307
  %s4038 = scalar_lea.vmem [#allocation1], 33
  %4039 = vst [vmem:[%s4038] ss:$2 sm:$0xff] %v2308
  %s4040 = scalar_lea.vmem [#allocation1], 48
  %4041 = vst [vmem:[%s4040] ss:$2 sm:$0xff] %v2311
  %s4042 = scalar_lea.vmem [#allocation1], 49
  %4043 = vst [vmem:[%s4042] ss:$2 sm:$0xff] %v2313
  %v4044 = vld.sshfl [vmem:[#allocation1] sm:$0xff pattern:$0x75316420]
  %v4045 = vld.sshfl [vmem:[#allocation1 + $0x8] sm:$0xff pattern:$0x75316420]
  %v4046 = vld.sshfl [vmem:[#allocation1 + $0x10] sm:$0xff pattern:$0x75316420]
  %v4047 = vld.sshfl [vmem:[#allocation1 + $0x18] sm:$0xff pattern:$0x75316420]
  %v4048 = vld.sshfl [vmem:[#allocation1 + $0x20] sm:$0xff pattern:$0x75316420]
  %v4049 = vld.sshfl [vmem:[#allocation1 + $0x28] sm:$0xff pattern:$0x75316420]
  %v4050 = vld.sshfl [vmem:[#allocation1 + $0x30] sm:$0xff pattern:$0x75316420]
  %v4051 = vld.sshfl [vmem:[#allocation1 + $0x38] sm:$0xff pattern:$0x75316420]
  %4052 = vst [vmem:[#allocation1] ss:$2 sm:$0xff] %v2316
  %4053 = vst [vmem:[%s4030] ss:$2 sm:$0xff] %v2317
  %4054 = vst [vmem:[%s4032] ss:$2 sm:$0xff] %v2320
  %4055 = vst [vmem:[%s4034] ss:$2 sm:$0xff] %v2322
  %4056 = vst [vmem:[%s4036] ss:$2 sm:$0xff] %v2325
  %4057 = vst [vmem:[%s4038] ss:$2 sm:$0xff] %v2326
  %4058 = vst [vmem:[%s4040] ss:$2 sm:$0xff] %v2329
  %4059 = vst [vmem:[%s4042] ss:$2 sm:$0xff] %v2331
  %v4060 = vld.sshfl [vmem:[#allocation1] sm:$0xff pattern:$0x75316420]
  %v4061 = vld.sshfl [vmem:[#allocation1 + $0x8] sm:$0xff pattern:$0x75316420]
  %v4062 = vld.sshfl [vmem:[#allocation1 + $0x10] sm:$0xff pattern:$0x75316420]
  %v4063 = vld.sshfl [vmem:[#allocation1 + $0x18] sm:$0xff pattern:$0x75316420]
  %v4064 = vld.sshfl [vmem:[#allocation1 + $0x20] sm:$0xff pattern:$0x75316420]
  %v4065 = vld.sshfl [vmem:[#allocation1 + $0x28] sm:$0xff pattern:$0x75316420]
  %v4066 = vld.sshfl [vmem:[#allocation1 + $0x30] sm:$0xff pattern:$0x75316420]
  %v4067 = vld.sshfl [vmem:[#allocation1 + $0x38] sm:$0xff pattern:$0x75316420]
  %v4084 = vpack.c.bf16 %v4046, %v4044
  %v4085 = vpack.c.bf16 %v4047, %v4045
  %v4086 = vpack.c.bf16 %v4050, %v4048
  %v4087 = vpack.c.bf16 %v4051, %v4049
  %v4088 = vpack.c.bf16 %v4062, %v4060
  %v4089 = vpack.c.bf16 %v4063, %v4061
  %v4090 = vpack.c.bf16 %v4066, %v4064
  %v4091 = vpack.c.bf16 %v4067, %v4065
  %s4092 = scalar_lea.vmem %s4, 928
  %v4093 = vld [vmem:[%s4092] sm:$0xff]
  %v4094 = vld [vmem:[%s4092 + $0x8] sm:$0xff]
  %v4095 = vld [vmem:[%s4092 + $0x10] sm:$0xff]
  %v4096 = vld [vmem:[%s4092 + $0x18] sm:$0xff]
  %v4097 = vld [vmem:[%s4092 + $0x20] sm:$0xff]
  %v4098 = vld [vmem:[%s4092 + $0x28] sm:$0xff]
  %v4099 = vld [vmem:[%s4092 + $0x30] sm:$0xff]
  %v4100 = vld [vmem:[%s4092 + $0x38] sm:$0xff]
  %v4101 = vld [vmem:[%s4092 + $0x40] sm:$0xff]
  %v4102 = vld [vmem:[%s4092 + $0x48] sm:$0xff]
  %v4103 = vld [vmem:[%s4092 + $0x50] sm:$0xff]
  %v4104 = vld [vmem:[%s4092 + $0x58] sm:$0xff]
  %v4105 = vld [vmem:[%s4092 + $0x60] sm:$0xff]
  %v4106 = vld [vmem:[%s4092 + $0x68] sm:$0xff]
  %v4107 = vld [vmem:[%s4092 + $0x70] sm:$0xff]
  %v4108 = vld [vmem:[%s4092 + $0x78] sm:$0xff]
  %v4109 = vld [vmem:[%s4092 + $0x80] sm:$0xff]
  %v4110 = vld [vmem:[%s4092 + $0x88] sm:$0xff]
  %v4111 = vld [vmem:[%s4092 + $0x90] sm:$0xff]
  %v4112 = vld [vmem:[%s4092 + $0x98] sm:$0xff]
  %v4113 = vld [vmem:[%s4092 + $0xa0] sm:$0xff]
  %v4114 = vld [vmem:[%s4092 + $0xa8] sm:$0xff]
  %v4115 = vld [vmem:[%s4092 + $0xb0] sm:$0xff]
  %v4116 = vld [vmem:[%s4092 + $0xb8] sm:$0xff]
  %v4117 = vld [vmem:[%s4092 + $0xc0] sm:$0xff]
  %v4118 = vld [vmem:[%s4092 + $0xc8] sm:$0xff]
  %v4119 = vld [vmem:[%s4092 + $0xd0] sm:$0xff]
  %v4120 = vld [vmem:[%s4092 + $0xd8] sm:$0xff]
  %v4121 = vld [vmem:[%s4092 + $0xe0] sm:$0x77]
  %v4151 = vunpack.c.l.b16 %v4093
  %v4152 = vunpack.c.h.b16 %v4093
  %v4153 = vunpack.c.l.b16 %v4094
  %v4154 = vunpack.c.h.b16 %v4094
  %v4155 = vunpack.c.l.b16 %v4095
  %v4156 = vunpack.c.h.b16 %v4095
  %v4157 = vunpack.c.l.b16 %v4096
  %v4158 = vunpack.c.h.b16 %v4096
  %v4159 = vunpack.c.l.b16 %v4097
  %v4160 = vunpack.c.h.b16 %v4097
  %v4161 = vunpack.c.l.b16 %v4098
  %v4162 = vunpack.c.h.b16 %v4098
  %v4163 = vunpack.c.l.b16 %v4099
  %v4164 = vunpack.c.h.b16 %v4099
  %v4165 = vunpack.c.l.b16 %v4100
  %v4166 = vunpack.c.h.b16 %v4100
  %v4167 = vunpack.c.l.b16 %v4101
  %v4168 = vunpack.c.h.b16 %v4101
  %v4169 = vunpack.c.l.b16 %v4102
  %v4170 = vunpack.c.h.b16 %v4102
  %v4171 = vunpack.c.l.b16 %v4103
  %v4172 = vunpack.c.h.b16 %v4103
  %v4173 = vunpack.c.l.b16 %v4104
  %v4174 = vunpack.c.h.b16 %v4104
  %v4175 = vunpack.c.l.b16 %v4105
  %v4176 = vunpack.c.h.b16 %v4105
  %v4177 = vunpack.c.l.b16 %v4106
  %v4178 = vunpack.c.h.b16 %v4106
  %v4179 = vunpack.c.l.b16 %v4107
  %v4180 = vunpack.c.h.b16 %v4107
  %v4181 = vunpack.c.l.b16 %v4108
  %v4182 = vunpack.c.h.b16 %v4108
  %v4183 = vunpack.c.l.b16 %v4109
  %v4184 = vunpack.c.h.b16 %v4109
  %v4185 = vunpack.c.l.b16 %v4110
  %v4186 = vunpack.c.h.b16 %v4110
  %v4187 = vunpack.c.l.b16 %v4111
  %v4188 = vunpack.c.h.b16 %v4111
  %v4189 = vunpack.c.l.b16 %v4112
  %v4190 = vunpack.c.h.b16 %v4112
  %v4191 = vunpack.c.l.b16 %v4113
  %v4192 = vunpack.c.h.b16 %v4113
  %v4193 = vunpack.c.l.b16 %v4114
  %v4194 = vunpack.c.h.b16 %v4114
  %v4195 = vunpack.c.l.b16 %v4115
  %v4196 = vunpack.c.h.b16 %v4115
  %v4197 = vunpack.c.l.b16 %v4116
  %v4198 = vunpack.c.h.b16 %v4116
  %v4199 = vunpack.c.l.b16 %v4117
  %v4200 = vunpack.c.h.b16 %v4117
  %v4201 = vunpack.c.l.b16 %v4118
  %v4202 = vunpack.c.h.b16 %v4118
  %v4203 = vunpack.c.l.b16 %v4119
  %v4204 = vunpack.c.h.b16 %v4119
  %v4205 = vunpack.c.l.b16 %v4120
  %v4206 = vunpack.c.h.b16 %v4120
  %v4207 = vunpack.c.l.b16 %v4121
  %v4208 = vunpack.c.h.b16 %v4121
  %v4209 = vpack.c.b16 %v4153, %v4151
  %v4210 = vpack.c.b16 %v4154, %v4152
  %v4211 = vpack.c.b16 %v4157, %v4155
  %v4212 = vpack.c.b16 %v4158, %v4156
  %v4213 = vpack.c.b16 %v4161, %v4159
  %v4214 = vpack.c.b16 %v4162, %v4160
  %v4215 = vpack.c.b16 %v4165, %v4163
  %v4216 = vpack.c.b16 %v4166, %v4164
  %v4217 = vpack.c.b16 %v4169, %v4167
  %v4218 = vpack.c.b16 %v4170, %v4168
  %v4219 = vpack.c.b16 %v4173, %v4171
  %v4220 = vpack.c.b16 %v4174, %v4172
  %v4221 = vpack.c.b16 %v4177, %v4175
  %v4222 = vpack.c.b16 %v4178, %v4176
  %v4223 = vpack.c.b16 %v4181, %v4179
  %v4224 = vpack.c.b16 %v4182, %v4180
  %v4225 = vpack.c.b16 %v4185, %v4183
  %v4226 = vpack.c.b16 %v4186, %v4184
  %v4227 = vpack.c.b16 %v4189, %v4187
  %v4228 = vpack.c.b16 %v4190, %v4188
  %v4229 = vpack.c.b16 %v4193, %v4191
  %v4230 = vpack.c.b16 %v4194, %v4192
  %v4231 = vpack.c.b16 %v4197, %v4195
  %v4232 = vpack.c.b16 %v4198, %v4196
  %v4233 = vpack.c.b16 %v4201, %v4199
  %v4234 = vpack.c.b16 %v4202, %v4200
  %v4235 = vpack.c.b16 %v4205, %v4203
  %v4236 = vpack.c.b16 %v4206, %v4204
  %v4237 = vpack.c.b16 %v4207, %v4207
  %v4238 = vpack.c.b16 %v4208, %v4208
  %v4268 = vsel %vm2721, %v4085, 0
  %v4271 = vsel %vm2721, %v4087, 0
  %v4274 = vsel %vm2721, %v4089, 0
  %v4277 = vsel %vm2721, %v4091, 0
  %v4280 = vsel %vm2424, %v4237, 0
  %v4283 = vsel %vm2424, %v4238, 0
  %4285 = vmatpush.bf16.msra.mxu0 %v4223
  %4286 = vmatpush.bf16.msra.mxu0 %v4221
  %4287 = vmatpush.bf16.msra.mxu0 %v4219
  %4288 = vmatpush.bf16.msra.mxu0 %v4217
  %4289 = vmatpush.bf16.msra.mxu0 %v4215
  %4290 = vmatpush.bf16.msra.mxu0 %v4213
  %4291 = vmatpush.bf16.msra.mxu0 %v4211
  %4292 = vmatpush.bf16.msra.mxu0 %v4209
  %4293 = vmatmul.bf16.gmra.mxu0 %v4084
  %v4294 = vpop.f32.mrf.mxu0
  %v4295 = vadd.f32 0.0, %v4294
  %v4296 = vpop.f32.mrf.mxu0
  %v4297 = vadd.f32 0.0, %v4296
  %4298 = vmatmul.bf16.gmra.mxu0 %v4086
  %v4299 = vpop.f32.mrf.mxu0
  %v4300 = vadd.f32 0.0, %v4299
  %v4301 = vpop.f32.mrf.mxu0
  %v4302 = vadd.f32 0.0, %v4301
  %4303 = vmatmul.bf16.gmra.mxu0 %v4088
  %v4304 = vpop.f32.mrf.mxu0
  %v4305 = vadd.f32 0.0, %v4304
  %v4306 = vpop.f32.mrf.mxu0
  %v4307 = vadd.f32 0.0, %v4306
  %4308 = vmatmul.bf16.gmra.mxu0 %v4090
  %v4309 = vpop.f32.mrf.mxu0
  %v4310 = vadd.f32 0.0, %v4309
  %v4311 = vpop.f32.mrf.mxu0
  %v4312 = vadd.f32 0.0, %v4311
  %4313 = vdwg.mxu0
  %4314 = vmatpush.bf16.msra.mxu0 0
  %4315 = vmatpush.bf16.msra.mxu0 %v4280
  %4316 = vmatpush.bf16.msra.mxu0 %v4235
  %4317 = vmatpush.bf16.msra.mxu0 %v4233
  %4318 = vmatpush.bf16.msra.mxu0 %v4231
  %4319 = vmatpush.bf16.msra.mxu0 %v4229
  %4320 = vmatpush.bf16.msra.mxu0 %v4227
  %4321 = vmatpush.bf16.msra.mxu0 %v4225
  %4322 = vmatmul.bf16.gmra.mxu0 %v4268
  %v4323 = vpop.f32.mrf.mxu0
  %v4324 = vadd.f32 %v4295, %v4323
  %v4325 = vpop.f32.mrf.mxu0
  %v4326 = vadd.f32 %v4297, %v4325
  %4327 = vmatmul.bf16.gmra.mxu0 %v4271
  %v4328 = vpop.f32.mrf.mxu0
  %v4329 = vadd.f32 %v4300, %v4328
  %v4330 = vpop.f32.mrf.mxu0
  %v4331 = vadd.f32 %v4302, %v4330
  %4332 = vmatmul.bf16.gmra.mxu0 %v4274
  %v4333 = vpop.f32.mrf.mxu0
  %v4334 = vadd.f32 %v4305, %v4333
  %v4335 = vpop.f32.mrf.mxu0
  %v4336 = vadd.f32 %v4307, %v4335
  %4337 = vmatmul.bf16.gmra.mxu0 %v4277
  %v4338 = vpop.f32.mrf.mxu0
  %v4339 = vadd.f32 %v4310, %v4338
  %v4340 = vpop.f32.mrf.mxu0
  %v4341 = vadd.f32 %v4312, %v4340
  %4342 = vdwg.mxu0
  %4343 = vmatpush.bf16.msra.mxu0 %v4224
  %4344 = vmatpush.bf16.msra.mxu0 %v4222
  %4345 = vmatpush.bf16.msra.mxu0 %v4220
  %4346 = vmatpush.bf16.msra.mxu0 %v4218
  %4347 = vmatpush.bf16.msra.mxu0 %v4216
  %4348 = vmatpush.bf16.msra.mxu0 %v4214
  %4349 = vmatpush.bf16.msra.mxu0 %v4212
  %4350 = vmatpush.bf16.msra.mxu0 %v4210
  %4351 = vmatmul.bf16.gmra.mxu0 %v4084
  %v4352 = vpop.f32.mrf.mxu0
  %v4353 = vadd.f32 0.0, %v4352
  %v4354 = vpop.f32.mrf.mxu0
  %v4355 = vadd.f32 0.0, %v4354
  %4356 = vmatmul.bf16.gmra.mxu0 %v4086
  %v4357 = vpop.f32.mrf.mxu0
  %v4358 = vadd.f32 0.0, %v4357
  %v4359 = vpop.f32.mrf.mxu0
  %v4360 = vadd.f32 0.0, %v4359
  %4361 = vmatmul.bf16.gmra.mxu0 %v4088
  %v4362 = vpop.f32.mrf.mxu0
  %v4363 = vadd.f32 0.0, %v4362
  %v4364 = vpop.f32.mrf.mxu0
  %v4365 = vadd.f32 0.0, %v4364
  %4366 = vmatmul.bf16.gmra.mxu0 %v4090
  %v4367 = vpop.f32.mrf.mxu0
  %v4368 = vadd.f32 0.0, %v4367
  %v4369 = vpop.f32.mrf.mxu0
  %v4370 = vadd.f32 0.0, %v4369
  %4371 = vdwg.mxu0
  %4372 = vmatpush.bf16.msra.mxu0 0
  %4373 = vmatpush.bf16.msra.mxu0 %v4283
  %4374 = vmatpush.bf16.msra.mxu0 %v4236
  %4375 = vmatpush.bf16.msra.mxu0 %v4234
  %4376 = vmatpush.bf16.msra.mxu0 %v4232
  %4377 = vmatpush.bf16.msra.mxu0 %v4230
  %4378 = vmatpush.bf16.msra.mxu0 %v4228
  %4379 = vmatpush.bf16.msra.mxu0 %v4226
  %4380 = vmatmul.bf16.gmra.mxu0 %v4268
  %v4381 = vpop.f32.mrf.mxu0
  %v4382 = vadd.f32 %v4353, %v4381
  %v4383 = vpop.f32.mrf.mxu0
  %v4384 = vadd.f32 %v4355, %v4383
  %4385 = vmatmul.bf16.gmra.mxu0 %v4271
  %v4386 = vpop.f32.mrf.mxu0
  %v4387 = vadd.f32 %v4358, %v4386
  %v4388 = vpop.f32.mrf.mxu0
  %v4389 = vadd.f32 %v4360, %v4388
  %4390 = vmatmul.bf16.gmra.mxu0 %v4274
  %v4391 = vpop.f32.mrf.mxu0
  %v4392 = vadd.f32 %v4363, %v4391
  %v4393 = vpop.f32.mrf.mxu0
  %v4394 = vadd.f32 %v4365, %v4393
  %4395 = vmatmul.bf16.gmra.mxu0 %v4277
  %v4396 = vpop.f32.mrf.mxu0
  %v4397 = vadd.f32 %v4368, %v4396
  %v4398 = vpop.f32.mrf.mxu0
  %v4399 = vadd.f32 %v4370, %v4398
  %4400 = vdwg.mxu0
  %v4401 = vadd.f32 %v4013, %v4324
  %v4402 = vadd.f32 %v4014, %v4382
  %v4403 = vadd.f32 %v4015, %v4326
  %v4404 = vadd.f32 %v4016, %v4384
  %v4405 = vadd.f32 %v4017, %v4329
  %v4406 = vadd.f32 %v4018, %v4387
  %v4407 = vadd.f32 %v4019, %v4331
  %v4408 = vadd.f32 %v4020, %v4389
  %v4409 = vadd.f32 %v4021, %v4334
  %v4410 = vadd.f32 %v4022, %v4392
  %v4411 = vadd.f32 %v4023, %v4336
  %v4412 = vadd.f32 %v4024, %v4394
  %v4413 = vadd.f32 %v4025, %v4339
  %v4414 = vadd.f32 %v4026, %v4397
  %v4415 = vadd.f32 %v4027, %v4341
  %v4416 = vadd.f32 %v4028, %v4399
  %v4417 = vld [vmem:[%s5] sm:$0x3]
  %v4419 = vperm.slane %v4417, 0
  %v4420 = vperm.slane %v4417, 1
  %v4423 = vadd.f32 %v4401, %v4419
  %v4424 = vadd.f32 %v4402, %v4420
  %v4425 = vadd.f32 %v4403, %v4419
  %v4426 = vadd.f32 %v4404, %v4420
  %v4427 = vadd.f32 %v4405, %v4419
  %v4428 = vadd.f32 %v4406, %v4420
  %v4429 = vadd.f32 %v4407, %v4419
  %v4430 = vadd.f32 %v4408, %v4420
  %v4431 = vadd.f32 %v4409, %v4419
  %v4432 = vadd.f32 %v4410, %v4420
  %v4433 = vadd.f32 %v4411, %v4419
  %v4434 = vadd.f32 %v4412, %v4420
  %v4435 = vadd.f32 %v4413, %v4419
  %v4436 = vadd.f32 %v4414, %v4420
  %v4437 = vadd.f32 %v4415, %v4419
  %v4438 = vadd.f32 %v4416, %v4420
  %v4439 = vmax.f32 %v4423, 0.0
  %v4440 = vmax.f32 %v4424, 0.0
  %v4441 = vmax.f32 %v4425, 0.0
  %v4442 = vmax.f32 %v4426, 0.0
  %v4443 = vmax.f32 %v4427, 0.0
  %v4444 = vmax.f32 %v4428, 0.0
  %v4445 = vmax.f32 %v4429, 0.0
  %v4446 = vmax.f32 %v4430, 0.0
  %v4447 = vmax.f32 %v4431, 0.0
  %v4448 = vmax.f32 %v4432, 0.0
  %v4449 = vmax.f32 %v4433, 0.0
  %v4450 = vmax.f32 %v4434, 0.0
  %v4451 = vmax.f32 %v4435, 0.0
  %v4452 = vmax.f32 %v4436, 0.0
  %v4453 = vmax.f32 %v4437, 0.0
  %v4454 = vmax.f32 %v4438, 0.0
  %4471 = vrot.lane.b32.xlu0 %v4439, 108
  %v4472 = vpop.permute.xlu0 %4471
  %4473 = vrot.lane.b32.xlu0 %v4440, 108
  %v4474 = vpop.permute.xlu0 %4473
  %4475 = vrot.lane.b32.xlu0 %v4441, 108
  %v4476 = vpop.permute.xlu0 %4475
  %4477 = vrot.lane.b32.xlu0 %v4442, 108
  %v4478 = vpop.permute.xlu0 %4477
  %4479 = vrot.lane.b32.xlu0 %v4443, 108
  %v4480 = vpop.permute.xlu0 %4479
  %4481 = vrot.lane.b32.xlu0 %v4444, 108
  %v4482 = vpop.permute.xlu0 %4481
  %4483 = vrot.lane.b32.xlu0 %v4445, 108
  %v4484 = vpop.permute.xlu0 %4483
  %4485 = vrot.lane.b32.xlu0 %v4446, 108
  %v4486 = vpop.permute.xlu0 %4485
  %4487 = vrot.lane.b32.xlu0 %v4447, 108
  %v4488 = vpop.permute.xlu0 %4487
  %4489 = vrot.lane.b32.xlu0 %v4448, 108
  %v4490 = vpop.permute.xlu0 %4489
  %4491 = vrot.lane.b32.xlu0 %v4449, 108
  %v4492 = vpop.permute.xlu0 %4491
  %4493 = vrot.lane.b32.xlu0 %v4450, 108
  %v4494 = vpop.permute.xlu0 %4493
  %4495 = vrot.lane.b32.xlu0 %v4451, 108
  %v4496 = vpop.permute.xlu0 %4495
  %4497 = vrot.lane.b32.xlu0 %v4452, 108
  %v4498 = vpop.permute.xlu0 %4497
  %4499 = vrot.lane.b32.xlu0 %v4453, 108
  %v4500 = vpop.permute.xlu0 %4499
  %4501 = vrot.lane.b32.xlu0 %v4454, 108
  %v4502 = vpop.permute.xlu0 %4501
  %vm4503 = vcmask 883712
  %v4504 = vsel %vm4503, %v4472, %v4474
  %v4505 = vsel %vm4503, %v4476, %v4478
  %v4506 = vsel %vm4503, %v4480, %v4482
  %v4507 = vsel %vm4503, %v4484, %v4486
  %v4508 = vsel %vm4503, %v4488, %v4490
  %v4509 = vsel %vm4503, %v4492, %v4494
  %v4510 = vsel %vm4503, %v4496, %v4498
  %v4511 = vsel %vm4503, %v4500, %v4502
  %v4528 = vmax.f32 %v4439, %v4504
  %v4529 = vmax.f32 %v4440, %v4474
  %v4530 = vmax.f32 %v4441, %v4505
  %v4531 = vmax.f32 %v4442, %v4478
  %v4532 = vmax.f32 %v4443, %v4506
  %v4533 = vmax.f32 %v4444, %v4482
  %v4534 = vmax.f32 %v4445, %v4507
  %v4535 = vmax.f32 %v4446, %v4486
  %v4536 = vmax.f32 %v4447, %v4508
  %v4537 = vmax.f32 %v4448, %v4490
  %v4538 = vmax.f32 %v4449, %v4509
  %v4539 = vmax.f32 %v4450, %v4494
  %v4540 = vmax.f32 %v4451, %v4510
  %v4541 = vmax.f32 %v4452, %v4498
  %v4542 = vmax.f32 %v4453, %v4511
  %v4543 = vmax.f32 %v4454, %v4502
  %v4560 = vrot.slane %v4528, 1
  %v4561 = vrot.slane %v4530, 1
  %v4562 = vsel %vm1794, %v4560, %v4561
  %v4563 = vrot.slane %v4529, 1
  %v4564 = vrot.slane %v4531, 1
  %v4565 = vsel %vm1794, %v4563, %v4564
  %v4566 = vrot.slane %v4532, 1
  %v4567 = vsel %vm1794, %v4561, %v4566
  %v4568 = vrot.slane %v4533, 1
  %v4569 = vsel %vm1794, %v4564, %v4568
  %v4570 = vrot.slane %v4534, 1
  %v4571 = vsel %vm1794, %v4566, %v4570
  %v4572 = vrot.slane %v4535, 1
  %v4573 = vsel %vm1794, %v4568, %v4572
  %v4574 = vrot.slane %v4536, 1
  %v4575 = vsel %vm1794, %v4570, %v4574
  %v4576 = vrot.slane %v4537, 1
  %v4577 = vsel %vm1794, %v4572, %v4576
  %v4578 = vrot.slane %v4538, 1
  %v4579 = vsel %vm1794, %v4574, %v4578
  %v4580 = vrot.slane %v4539, 1
  %v4581 = vsel %vm1794, %v4576, %v4580
  %v4582 = vrot.slane %v4540, 1
  %v4583 = vsel %vm1794, %v4578, %v4582
  %v4584 = vrot.slane %v4541, 1
  %v4585 = vsel %vm1794, %v4580, %v4584
  %v4586 = vrot.slane %v4542, 1
  %v4587 = vsel %vm1794, %v4582, %v4586
  %v4588 = vrot.slane %v4543, 1
  %v4589 = vsel %vm1794, %v4584, %v4588
  %v4606 = vmax.f32 %v4528, %v4562
  %v4607 = vmax.f32 %v4529, %v4565
  %v4608 = vmax.f32 %v4530, %v4567
  %v4609 = vmax.f32 %v4531, %v4569
  %v4610 = vmax.f32 %v4532, %v4571
  %v4611 = vmax.f32 %v4533, %v4573
  %v4612 = vmax.f32 %v4534, %v4575
  %v4613 = vmax.f32 %v4535, %v4577
  %v4614 = vmax.f32 %v4536, %v4579
  %v4615 = vmax.f32 %v4537, %v4581
  %v4616 = vmax.f32 %v4538, %v4583
  %v4617 = vmax.f32 %v4539, %v4585
  %v4618 = vmax.f32 %v4540, %v4587
  %v4619 = vmax.f32 %v4541, %v4589
  %v4620 = vmax.f32 %v4542, %v4586
  %v4621 = vmax.f32 %v4543, %v4588
  %v4622 = vpack.c.bf16 %v4608, %v4606
  %v4623 = vpack.c.bf16 %v4609, %v4607
  %v4624 = vpack.c.bf16 %v4612, %v4610
  %v4625 = vpack.c.bf16 %v4613, %v4611
  %v4626 = vpack.c.bf16 %v4616, %v4614
  %v4627 = vpack.c.bf16 %v4617, %v4615
  %v4628 = vpack.c.bf16 %v4620, %v4618
  %v4629 = vpack.c.bf16 %v4621, %v4619
  %v4630 = vld [vmem:[%s6] sm:$0xf]
  %v4631 = vld [vmem:[%s6 + $0x4] sm:$0xf]
  %v4632 = vld [vmem:[%s6 + $0x8] sm:$0xf]
  %v4633 = vld [vmem:[%s6 + $0xc] sm:$0xf]
  %v4638 = vunpack.c.l.b16 %v4630
  %v4639 = vunpack.c.l.b16 %v4631
  %v4640 = vunpack.c.l.b16 %v4632
  %v4641 = vunpack.c.l.b16 %v4633
  %v4642 = vpack.c.b16 %v4639, %v4638
  %v4643 = vpack.c.b16 %v4641, %v4640
  %v4645 = vsel %vm2075, %v4642, 0
  %v4648 = vsel %vm2075, %v4643, 0
  %v4651 = vand.u32 %v4628, %v2096
  %v4654 = vand.u32 %v4629, %v2096
  %4656 = vmatpush.bf16.msra.mxu0 0
  %4657 = vmatpush.bf16.msra.mxu0 0
  %4658 = vmatpush.bf16.msra.mxu0 0
  %4659 = vmatpush.bf16.msra.mxu0 0
  %4660 = vmatpush.bf16.msra.mxu0 %v4651
  %4661 = vmatpush.bf16.msra.mxu0 %v4626
  %4662 = vmatpush.bf16.msra.mxu0 %v4624
  %4663 = vmatpush.bf16.msra.mxu0 %v4622
  %4664 = vmatmul.bf16.gmra.mxu0 %v4645
  %v4665 = vpop.f32.mrf.mxu0
  %v4666 = vadd.f32 0.0, %v4665
  %v4667 = vpop.f32.mrf.mxu0
  %v4668 = vadd.f32 0.0, %v4667
  %4669 = vmatmul.bf16.gmra.mxu0 %v4648
  %v4670 = vpop.f32.mrf.mxu0
  %v4671 = vadd.f32 0.0, %v4670
  %v4672 = vpop.f32.mrf.mxu0
  %v4673 = vadd.f32 0.0, %v4672
  %4674 = vdwg.mxu0
  %4675 = vmatpush.bf16.msra.mxu0 0
  %4676 = vmatpush.bf16.msra.mxu0 0
  %4677 = vmatpush.bf16.msra.mxu0 0
  %4678 = vmatpush.bf16.msra.mxu0 0
  %4679 = vmatpush.bf16.msra.mxu0 %v4654
  %4680 = vmatpush.bf16.msra.mxu0 %v4627
  %4681 = vmatpush.bf16.msra.mxu0 %v4625
  %4682 = vmatpush.bf16.msra.mxu0 %v4623
  %4683 = vmatmul.bf16.gmra.mxu0 %v4645
  %v4684 = vpop.f32.mrf.mxu0
  %v4685 = vadd.f32 0.0, %v4684
  %v4686 = vpop.f32.mrf.mxu0
  %v4687 = vadd.f32 0.0, %v4686
  %4688 = vmatmul.bf16.gmra.mxu0 %v4648
  %v4689 = vpop.f32.mrf.mxu0
  %v4690 = vadd.f32 0.0, %v4689
  %v4691 = vpop.f32.mrf.mxu0
  %v4692 = vadd.f32 0.0, %v4691
  %4693 = vdwg.mxu0
  %v4702 = vrot.slane %v4685, 4
  %v4703 = vrot.slane %v4687, 4
  %v4704 = vrot.slane %v4690, 4
  %v4705 = vrot.slane %v4692, 4
  %v4706 = vsel %vm2295, %v4666, %v4702
  %v4707 = vsel %vm2295, %v4702, %v4666
  %v4708 = vrot.slane %v4707, 4
  %v4709 = vsel %vm2295, %v4668, %v4703
  %v4710 = vsel %vm2295, %v4703, %v4668
  %v4711 = vrot.slane %v4710, 4
  %v4712 = vsel %vm2295, %v4671, %v4704
  %v4713 = vsel %vm2295, %v4704, %v4671
  %v4714 = vrot.slane %v4713, 4
  %v4715 = vsel %vm2295, %v4673, %v4705
  %v4716 = vsel %vm2295, %v4705, %v4673
  %v4717 = vrot.slane %v4716, 4
  %v4718 = vperm.slane %v4706, 0
  %v4719 = vperm.slane %v4706, 4
  %v4720 = vperm.slane %v4708, 0
  %v4721 = vperm.slane %v4708, 4
  %v4722 = vperm.slane %v4709, 0
  %v4723 = vperm.slane %v4709, 4
  %v4724 = vperm.slane %v4711, 0
  %v4725 = vperm.slane %v4711, 4
  %v4726 = vperm.slane %v4712, 0
  %v4727 = vperm.slane %v4712, 4
  %v4728 = vperm.slane %v4714, 0
  %v4729 = vperm.slane %v4714, 4
  %v4730 = vperm.slane %v4715, 0
  %v4731 = vperm.slane %v4715, 4
  %v4732 = vperm.slane %v4717, 0
  %v4733 = vperm.slane %v4717, 4
  %v4750 = vpack.c.bf16 %v4718, %v4718
  %v4751 = vpack.c.bf16 %v4719, %v4719
  %v4752 = vpack.c.bf16 %v4720, %v4720
  %v4753 = vpack.c.bf16 %v4721, %v4721
  %v4754 = vpack.c.bf16 %v4722, %v4722
  %v4755 = vpack.c.bf16 %v4723, %v4723
  %v4756 = vpack.c.bf16 %v4724, %v4724
  %v4757 = vpack.c.bf16 %v4725, %v4725
  %v4758 = vpack.c.bf16 %v4726, %v4726
  %v4759 = vpack.c.bf16 %v4727, %v4727
  %v4760 = vpack.c.bf16 %v4728, %v4728
  %v4761 = vpack.c.bf16 %v4729, %v4729
  %v4762 = vpack.c.bf16 %v4730, %v4730
  %v4763 = vpack.c.bf16 %v4731, %v4731
  %v4764 = vpack.c.bf16 %v4732, %v4732
  %v4765 = vpack.c.bf16 %v4733, %v4733
  %v4766 = vld [vmem:[%s7] sm:$0xf]
  %v4767 = vld [vmem:[%s7 + $0x4] sm:$0xf]
  %v4768 = vld [vmem:[%s7 + $0x8] sm:$0xf]
  %v4769 = vld [vmem:[%s7 + $0xc] sm:$0xf]
  %v4770 = vld [vmem:[%s7 + $0x10] sm:$0xf]
  %v4771 = vld [vmem:[%s7 + $0x14] sm:$0xf]
  %v4772 = vld [vmem:[%s7 + $0x18] sm:$0xf]
  %v4773 = vld [vmem:[%s7 + $0x1c] sm:$0xf]
  %v4774 = vld [vmem:[%s7 + $0x20] sm:$0xf]
  %v4775 = vld [vmem:[%s7 + $0x24] sm:$0xf]
  %v4776 = vld [vmem:[%s7 + $0x28] sm:$0xf]
  %v4777 = vld [vmem:[%s7 + $0x2c] sm:$0xf]
  %v4778 = vld [vmem:[%s7 + $0x30] sm:$0xf]
  %v4779 = vld [vmem:[%s7 + $0x34] sm:$0xf]
  %v4780 = vld [vmem:[%s7 + $0x38] sm:$0xf]
  %v4781 = vld [vmem:[%s7 + $0x3c] sm:$0xf]
  %v4782 = vld [vmem:[%s7 + $0x40] sm:$0xf]
  %v4783 = vld [vmem:[%s7 + $0x44] sm:$0x3]
  %v4784 = vperm.slane %v4706, 1
  %v4785 = vperm.slane %v4706, 5
  %v4786 = vperm.slane %v4708, 1
  %v4787 = vperm.slane %v4708, 5
  %v4788 = vperm.slane %v4709, 1
  %v4789 = vperm.slane %v4709, 5
  %v4790 = vperm.slane %v4711, 1
  %v4791 = vperm.slane %v4711, 5
  %v4792 = vperm.slane %v4712, 1
  %v4793 = vperm.slane %v4712, 5
  %v4794 = vperm.slane %v4714, 1
  %v4795 = vperm.slane %v4714, 5
  %v4796 = vperm.slane %v4715, 1
  %v4797 = vperm.slane %v4715, 5
  %v4798 = vperm.slane %v4717, 1
  %v4799 = vperm.slane %v4717, 5
  %v4816 = vpack.c.bf16 %v4784, %v4784
  %v4817 = vpack.c.bf16 %v4785, %v4785
  %v4818 = vpack.c.bf16 %v4786, %v4786
  %v4819 = vpack.c.bf16 %v4787, %v4787
  %v4820 = vpack.c.bf16 %v4788, %v4788
  %v4821 = vpack.c.bf16 %v4789, %v4789
  %v4822 = vpack.c.bf16 %v4790, %v4790
  %v4823 = vpack.c.bf16 %v4791, %v4791
  %v4824 = vpack.c.bf16 %v4792, %v4792
  %v4825 = vpack.c.bf16 %v4793, %v4793
  %v4826 = vpack.c.bf16 %v4794, %v4794
  %v4827 = vpack.c.bf16 %v4795, %v4795
  %v4828 = vpack.c.bf16 %v4796, %v4796
  %v4829 = vpack.c.bf16 %v4797, %v4797
  %v4830 = vpack.c.bf16 %v4798, %v4798
  %v4831 = vpack.c.bf16 %v4799, %v4799
  %s4832 = scalar_lea.vmem %s7, 72
  %v4833 = vld [vmem:[%s4832] sm:$0xf]
  %v4834 = vld [vmem:[%s4832 + $0x4] sm:$0xf]
  %v4835 = vld [vmem:[%s4832 + $0x8] sm:$0xf]
  %v4836 = vld [vmem:[%s4832 + $0xc] sm:$0xf]
  %v4837 = vld [vmem:[%s4832 + $0x10] sm:$0xf]
  %v4838 = vld [vmem:[%s4832 + $0x14] sm:$0xf]
  %v4839 = vld [vmem:[%s4832 + $0x18] sm:$0xf]
  %v4840 = vld [vmem:[%s4832 + $0x1c] sm:$0xf]
  %v4841 = vld [vmem:[%s4832 + $0x20] sm:$0xf]
  %v4842 = vld [vmem:[%s4832 + $0x24] sm:$0xf]
  %v4843 = vld [vmem:[%s4832 + $0x28] sm:$0xf]
  %v4844 = vld [vmem:[%s4832 + $0x2c] sm:$0xf]
  %v4845 = vld [vmem:[%s4832 + $0x30] sm:$0xf]
  %v4846 = vld [vmem:[%s4832 + $0x34] sm:$0xf]
  %v4847 = vld [vmem:[%s4832 + $0x38] sm:$0xf]
  %v4848 = vld [vmem:[%s4832 + $0x3c] sm:$0xf]
  %v4849 = vld [vmem:[%s4832 + $0x40] sm:$0xf]
  %v4850 = vld [vmem:[%s4832 + $0x44] sm:$0x3]
  %v4867 = vunpack.c.l.b16 %v4816
  %v4868 = vunpack.c.l.b16 %v4817
  %v4869 = vunpack.c.l.b16 %v4818
  %v4870 = vunpack.c.l.b16 %v4819
  %v4871 = vunpack.c.l.b16 %v4820
  %v4872 = vunpack.c.l.b16 %v4821
  %v4873 = vunpack.c.l.b16 %v4822
  %v4874 = vunpack.c.l.b16 %v4823
  %v4875 = vunpack.c.l.b16 %v4824
  %v4876 = vunpack.c.l.b16 %v4825
  %v4877 = vunpack.c.l.b16 %v4826
  %v4878 = vunpack.c.l.b16 %v4827
  %v4879 = vunpack.c.l.b16 %v4828
  %v4880 = vunpack.c.l.b16 %v4829
  %v4881 = vunpack.c.l.b16 %v4830
  %v4882 = vunpack.c.l.b16 %v4831
  %v4883 = vrot.slane %v4867, 1
  %vm4884 = vcmask 1041409
  %v4885 = vsel %vm4884, %v4869, %v4883
  %v4886 = vrot.slane %v4871, 7
  %vm4887 = vcmask 1042434
  %v4888 = vsel %vm4887, %v4886, %v4885
  %v4889 = vrot.slane %v4873, 6
  %vm4890 = vcmask 1043459
  %v4891 = vsel %vm4890, %v4889, %v4888
  %v4892 = vrot.slane %v4875, 5
  %v4893 = vsel %vm3583, %v4892, %v4891
  %v4894 = vrot.slane %v4877, 4
  %vm4895 = vcmask 1045509
  %v4896 = vsel %vm4895, %v4894, %v4893
  %v4897 = vrot.slane %v4879, 3
  %vm4898 = vcmask 1046534
  %v4899 = vsel %vm4898, %v4897, %v4896
  %v4900 = vrot.slane %v4881, 2
  %vm4901 = vcmask 1047559
  %v4902 = vsel %vm4901, %v4900, %v4899
  %v4903 = vrot.slane %v4868, 1
  %v4904 = vsel %vm4884, %v4870, %v4903
  %v4905 = vrot.slane %v4872, 7
  %v4906 = vsel %vm4887, %v4905, %v4904
  %v4907 = vrot.slane %v4874, 6
  %v4908 = vsel %vm4890, %v4907, %v4906
  %v4909 = vrot.slane %v4876, 5
  %v4910 = vsel %vm3583, %v4909, %v4908
  %v4911 = vrot.slane %v4878, 4
  %v4912 = vsel %vm4895, %v4911, %v4910
  %v4913 = vrot.slane %v4880, 3
  %v4914 = vsel %vm4898, %v4913, %v4912
  %v4915 = vrot.slane %v4882, 2
  %v4916 = vsel %vm4901, %v4915, %v4914
  %v4917 = vpack.c.b16 %v4902, %v4902
  %v4918 = vpack.c.b16 %v4916, %v4916
  %v4938 = vunpack.c.l.b16 %v4833
  %v4939 = vunpack.c.l.b16 %v4834
  %v4940 = vunpack.c.l.b16 %v4835
  %v4941 = vunpack.c.l.b16 %v4836
  %v4942 = vunpack.c.l.b16 %v4837
  %v4943 = vunpack.c.l.b16 %v4838
  %v4944 = vunpack.c.l.b16 %v4839
  %v4945 = vunpack.c.l.b16 %v4840
  %v4946 = vunpack.c.l.b16 %v4841
  %v4947 = vunpack.c.l.b16 %v4842
  %v4948 = vunpack.c.l.b16 %v4843
  %v4949 = vunpack.c.l.b16 %v4844
  %v4950 = vunpack.c.l.b16 %v4845
  %v4951 = vunpack.c.l.b16 %v4846
  %v4952 = vunpack.c.l.b16 %v4847
  %v4953 = vunpack.c.l.b16 %v4848
  %v4954 = vunpack.c.l.b16 %v4849
  %v4955 = vunpack.c.l.b16 %v4850
  %v4956 = vpack.c.b16 %v4939, %v4938
  %v4957 = vpack.c.b16 %v4941, %v4940
  %v4958 = vpack.c.b16 %v4943, %v4942
  %v4959 = vpack.c.b16 %v4945, %v4944
  %v4960 = vpack.c.b16 %v4947, %v4946
  %v4961 = vpack.c.b16 %v4949, %v4948
  %v4962 = vpack.c.b16 %v4951, %v4950
  %v4963 = vpack.c.b16 %v4953, %v4952
  %v4964 = vpack.c.b16 %v4955, %v4954
  %vm4973 = vcmask 97280
  %v4975 = vsel %vm4973, %v4918, 0
  %v4978 = vsel %vm175, %v4964, 0
  %4980 = vmatpush.bf16.msra.mxu0 %v4963
  %4981 = vmatpush.bf16.msra.mxu0 %v4962
  %4982 = vmatpush.bf16.msra.mxu0 %v4961
  %4983 = vmatpush.bf16.msra.mxu0 %v4960
  %4984 = vmatpush.bf16.msra.mxu0 %v4959
  %4985 = vmatpush.bf16.msra.mxu0 %v4958
  %4986 = vmatpush.bf16.msra.mxu0 %v4957
  %4987 = vmatpush.bf16.msra.mxu0 %v4956
  %4988 = vmatmul.bf16.gmra.mxu0 %v4917
  %v4989 = vpop.f32.mrf.mxu0
  %v4990 = vadd.f32 0.0, %v4989
  %v4991 = vpop.f32.mrf.mxu0
  %4992 = vdwg.mxu0
  %4993 = vmatpush.bf16.msra.mxu0 0
  %4994 = vmatpush.bf16.msra.mxu0 0
  %4995 = vmatpush.bf16.msra.mxu0 0
  %4996 = vmatpush.bf16.msra.mxu0 0
  %4997 = vmatpush.bf16.msra.mxu0 0
  %4998 = vmatpush.bf16.msra.mxu0 0
  %4999 = vmatpush.bf16.msra.mxu0 0
  %5000 = vmatpush.bf16.msra.mxu0 %v4978
  %5001 = vmatmul.bf16.gmra.mxu0 %v4975
  %v5002 = vpop.f32.mrf.mxu0
  %v5003 = vadd.f32 %v4990, %v5002
  %v5004 = vpop.f32.mrf.mxu0
  %5005 = vdwg.mxu0
  %v5022 = vunpack.c.l.b16 %v4750
  %v5023 = vunpack.c.l.b16 %v4751
  %v5024 = vunpack.c.l.b16 %v4752
  %v5025 = vunpack.c.l.b16 %v4753
  %v5026 = vunpack.c.l.b16 %v4754
  %v5027 = vunpack.c.l.b16 %v4755
  %v5028 = vunpack.c.l.b16 %v4756
  %v5029 = vunpack.c.l.b16 %v4757
  %v5030 = vunpack.c.l.b16 %v4758
  %v5031 = vunpack.c.l.b16 %v4759
  %v5032 = vunpack.c.l.b16 %v4760
  %v5033 = vunpack.c.l.b16 %v4761
  %v5034 = vunpack.c.l.b16 %v4762
  %v5035 = vunpack.c.l.b16 %v4763
  %v5036 = vunpack.c.l.b16 %v4764
  %v5037 = vunpack.c.l.b16 %v4765
  %v5038 = vrot.slane %v5024, 7
  %v5039 = vsel %vm4884, %v5038, %v5022
  %v5040 = vrot.slane %v5026, 6
  %v5041 = vsel %vm4887, %v5040, %v5039
  %v5042 = vrot.slane %v5028, 5
  %v5043 = vsel %vm4890, %v5042, %v5041
  %v5044 = vrot.slane %v5030, 4
  %v5045 = vsel %vm3583, %v5044, %v5043
  %v5046 = vrot.slane %v5032, 3
  %v5047 = vsel %vm4895, %v5046, %v5045
  %v5048 = vrot.slane %v5034, 2
  %v5049 = vsel %vm4898, %v5048, %v5047
  %v5050 = vrot.slane %v5036, 1
  %v5051 = vsel %vm4901, %v5050, %v5049
  %v5052 = vrot.slane %v5025, 7
  %v5053 = vsel %vm4884, %v5052, %v5023
  %v5054 = vrot.slane %v5027, 6
  %v5055 = vsel %vm4887, %v5054, %v5053
  %v5056 = vrot.slane %v5029, 5
  %v5057 = vsel %vm4890, %v5056, %v5055
  %v5058 = vrot.slane %v5031, 4
  %v5059 = vsel %vm3583, %v5058, %v5057
  %v5060 = vrot.slane %v5033, 3
  %v5061 = vsel %vm4895, %v5060, %v5059
  %v5062 = vrot.slane %v5035, 2
  %v5063 = vsel %vm4898, %v5062, %v5061
  %v5064 = vrot.slane %v5037, 1
  %v5065 = vsel %vm4901, %v5064, %v5063
  %v5066 = vpack.c.b16 %v5051, %v5051
  %v5067 = vpack.c.b16 %v5065, %v5065
  %v5087 = vunpack.c.l.b16 %v4766
  %v5088 = vunpack.c.l.b16 %v4767
  %v5089 = vunpack.c.l.b16 %v4768
  %v5090 = vunpack.c.l.b16 %v4769
  %v5091 = vunpack.c.l.b16 %v4770
  %v5092 = vunpack.c.l.b16 %v4771
  %v5093 = vunpack.c.l.b16 %v4772
  %v5094 = vunpack.c.l.b16 %v4773
  %v5095 = vunpack.c.l.b16 %v4774
  %v5096 = vunpack.c.l.b16 %v4775
  %v5097 = vunpack.c.l.b16 %v4776
  %v5098 = vunpack.c.l.b16 %v4777
  %v5099 = vunpack.c.l.b16 %v4778
  %v5100 = vunpack.c.l.b16 %v4779
  %v5101 = vunpack.c.l.b16 %v4780
  %v5102 = vunpack.c.l.b16 %v4781
  %v5103 = vunpack.c.l.b16 %v4782
  %v5104 = vunpack.c.l.b16 %v4783
  %v5105 = vpack.c.b16 %v5088, %v5087
  %v5106 = vpack.c.b16 %v5090, %v5089
  %v5107 = vpack.c.b16 %v5092, %v5091
  %v5108 = vpack.c.b16 %v5094, %v5093
  %v5109 = vpack.c.b16 %v5096, %v5095
  %v5110 = vpack.c.b16 %v5098, %v5097
  %v5111 = vpack.c.b16 %v5100, %v5099
  %v5112 = vpack.c.b16 %v5102, %v5101
  %v5113 = vpack.c.b16 %v5104, %v5103
  %v5123 = vsel %vm4973, %v5067, 0
  %v5126 = vsel %vm175, %v5113, 0
  %5128 = vmatpush.bf16.msra.mxu0 %v5112
  %5129 = vmatpush.bf16.msra.mxu0 %v5111
  %5130 = vmatpush.bf16.msra.mxu0 %v5110
  %5131 = vmatpush.bf16.msra.mxu0 %v5109
  %5132 = vmatpush.bf16.msra.mxu0 %v5108
  %5133 = vmatpush.bf16.msra.mxu0 %v5107
  %5134 = vmatpush.bf16.msra.mxu0 %v5106
  %5135 = vmatpush.bf16.msra.mxu0 %v5105
  %5136 = vmatmul.bf16.gmra.mxu0 %v5066
  %v5137 = vpop.f32.mrf.mxu0
  %v5138 = vadd.f32 %v5003, %v5137
  %v5139 = vpop.f32.mrf.mxu0
  %5140 = vdwg.mxu0
  %5141 = vmatpush.bf16.msra.mxu0 0
  %5142 = vmatpush.bf16.msra.mxu0 0
  %5143 = vmatpush.bf16.msra.mxu0 0
  %5144 = vmatpush.bf16.msra.mxu0 0
  %5145 = vmatpush.bf16.msra.mxu0 0
  %5146 = vmatpush.bf16.msra.mxu0 0
  %5147 = vmatpush.bf16.msra.mxu0 0
  %5148 = vmatpush.bf16.msra.mxu0 %v5126
  %5149 = vmatmul.bf16.gmra.mxu0 %v5123
  %v5150 = vpop.f32.mrf.mxu0
  %v5151 = vadd.f32 %v5138, %v5150
  %v5152 = vpop.f32.mrf.mxu0
  %5153 = vdwg.mxu0
  %v5154 = vperm.slane %v4706, 2
  %v5155 = vperm.slane %v4706, 6
  %v5156 = vperm.slane %v4708, 2
  %v5157 = vperm.slane %v4708, 6
  %v5158 = vperm.slane %v4709, 2
  %v5159 = vperm.slane %v4709, 6
  %v5160 = vperm.slane %v4711, 2
  %v5161 = vperm.slane %v4711, 6
  %v5162 = vperm.slane %v4712, 2
  %v5163 = vperm.slane %v4712, 6
  %v5164 = vperm.slane %v4714, 2
  %v5165 = vperm.slane %v4714, 6
  %v5166 = vperm.slane %v4715, 2
  %v5167 = vperm.slane %v4715, 6
  %v5168 = vperm.slane %v4717, 2
  %v5169 = vperm.slane %v4717, 6
  %v5186 = vpack.c.bf16 %v5154, %v5154
  %v5187 = vpack.c.bf16 %v5155, %v5155
  %v5188 = vpack.c.bf16 %v5156, %v5156
  %v5189 = vpack.c.bf16 %v5157, %v5157
  %v5190 = vpack.c.bf16 %v5158, %v5158
  %v5191 = vpack.c.bf16 %v5159, %v5159
  %v5192 = vpack.c.bf16 %v5160, %v5160
  %v5193 = vpack.c.bf16 %v5161, %v5161
  %v5194 = vpack.c.bf16 %v5162, %v5162
  %v5195 = vpack.c.bf16 %v5163, %v5163
  %v5196 = vpack.c.bf16 %v5164, %v5164
  %v5197 = vpack.c.bf16 %v5165, %v5165
  %v5198 = vpack.c.bf16 %v5166, %v5166
  %v5199 = vpack.c.bf16 %v5167, %v5167
  %v5200 = vpack.c.bf16 %v5168, %v5168
  %v5201 = vpack.c.bf16 %v5169, %v5169
  %s5202 = scalar_lea.vmem %s7, 144
  %v5203 = vld [vmem:[%s5202] sm:$0xf]
  %v5204 = vld [vmem:[%s5202 + $0x4] sm:$0xf]
  %v5205 = vld [vmem:[%s5202 + $0x8] sm:$0xf]
  %v5206 = vld [vmem:[%s5202 + $0xc] sm:$0xf]
  %v5207 = vld [vmem:[%s5202 + $0x10] sm:$0xf]
  %v5208 = vld [vmem:[%s5202 + $0x14] sm:$0xf]
  %v5209 = vld [vmem:[%s5202 + $0x18] sm:$0xf]
  %v5210 = vld [vmem:[%s5202 + $0x1c] sm:$0xf]
  %v5211 = vld [vmem:[%s5202 + $0x20] sm:$0xf]
  %v5212 = vld [vmem:[%s5202 + $0x24] sm:$0xf]
  %v5213 = vld [vmem:[%s5202 + $0x28] sm:$0xf]
  %v5214 = vld [vmem:[%s5202 + $0x2c] sm:$0xf]
  %v5215 = vld [vmem:[%s5202 + $0x30] sm:$0xf]
  %v5216 = vld [vmem:[%s5202 + $0x34] sm:$0xf]
  %v5217 = vld [vmem:[%s5202 + $0x38] sm:$0xf]
  %v5218 = vld [vmem:[%s5202 + $0x3c] sm:$0xf]
  %v5219 = vld [vmem:[%s5202 + $0x40] sm:$0xf]
  %v5220 = vld [vmem:[%s5202 + $0x44] sm:$0x3]
  %v5237 = vunpack.c.l.b16 %v5186
  %v5238 = vunpack.c.l.b16 %v5187
  %v5239 = vunpack.c.l.b16 %v5188
  %v5240 = vunpack.c.l.b16 %v5189
  %v5241 = vunpack.c.l.b16 %v5190
  %v5242 = vunpack.c.l.b16 %v5191
  %v5243 = vunpack.c.l.b16 %v5192
  %v5244 = vunpack.c.l.b16 %v5193
  %v5245 = vunpack.c.l.b16 %v5194
  %v5246 = vunpack.c.l.b16 %v5195
  %v5247 = vunpack.c.l.b16 %v5196
  %v5248 = vunpack.c.l.b16 %v5197
  %v5249 = vunpack.c.l.b16 %v5198
  %v5250 = vunpack.c.l.b16 %v5199
  %v5251 = vunpack.c.l.b16 %v5200
  %v5252 = vunpack.c.l.b16 %v5201
  %v5253 = vrot.slane %v5237, 2
  %v5254 = vrot.slane %v5239, 1
  %v5255 = vsel %vm4884, %v5254, %v5253
  %v5256 = vsel %vm4887, %v5241, %v5255
  %v5257 = vrot.slane %v5243, 7
  %v5258 = vsel %vm4890, %v5257, %v5256
  %v5259 = vrot.slane %v5245, 6
  %v5260 = vsel %vm3583, %v5259, %v5258
  %v5261 = vrot.slane %v5247, 5
  %v5262 = vsel %vm4895, %v5261, %v5260
  %v5263 = vrot.slane %v5249, 4
  %v5264 = vsel %vm4898, %v5263, %v5262
  %v5265 = vrot.slane %v5251, 3
  %v5266 = vsel %vm4901, %v5265, %v5264
  %v5267 = vrot.slane %v5238, 2
  %v5268 = vrot.slane %v5240, 1
  %v5269 = vsel %vm4884, %v5268, %v5267
  %v5270 = vsel %vm4887, %v5242, %v5269
  %v5271 = vrot.slane %v5244, 7
  %v5272 = vsel %vm4890, %v5271, %v5270
  %v5273 = vrot.slane %v5246, 6
  %v5274 = vsel %vm3583, %v5273, %v5272
  %v5275 = vrot.slane %v5248, 5
  %v5276 = vsel %vm4895, %v5275, %v5274
  %v5277 = vrot.slane %v5250, 4
  %v5278 = vsel %vm4898, %v5277, %v5276
  %v5279 = vrot.slane %v5252, 3
  %v5280 = vsel %vm4901, %v5279, %v5278
  %v5281 = vpack.c.b16 %v5266, %v5266
  %v5282 = vpack.c.b16 %v5280, %v5280
  %v5302 = vunpack.c.l.b16 %v5203
  %v5303 = vunpack.c.l.b16 %v5204
  %v5304 = vunpack.c.l.b16 %v5205
  %v5305 = vunpack.c.l.b16 %v5206
  %v5306 = vunpack.c.l.b16 %v5207
  %v5307 = vunpack.c.l.b16 %v5208
  %v5308 = vunpack.c.l.b16 %v5209
  %v5309 = vunpack.c.l.b16 %v5210
  %v5310 = vunpack.c.l.b16 %v5211
  %v5311 = vunpack.c.l.b16 %v5212
  %v5312 = vunpack.c.l.b16 %v5213
  %v5313 = vunpack.c.l.b16 %v5214
  %v5314 = vunpack.c.l.b16 %v5215
  %v5315 = vunpack.c.l.b16 %v5216
  %v5316 = vunpack.c.l.b16 %v5217
  %v5317 = vunpack.c.l.b16 %v5218
  %v5318 = vunpack.c.l.b16 %v5219
  %v5319 = vunpack.c.l.b16 %v5220
  %v5320 = vpack.c.b16 %v5303, %v5302
  %v5321 = vpack.c.b16 %v5305, %v5304
  %v5322 = vpack.c.b16 %v5307, %v5306
  %v5323 = vpack.c.b16 %v5309, %v5308
  %v5324 = vpack.c.b16 %v5311, %v5310
  %v5325 = vpack.c.b16 %v5313, %v5312
  %v5326 = vpack.c.b16 %v5315, %v5314
  %v5327 = vpack.c.b16 %v5317, %v5316
  %v5328 = vpack.c.b16 %v5319, %v5318
  %v5338 = vsel %vm4973, %v5282, 0
  %v5341 = vsel %vm175, %v5328, 0
  %5343 = vmatpush.bf16.msra.mxu0 %v5327
  %5344 = vmatpush.bf16.msra.mxu0 %v5326
  %5345 = vmatpush.bf16.msra.mxu0 %v5325
  %5346 = vmatpush.bf16.msra.mxu0 %v5324
  %5347 = vmatpush.bf16.msra.mxu0 %v5323
  %5348 = vmatpush.bf16.msra.mxu0 %v5322
  %5349 = vmatpush.bf16.msra.mxu0 %v5321
  %5350 = vmatpush.bf16.msra.mxu0 %v5320
  %5351 = vmatmul.bf16.gmra.mxu0 %v5281
  %v5352 = vpop.f32.mrf.mxu0
  %v5353 = vadd.f32 0.0, %v5352
  %v5354 = vpop.f32.mrf.mxu0
  %5355 = vdwg.mxu0
  %5356 = vmatpush.bf16.msra.mxu0 0
  %5357 = vmatpush.bf16.msra.mxu0 0
  %5358 = vmatpush.bf16.msra.mxu0 0
  %5359 = vmatpush.bf16.msra.mxu0 0
  %5360 = vmatpush.bf16.msra.mxu0 0
  %5361 = vmatpush.bf16.msra.mxu0 0
  %5362 = vmatpush.bf16.msra.mxu0 0
  %5363 = vmatpush.bf16.msra.mxu0 %v5341
  %5364 = vmatmul.bf16.gmra.mxu0 %v5338
  %v5365 = vpop.f32.mrf.mxu0
  %v5366 = vadd.f32 %v5353, %v5365
  %v5367 = vpop.f32.mrf.mxu0
  %5368 = vdwg.mxu0
  %v5369 = vadd.f32 %v5151, %v5366
  %v5370 = vperm.slane %v4706, 3
  %v5371 = vperm.slane %v4706, 7
  %v5372 = vperm.slane %v4708, 3
  %v5373 = vperm.slane %v4708, 7
  %v5374 = vperm.slane %v4709, 3
  %v5375 = vperm.slane %v4709, 7
  %v5376 = vperm.slane %v4711, 3
  %v5377 = vperm.slane %v4711, 7
  %v5378 = vperm.slane %v4712, 3
  %v5379 = vperm.slane %v4712, 7
  %v5380 = vperm.slane %v4714, 3
  %v5381 = vperm.slane %v4714, 7
  %v5382 = vperm.slane %v4715, 3
  %v5383 = vperm.slane %v4715, 7
  %v5384 = vperm.slane %v4717, 3
  %v5385 = vperm.slane %v4717, 7
  %v5402 = vpack.c.bf16 %v5370, %v5370
  %v5403 = vpack.c.bf16 %v5371, %v5371
  %v5404 = vpack.c.bf16 %v5372, %v5372
  %v5405 = vpack.c.bf16 %v5373, %v5373
  %v5406 = vpack.c.bf16 %v5374, %v5374
  %v5407 = vpack.c.bf16 %v5375, %v5375
  %v5408 = vpack.c.bf16 %v5376, %v5376
  %v5409 = vpack.c.bf16 %v5377, %v5377
  %v5410 = vpack.c.bf16 %v5378, %v5378
  %v5411 = vpack.c.bf16 %v5379, %v5379
  %v5412 = vpack.c.bf16 %v5380, %v5380
  %v5413 = vpack.c.bf16 %v5381, %v5381
  %v5414 = vpack.c.bf16 %v5382, %v5382
  %v5415 = vpack.c.bf16 %v5383, %v5383
  %v5416 = vpack.c.bf16 %v5384, %v5384
  %v5417 = vpack.c.bf16 %v5385, %v5385
  %s5418 = scalar_lea.vmem %s7, 216
  %v5419 = vld [vmem:[%s5418] sm:$0xf]
  %v5420 = vld [vmem:[%s5418 + $0x4] sm:$0xf]
  %v5421 = vld [vmem:[%s5418 + $0x8] sm:$0xf]
  %v5422 = vld [vmem:[%s5418 + $0xc] sm:$0xf]
  %v5423 = vld [vmem:[%s5418 + $0x10] sm:$0xf]
  %v5424 = vld [vmem:[%s5418 + $0x14] sm:$0xf]
  %v5425 = vld [vmem:[%s5418 + $0x18] sm:$0xf]
  %v5426 = vld [vmem:[%s5418 + $0x1c] sm:$0xf]
  %v5427 = vld [vmem:[%s5418 + $0x20] sm:$0xf]
  %v5428 = vld [vmem:[%s5418 + $0x24] sm:$0xf]
  %v5429 = vld [vmem:[%s5418 + $0x28] sm:$0xf]
  %v5430 = vld [vmem:[%s5418 + $0x2c] sm:$0xf]
  %v5431 = vld [vmem:[%s5418 + $0x30] sm:$0xf]
  %v5432 = vld [vmem:[%s5418 + $0x34] sm:$0xf]
  %v5433 = vld [vmem:[%s5418 + $0x38] sm:$0xf]
  %v5434 = vld [vmem:[%s5418 + $0x3c] sm:$0xf]
  %v5435 = vld [vmem:[%s5418 + $0x40] sm:$0xf]
  %v5436 = vld [vmem:[%s5418 + $0x44] sm:$0x3]
  %v5453 = vunpack.c.l.b16 %v5402
  %v5454 = vunpack.c.l.b16 %v5403
  %v5455 = vunpack.c.l.b16 %v5404
  %v5456 = vunpack.c.l.b16 %v5405
  %v5457 = vunpack.c.l.b16 %v5406
  %v5458 = vunpack.c.l.b16 %v5407
  %v5459 = vunpack.c.l.b16 %v5408
  %v5460 = vunpack.c.l.b16 %v5409
  %v5461 = vunpack.c.l.b16 %v5410
  %v5462 = vunpack.c.l.b16 %v5411
  %v5463 = vunpack.c.l.b16 %v5412
  %v5464 = vunpack.c.l.b16 %v5413
  %v5465 = vunpack.c.l.b16 %v5414
  %v5466 = vunpack.c.l.b16 %v5415
  %v5467 = vunpack.c.l.b16 %v5416
  %v5468 = vunpack.c.l.b16 %v5417
  %v5469 = vrot.slane %v5453, 3
  %v5470 = vrot.slane %v5455, 2
  %v5471 = vsel %vm4884, %v5470, %v5469
  %v5472 = vrot.slane %v5457, 1
  %v5473 = vsel %vm4887, %v5472, %v5471
  %v5474 = vsel %vm4890, %v5459, %v5473
  %v5475 = vrot.slane %v5461, 7
  %v5476 = vsel %vm3583, %v5475, %v5474
  %v5477 = vrot.slane %v5463, 6
  %v5478 = vsel %vm4895, %v5477, %v5476
  %v5479 = vrot.slane %v5465, 5
  %v5480 = vsel %vm4898, %v5479, %v5478
  %v5481 = vrot.slane %v5467, 4
  %v5482 = vsel %vm4901, %v5481, %v5480
  %v5483 = vrot.slane %v5454, 3
  %v5484 = vrot.slane %v5456, 2
  %v5485 = vsel %vm4884, %v5484, %v5483
  %v5486 = vrot.slane %v5458, 1
  %v5487 = vsel %vm4887, %v5486, %v5485
  %v5488 = vsel %vm4890, %v5460, %v5487
  %v5489 = vrot.slane %v5462, 7
  %v5490 = vsel %vm3583, %v5489, %v5488
  %v5491 = vrot.slane %v5464, 6
  %v5492 = vsel %vm4895, %v5491, %v5490
  %v5493 = vrot.slane %v5466, 5
  %v5494 = vsel %vm4898, %v5493, %v5492
  %v5495 = vrot.slane %v5468, 4
  %v5496 = vsel %vm4901, %v5495, %v5494
  %v5497 = vpack.c.b16 %v5482, %v5482
  %v5498 = vpack.c.b16 %v5496, %v5496
  %v5518 = vunpack.c.l.b16 %v5419
  %v5519 = vunpack.c.l.b16 %v5420
  %v5520 = vunpack.c.l.b16 %v5421
  %v5521 = vunpack.c.l.b16 %v5422
  %v5522 = vunpack.c.l.b16 %v5423
  %v5523 = vunpack.c.l.b16 %v5424
  %v5524 = vunpack.c.l.b16 %v5425
  %v5525 = vunpack.c.l.b16 %v5426
  %v5526 = vunpack.c.l.b16 %v5427
  %v5527 = vunpack.c.l.b16 %v5428
  %v5528 = vunpack.c.l.b16 %v5429
  %v5529 = vunpack.c.l.b16 %v5430
  %v5530 = vunpack.c.l.b16 %v5431
  %v5531 = vunpack.c.l.b16 %v5432
  %v5532 = vunpack.c.l.b16 %v5433
  %v5533 = vunpack.c.l.b16 %v5434
  %v5534 = vunpack.c.l.b16 %v5435
  %v5535 = vunpack.c.l.b16 %v5436
  %v5536 = vpack.c.b16 %v5519, %v5518
  %v5537 = vpack.c.b16 %v5521, %v5520
  %v5538 = vpack.c.b16 %v5523, %v5522
  %v5539 = vpack.c.b16 %v5525, %v5524
  %v5540 = vpack.c.b16 %v5527, %v5526
  %v5541 = vpack.c.b16 %v5529, %v5528
  %v5542 = vpack.c.b16 %v5531, %v5530
  %v5543 = vpack.c.b16 %v5533, %v5532
  %v5544 = vpack.c.b16 %v5535, %v5534
  %v5554 = vsel %vm4973, %v5498, 0
  %v5557 = vsel %vm175, %v5544, 0
  %5559 = vmatpush.bf16.msra.mxu0 %v5543
  %5560 = vmatpush.bf16.msra.mxu0 %v5542
  %5561 = vmatpush.bf16.msra.mxu0 %v5541
  %5562 = vmatpush.bf16.msra.mxu0 %v5540
  %5563 = vmatpush.bf16.msra.mxu0 %v5539
  %5564 = vmatpush.bf16.msra.mxu0 %v5538
  %5565 = vmatpush.bf16.msra.mxu0 %v5537
  %5566 = vmatpush.bf16.msra.mxu0 %v5536
  %5567 = vmatmul.bf16.gmra.mxu0 %v5497
  %v5568 = vpop.f32.mrf.mxu0
  %v5569 = vadd.f32 0.0, %v5568
  %v5570 = vpop.f32.mrf.mxu0
  %5571 = vdwg.mxu0
  %5572 = vmatpush.bf16.msra.mxu0 0
  %5573 = vmatpush.bf16.msra.mxu0 0
  %5574 = vmatpush.bf16.msra.mxu0 0
  %5575 = vmatpush.bf16.msra.mxu0 0
  %5576 = vmatpush.bf16.msra.mxu0 0
  %5577 = vmatpush.bf16.msra.mxu0 0
  %5578 = vmatpush.bf16.msra.mxu0 0
  %5579 = vmatpush.bf16.msra.mxu0 %v5557
  %5580 = vmatmul.bf16.gmra.mxu0 %v5554
  %v5581 = vpop.f32.mrf.mxu0
  %v5582 = vadd.f32 %v5569, %v5581
  %v5583 = vpop.f32.mrf.mxu0
  %5584 = vdwg.mxu0
  %v5585 = vadd.f32 %v5369, %v5582
  %v5586 = vld [vmem:[%s8] sm:$0x1]
  %v5588 = vperm.slane %v5586, 0
  %v5590 = vadd.f32 %v5585, %v5588
  %v5591 = vmax.f32 %v5590, 0.0
  %v5592 = vpack.c.bf16 %v5591, %v5591
  %v5593 = vld [vmem:[%s9] sm:$0xf]
  %v5594 = vld [vmem:[%s9 + $0x4] sm:$0xf]
  %v5595 = vld [vmem:[%s9 + $0x8] sm:$0xf]
  %v5596 = vld [vmem:[%s9 + $0xc] sm:$0xf]
  %v5597 = vld [vmem:[%s9 + $0x10] sm:$0xf]
  %v5598 = vld [vmem:[%s9 + $0x14] sm:$0xf]
  %v5599 = vld [vmem:[%s9 + $0x18] sm:$0xf]
  %v5600 = vld [vmem:[%s9 + $0x1c] sm:$0xf]
  %v5601 = vld [vmem:[%s9 + $0x20] sm:$0xf]
  %v5602 = vld [vmem:[%s9 + $0x24] sm:$0xf]
  %v5603 = vld [vmem:[%s9 + $0x28] sm:$0xf]
  %v5604 = vld [vmem:[%s9 + $0x2c] sm:$0xf]
  %v5605 = vld [vmem:[%s9 + $0x30] sm:$0xf]
  %v5606 = vld [vmem:[%s9 + $0x34] sm:$0xf]
  %v5607 = vld [vmem:[%s9 + $0x38] sm:$0xf]
  %v5608 = vld [vmem:[%s9 + $0x3c] sm:$0xf]
  %v5609 = vld [vmem:[%s10] sm:$0x1]
  %v5611 = vperm.slane %v5609, 0
  %v5629 = vunpack.c.l.b16 %v5593
  %v5630 = vunpack.c.l.b16 %v5594
  %v5631 = vunpack.c.l.b16 %v5595
  %v5632 = vunpack.c.l.b16 %v5596
  %v5633 = vunpack.c.l.b16 %v5597
  %v5634 = vunpack.c.l.b16 %v5598
  %v5635 = vunpack.c.l.b16 %v5599
  %v5636 = vunpack.c.l.b16 %v5600
  %v5637 = vunpack.c.l.b16 %v5601
  %v5638 = vunpack.c.l.b16 %v5602
  %v5639 = vunpack.c.l.b16 %v5603
  %v5640 = vunpack.c.l.b16 %v5604
  %v5641 = vunpack.c.l.b16 %v5605
  %v5642 = vunpack.c.l.b16 %v5606
  %v5643 = vunpack.c.l.b16 %v5607
  %v5644 = vunpack.c.l.b16 %v5608
  %v5645 = vpack.c.b16 %v5630, %v5629
  %v5646 = vpack.c.b16 %v5632, %v5631
  %v5647 = vpack.c.b16 %v5634, %v5633
  %v5648 = vpack.c.b16 %v5636, %v5635
  %v5649 = vpack.c.b16 %v5638, %v5637
  %v5650 = vpack.c.b16 %v5640, %v5639
  %v5651 = vpack.c.b16 %v5642, %v5641
  %v5652 = vpack.c.b16 %v5644, %v5643
  %5661 = vmatpush.bf16.msra.mxu0 %v5652
  %5662 = vmatpush.bf16.msra.mxu0 %v5651
  %5663 = vmatpush.bf16.msra.mxu0 %v5650
  %5664 = vmatpush.bf16.msra.mxu0 %v5649
  %5665 = vmatpush.bf16.msra.mxu0 %v5648
  %5666 = vmatpush.bf16.msra.mxu0 %v5647
  %5667 = vmatpush.bf16.msra.mxu0 %v5646
  %5668 = vmatpush.bf16.msra.mxu0 %v5645
  %5669 = vmatmul.bf16.gmra.mxu0 %v5592
  %v5670 = vpop.f32.mrf.mxu0
  %v5671 = vadd.f32 %v5611, %v5670
  %v5672 = vpop.f32.mrf.mxu0
  %5673 = vdwg.mxu0
  %5674 = vst [vmem:[%s11] sm:$0xff] %v5671
  // Predicated region
  $region46: #{cnn_forward.1} parent=0 // pred_check
    _
  $region47: #{cnn_forward.1} parent=0 // pred_check_branch
    %5676 = sbr.rel (0) target = $region49
  $region48: #{cnn_forward.1} parent=0 // pred_region
    _
  $region49: #{cnn_forward.1} parent=0 // pred_fallthru
    _
  // Predicated region
  $region50: #{cnn_forward.1} parent=0 // pred_check
    _
  $region51: #{cnn_forward.1} parent=0 // pred_check_branch
    %5678 = sbr.rel (0) target = $region53
  $region52: #{cnn_forward.1} parent=0 // pred_region
    _
  $region53: #{cnn_forward.1} parent=0 // pred_fallthru
    _

</llo_original>
